<compile_context>
chip_gen: v6e
topology: v6e:2x2x1
jax: 0.10.0
libtpu: 0.0.40
codegen_flags: <defaults>
</compile_context>

<pallas_src>
import functools

import numpy as np
import jax
import jax.numpy as jnp
from jax import lax
from jax.experimental import pallas as pl
from jax.experimental.pallas import tpu as pltpu


# ----------------------------------------------------------------------------- helpers
def _interp_matrix_np(out_size, in_size):
    """Dense (out_size, in_size) matrix for 1-D linear resize, align_corners=True."""
    if in_size == 1:
        return np.ones((out_size, 1), np.float32)
    src = np.arange(out_size, dtype=np.float64) * (in_size - 1) / (out_size - 1)
    i0 = np.clip(np.floor(src).astype(np.int64), 0, in_size - 2)
    frac = (src - i0).astype(np.float32)
    m = np.zeros((out_size, in_size), np.float32)
    m[np.arange(out_size), i0] = 1.0 - frac
    m[np.arange(out_size), i0 + 1] = frac
    return m


# ----------------------------------------------------------------------------- kernel
def _up_kernel(x1_ref, x2_ref, uh_ref, uwt_ref,
               w1_ref, s1_ref, b1_ref, w2_ref, s2_ref, b2_ref,
               o_ref, pad1_ref, pad2_ref,
               *, C1, C2, C_mid, C_out, H1, W1, H2, W2,
               pad_top, pad_left, has_gap):
    C_in = C1 + C2
    H2u, W2u = 2 * H1, 2 * W1
    f32 = jnp.float32

    # ---- zero only the never-overwritten regions (1-px ring; F.pad gap if any) ----
    # (interiors are fully rewritten below each grid step, so they need no zeroing;
    #  re-zeroing the thin ring every step keeps per-core scratch correct on megacore)
    pad1_ref[:, 0:1, :] = jnp.zeros((C_in, 1, W2 + 2), f32)
    pad1_ref[:, H2 + 1:H2 + 2, :] = jnp.zeros((C_in, 1, W2 + 2), f32)
    pad1_ref[:, :, 0:1] = jnp.zeros((C_in, H2 + 2, 1), f32)
    pad1_ref[:, :, W2 + 1:W2 + 2] = jnp.zeros((C_in, H2 + 2, 1), f32)
    pad2_ref[:, 0:1, :] = jnp.zeros((C_mid, 1, W2 + 2), f32)
    pad2_ref[:, H2 + 1:H2 + 2, :] = jnp.zeros((C_mid, 1, W2 + 2), f32)
    pad2_ref[:, :, 0:1] = jnp.zeros((C_mid, H2 + 2, 1), f32)
    pad2_ref[:, :, W2 + 1:W2 + 2] = jnp.zeros((C_mid, H2 + 2, 1), f32)
    if has_gap:
        # F.pad zero border between the 2x-upsampled x1 window and x2's extent.
        pad1_ref[C2:C_in, 1:1 + H2, 1:1 + W2] = jnp.zeros((C1, H2, W2), f32)

    # ---- concat part 1: x2 occupies channels [0, C2) of the conv1 input ----
    # TODO(synk): could be DMA'd straight into pad1's interior (memory_space=pl.ANY)
    # to skip the VMEM->vreg->VMEM staging copy.
    pad1_ref[0:C2, 1:1 + H2, 1:1 + W2] = x2_ref[...].astype(f32)

    # ---- bilinear 2x upsample (align_corners=True) of x1 -> channels [C2, C2+C1) ----
    # Separable resize as two MXU dots per channel (vector-extended slot; frees
    # VPU / vld slots for the convs).
    uh = uh_ref[...]      # (H2u, H1)
    uwt = uwt_ref[...]    # (W1, W2u)
    for c in range(C1):
        xc = x1_ref[c].astype(f32)                                   # (H1, W1)
        t = jnp.dot(uh, xc, preferred_element_type=f32)              # (H2u, W1)
        u = jnp.dot(t, uwt, preferred_element_type=f32)              # (H2u, W2u)
        pad1_ref[C2 + c,
                 1 + pad_top:1 + pad_top + H2u,
                 1 + pad_left:1 + pad_left + W2u] = u

    # ---- conv1 (3x3, pad=1, no bias) + BN + ReLU -> interior of pad2 ----
    # ci-outer / co-inner: each shifted tap plane is loaded once and reused for all co.
    acc1 = [jnp.zeros((H2, W2), f32) for _ in range(C_mid)]
    for ci in range(C_in):
        taps = [pad1_ref[ci, ky:ky + H2, kx:kx + W2]
                for ky in range(3) for kx in range(3)]
        for co in range(C_mid):
            base = (co * C_in + ci) * 9
            for t in range(9):
                acc1[co] = acc1[co] + w1_ref[base + t] * taps[t]
    for co in range(C_mid):
        pad2_ref[co, 1:1 + H2, 1:1 + W2] = jnp.maximum(
            acc1[co] * s1_ref[co] + b1_ref[co], 0.0)

    # ---- conv2 (3x3, pad=1, no bias) + BN + ReLU -> output ----
    acc2 = [jnp.zeros((H2, W2), f32) for _ in range(C_out)]
    for ci in range(C_mid):
        taps = [pad2_ref[ci, ky:ky + H2, kx:kx + W2]
                for ky in range(3) for kx in range(3)]
        for co in range(C_out):
            base = (co * C_mid + ci) * 9
            for t in range(9):
                acc2[co] = acc2[co] + w2_ref[base + t] * taps[t]
    for co in range(C_out):
        o_ref[co] = jnp.maximum(
            acc2[co] * s2_ref[co] + b2_ref[co], 0.0).astype(o_ref.dtype)


# ----------------------------------------------------------------------------- wrapper
def up_forward(x1, x2, params, *, eps=1e-5):
    """Up.forward(x1, x2): bilinear 2x upsample of x1, pad to x2, concat, DoubleConv."""
    N, C1, H1, W1 = x1.shape
    N2, C2, H2, W2 = x2.shape
    assert N == N2
    w1 = params["conv1_w"]                 # (C_mid, C1+C2, 3, 3)
    w2 = params["conv2_w"]                 # (C_out, C_mid, 3, 3)
    C_mid, C_in = int(w1.shape[0]), int(w1.shape[1])
    C_out = int(w2.shape[0])
    assert C_in == C1 + C2

    H2u, W2u = 2 * H1, 2 * W1
    diffY, diffX = H2 - H2u, W2 - W2u
    assert diffY >= 0 and diffX >= 0
    pad_top, pad_left = diffY // 2, diffX // 2
    has_gap = (diffY > 0) or (diffX > 0)

    # Static interpolation matrices for the separable align_corners=True resize.
    uh = jnp.asarray(_interp_matrix_np(H2u, H1))          # (H2u, H1)
    uwt = jnp.asarray(_interp_matrix_np(W2u, W1).T)       # (W1, W2u)

    def fold_bn(gamma, beta, mean, var):
        scale = gamma / jnp.sqrt(var + eps)
        return scale.astype(jnp.float32), (beta - mean * scale).astype(jnp.float32)

    s1, b1 = fold_bn(params["bn1_gamma"], params["bn1_beta"],
                     params["bn1_mean"], params["bn1_var"])
    s2, b2 = fold_bn(params["bn2_gamma"], params["bn2_beta"],
                     params["bn2_mean"], params["bn2_var"])

    # Flatten conv weights; index = ((co*C_in + ci)*3 + ky)*3 + kx.
    # (SMEM scalar weights are only appropriate at tiny channel counts like this.)
    w1_flat = w1.reshape(-1).astype(jnp.float32)
    w2_flat = w2.reshape(-1).astype(jnp.float32)

    kernel = functools.partial(
        _up_kernel,
        C1=C1, C2=C2, C_mid=C_mid, C_out=C_out,
        H1=H1, W1=W1, H2=H2, W2=W2,
        pad_top=pad_top, pad_left=pad_left, has_gap=has_gap)

    smem_spec = pl.BlockSpec(memory_space=pltpu.MemorySpace.SMEM)

    return pl.pallas_call(
        kernel,
        out_shape=jax.ShapeDtypeStruct((N, C_out, H2, W2), x1.dtype),
        grid_spec=pltpu.PrefetchScalarGridSpec(
            num_scalar_prefetch=0,
            grid=(N,),
            in_specs=[
                pl.BlockSpec((None, C1, H1, W1), lambda n: (n, 0, 0, 0)),   # x1
                pl.BlockSpec((None, C2, H2, W2), lambda n: (n, 0, 0, 0)),   # x2
                pl.BlockSpec((H2u, H1), lambda n: (0, 0)),                  # Uh
                pl.BlockSpec((W1, W2u), lambda n: (0, 0)),                  # Uw^T
                smem_spec, smem_spec, smem_spec,                            # w1, s1, b1
                smem_spec, smem_spec, smem_spec,                            # w2, s2, b2
            ],
            out_specs=pl.BlockSpec((None, C_out, H2, W2), lambda n: (n, 0, 0, 0)),
            scratch_shapes=[
                pltpu.VMEM((C_in, H2 + 2, W2 + 2), jnp.float32),    # padded concat input
                pltpu.VMEM((C_mid, H2 + 2, W2 + 2), jnp.float32),   # padded conv1 output
            ],
        ),
        compiler_params=pltpu.CompilerParams(
            dimension_semantics=("parallel",),
            vmem_limit_bytes=32 * 1024 * 1024,   # real raise on v5e (16 MiB default)
        ),
    )(x1, x2, uh, uwt, w1_flat, s1, b1, w2_flat, s2, b2)


# ----------------------------------------------------------------------------- reference
def _upsample_bilinear_ref(x, out_h, out_w):
    # align_corners=True bilinear resize (gather + lerp; independent of the
    # matrix formulation used inside the kernel).
    N, C, H, W = x.shape
    sy = jnp.arange(out_h, dtype=jnp.float32) * ((H - 1) / (out_h - 1))
    sx = jnp.arange(out_w, dtype=jnp.float32) * ((W - 1) / (out_w - 1))
    y0 = jnp.clip(jnp.floor(sy).astype(jnp.int32), 0, H - 2)
    x0 = jnp.clip(jnp.floor(sx).astype(jnp.int32), 0, W - 2)
    fy = sy - y0.astype(jnp.float32)
    fx = sx - x0.astype(jnp.float32)
    r0 = x[:, :, y0, :]
    r1 = x[:, :, y0 + 1, :]
    ry = r0 * (1.0 - fy)[None, None, :, None] + r1 * fy[None, None, :, None]
    c0 = ry[:, :, :, x0]
    c1 = ry[:, :, :, x0 + 1]
    return c0 * (1.0 - fx)[None, None, None, :] + c1 * fx[None, None, None, :]


def _reference(x1, x2, params, eps=1e-5):
    N, C1, H1, W1 = x1.shape
    H2u, W2u = 2 * H1, 2 * W1
    x1u = _upsample_bilinear_ref(x1, H2u, W2u)
    diffY = x2.shape[2] - H2u
    diffX = x2.shape[3] - W2u
    x1p = jnp.pad(x1u, ((0, 0), (0, 0),
                        (diffY // 2, diffY - diffY // 2),
                        (diffX // 2, diffX - diffX // 2)))
    x = jnp.concatenate([x2, x1p], axis=1)

    def conv_bn_relu(h, w, gamma, beta, mean, var):
        y = lax.conv_general_dilated(h, w, window_strides=(1, 1), padding="SAME",
                                     dimension_numbers=("NCHW", "OIHW", "NCHW"),
                                     precision=lax.Precision.HIGHEST)
        scale = gamma / jnp.sqrt(var + eps)
        shift = beta - mean * scale
        return jnp.maximum(y * scale[None, :, None, None] + shift[None, :, None, None], 0.0)

    h = conv_bn_relu(x, params["conv1_w"], params["bn1_gamma"], params["bn1_beta"],
                     params["bn1_mean"], params["bn1_var"])
    h = conv_bn_relu(h, params["conv2_w"], params["bn2_gamma"], params["bn2_beta"],
                     params["bn2_mean"], params["bn2_var"])
    return h


# ----------------------------------------------------------------------------- main
if __name__ == "__main__":
    key = jax.random.PRNGKey(0)
    keys = jax.random.split(key, 12)

    N = 2
    in_channels, out_channels = 4, 4      # Up(4, 4, bilinear=True)
    C1 = in_channels // 2                 # x1 (deeper feature, pre-upsample) channels
    C2 = in_channels - C1                 # x2 (skip connection) channels
    C_mid = in_channels // 2              # DoubleConv mid_channels = in_channels // 2
    H1 = W1 = 8
    H2 = W2 = 16

    x1 = jax.random.normal(keys[0], (N, C1, H1, W1), jnp.float32)
    x2 = jax.random.normal(keys[1], (N, C2, H2, W2), jnp.float32)

    def conv_init(k, shape):
        fan_in = shape[1] * shape[2] * shape[3]
        bound = 1.0 / (fan_in ** 0.5)
        return jax.random.uniform(k, shape, jnp.float32, -bound, bound)

    params = {
        "conv1_w": conv_init(keys[2], (C_mid, in_channels, 3, 3)),
        "bn1_gamma": jax.random.uniform(keys[3], (C_mid,), jnp.float32, 0.5, 1.5),
        "bn1_beta": jax.random.uniform(keys[4], (C_mid,), jnp.float32, -0.5, 0.5),
        "bn1_mean": 0.1 * jax.random.normal(keys[5], (C_mid,), jnp.float32),
        "bn1_var": jax.random.uniform(keys[6], (C_mid,), jnp.float32, 0.5, 1.5),
        "conv2_w": conv_init(keys[7], (out_channels, C_mid, 3, 3)),
        "bn2_gamma": jax.random.uniform(keys[8], (out_channels,), jnp.float32, 0.5, 1.5),
        "bn2_beta": jax.random.uniform(keys[9], (out_channels,), jnp.float32, -0.5, 0.5),
        "bn2_mean": 0.1 * jax.random.normal(keys[10], (out_channels,), jnp.float32),
        "bn2_var": jax.random.uniform(keys[11], (out_channels,), jnp.float32, 0.5, 1.5),
    }

    out = up_forward(x1, x2, params)
    out = jax.block_until_ready(out)

    ref = _reference(x1, x2, params)
    assert out.shape == (N, out_channels, H2, W2)
    max_err = float(jnp.max(jnp.abs(out - ref)))
    assert jnp.allclose(out, ref, atol=1e-4, rtol=1e-4), f"mismatch vs reference (max abs err {max_err})"

    print("KERNEL_OK")
</pallas_src>

<mosaic_0001>
module attributes {stable_mosaic.version = 11 : i64} {
  func.func @_up_kernel(%arg0: i32, %arg1: memref<1x2x8x8xf32, #tpu.memory_space<vmem>>, %arg2: memref<1x2x16x16xf32, #tpu.memory_space<vmem>>, %arg3: memref<16x8xf32, #tpu.memory_space<vmem>>, %arg4: memref<8x16xf32, #tpu.memory_space<vmem>>, %arg5: memref<72xf32, #tpu.memory_space<smem>>, %arg6: memref<2xf32, #tpu.memory_space<smem>>, %arg7: memref<2xf32, #tpu.memory_space<smem>>, %arg8: memref<72xf32, #tpu.memory_space<smem>>, %arg9: memref<4xf32, #tpu.memory_space<smem>>, %arg10: memref<4xf32, #tpu.memory_space<smem>>, %arg11: memref<1x4x16x16xf32, #tpu.memory_space<vmem>>, %arg12: memref<4x18x18xf32, #tpu.memory_space<vmem>>, %arg13: memref<2x18x18xf32, #tpu.memory_space<vmem>>) attributes {dimension_semantics = [#tpu.dimension_semantics<parallel>], iteration_bounds = array<i64: 2>, scalar_prefetch = 0 : i64, scratch_operands = 2 : i64, tpu.core_type = #tpu.core_type<tc>, window_params = [{transform_indices = @transform_0, window_bounds = array<i64: 1, 2, 8, 8>}, {transform_indices = @transform_1, window_bounds = array<i64: 1, 2, 16, 16>}, {pipeline_mode = #tpu.pipeline_mode<synchronous>, transform_indices = @transform_2, window_bounds = array<i64: 16, 8>}, {pipeline_mode = #tpu.pipeline_mode<synchronous>, transform_indices = @transform_3, window_bounds = array<i64: 8, 16>}, {transform_indices = @transform_4, window_bounds = array<i64: 72>}, {transform_indices = @transform_5, window_bounds = array<i64: 2>}, {transform_indices = @transform_6, window_bounds = array<i64: 2>}, {transform_indices = @transform_7, window_bounds = array<i64: 72>}, {transform_indices = @transform_8, window_bounds = array<i64: 4>}, {transform_indices = @transform_9, window_bounds = array<i64: 4>}, {transform_indices = @transform_10, window_bounds = array<i64: 1, 4, 16, 16>}]} {
    %cst = arith.constant 0.000000e+00 : f32
    %0 = vector.broadcast %cst : f32 to vector<4x1x18xf32>
    %c0 = arith.constant 0 : index
    %c0_0 = arith.constant 0 : index
    %c0_1 = arith.constant 0 : index
    %1 = vector.load %arg12[%c0, %c0_0, %c0_1] : memref<4x18x18xf32, #tpu.memory_space<vmem>>, vector<4x1x18xf32>
    tpu.vector_store %arg12[%c0, %c0_0, %c0_1], %0 {strides = array<i32>} : memref<4x18x18xf32, #tpu.memory_space<vmem>>, vector<4x1x18xf32>,
    %cst_2 = arith.constant 0.000000e+00 : f32
    %2 = vector.broadcast %cst_2 : f32 to vector<4x1x18xf32>
    %c0_3 = arith.constant 0 : index
    %c17 = arith.constant 17 : index
    %c0_4 = arith.constant 0 : index
    %3 = vector.load %arg12[%c0_3, %c17, %c0_4] : memref<4x18x18xf32, #tpu.memory_space<vmem>>, vector<4x1x18xf32>
    tpu.vector_store %arg12[%c0_3, %c17, %c0_4], %2 {strides = array<i32>} : memref<4x18x18xf32, #tpu.memory_space<vmem>>, vector<4x1x18xf32>,
    %cst_5 = arith.constant 0.000000e+00 : f32
    %4 = vector.broadcast %cst_5 : f32 to vector<4x18x1xf32>
    %c0_6 = arith.constant 0 : index
    %c0_7 = arith.constant 0 : index
    %c0_8 = arith.constant 0 : index
    %5 = vector.load %arg12[%c0_6, %c0_7, %c0_8] : memref<4x18x18xf32, #tpu.memory_space<vmem>>, vector<4x18x1xf32>
    tpu.vector_store %arg12[%c0_6, %c0_7, %c0_8], %4 {strides = array<i32>} : memref<4x18x18xf32, #tpu.memory_space<vmem>>, vector<4x18x1xf32>,
    %cst_9 = arith.constant 0.000000e+00 : f32
    %6 = vector.broadcast %cst_9 : f32 to vector<4x18x1xf32>
    %c0_10 = arith.constant 0 : index
    %c0_11 = arith.constant 0 : index
    %c17_12 = arith.constant 17 : index
    %7 = vector.load %arg12[%c0_10, %c0_11, %c17_12] : memref<4x18x18xf32, #tpu.memory_space<vmem>>, vector<4x18x1xf32>
    tpu.vector_store %arg12[%c0_10, %c0_11, %c17_12], %6 {strides = array<i32>} : memref<4x18x18xf32, #tpu.memory_space<vmem>>, vector<4x18x1xf32>,
    %cst_13 = arith.constant 0.000000e+00 : f32
    %8 = vector.broadcast %cst_13 : f32 to vector<2x1x18xf32>
    %c0_14 = arith.constant 0 : index
    %c0_15 = arith.constant 0 : index
    %c0_16 = arith.constant 0 : index
    %9 = vector.load %arg13[%c0_14, %c0_15, %c0_16] : memref<2x18x18xf32, #tpu.memory_space<vmem>>, vector<2x1x18xf32>
    tpu.vector_store %arg13[%c0_14, %c0_15, %c0_16], %8 {strides = array<i32>} : memref<2x18x18xf32, #tpu.memory_space<vmem>>, vector<2x1x18xf32>,
    %cst_17 = arith.constant 0.000000e+00 : f32
    %10 = vector.broadcast %cst_17 : f32 to vector<2x1x18xf32>
    %c0_18 = arith.constant 0 : index
    %c17_19 = arith.constant 17 : index
    %c0_20 = arith.constant 0 : index
    %11 = vector.load %arg13[%c0_18, %c17_19, %c0_20] : memref<2x18x18xf32, #tpu.memory_space<vmem>>, vector<2x1x18xf32>
    tpu.vector_store %arg13[%c0_18, %c17_19, %c0_20], %10 {strides = array<i32>} : memref<2x18x18xf32, #tpu.memory_space<vmem>>, vector<2x1x18xf32>,
    %cst_21 = arith.constant 0.000000e+00 : f32
    %12 = vector.broadcast %cst_21 : f32 to vector<2x18x1xf32>
    %c0_22 = arith.constant 0 : index
    %c0_23 = arith.constant 0 : index
    %c0_24 = arith.constant 0 : index
    %13 = vector.load %arg13[%c0_22, %c0_23, %c0_24] : memref<2x18x18xf32, #tpu.memory_space<vmem>>, vector<2x18x1xf32>
    tpu.vector_store %arg13[%c0_22, %c0_23, %c0_24], %12 {strides = array<i32>} : memref<2x18x18xf32, #tpu.memory_space<vmem>>, vector<2x18x1xf32>,
    %cst_25 = arith.constant 0.000000e+00 : f32
    %14 = vector.broadcast %cst_25 : f32 to vector<2x18x1xf32>
    %c0_26 = arith.constant 0 : index
    %c0_27 = arith.constant 0 : index
    %c17_28 = arith.constant 17 : index
    %15 = vector.load %arg13[%c0_26, %c0_27, %c17_28] : memref<2x18x18xf32, #tpu.memory_space<vmem>>, vector<2x18x1xf32>
    tpu.vector_store %arg13[%c0_26, %c0_27, %c17_28], %14 {strides = array<i32>} : memref<2x18x18xf32, #tpu.memory_space<vmem>>, vector<2x18x1xf32>,
    %c0_29 = arith.constant 0 : index
    %c0_30 = arith.constant 0 : index
    %c0_31 = arith.constant 0 : index
    %c0_32 = arith.constant 0 : index
    %16 = vector.load %arg2[%c0_29, %c0_30, %c0_31, %c0_32] : memref<1x2x16x16xf32, #tpu.memory_space<vmem>>, vector<1x2x16x16xf32>
    %17 = vector.shape_cast %16 : vector<1x2x16x16xf32> to vector<2x16x16xf32>
    %c0_33 = arith.constant 0 : index
    %c1 = arith.constant 1 : index
    %c1_34 = arith.constant 1 : index
    %18 = vector.load %arg12[%c0_33, %c1, %c1_34] : memref<4x18x18xf32, #tpu.memory_space<vmem>>, vector<2x16x16xf32>
    tpu.vector_store %arg12[%c0_33, %c1, %c1_34], %17 {strides = array<i32>} : memref<4x18x18xf32, #tpu.memory_space<vmem>>, vector<2x16x16xf32>,
    %c0_35 = arith.constant 0 : index
    %c0_36 = arith.constant 0 : index
    %19 = vector.load %arg3[%c0_35, %c0_36] : memref<16x8xf32, #tpu.memory_space<vmem>>, vector<16x8xf32>
    %c0_37 = arith.constant 0 : index
    %c0_38 = arith.constant 0 : index
    %20 = vector.load %arg4[%c0_37, %c0_38] : memref<8x16xf32, #tpu.memory_space<vmem>>, vector<8x16xf32>
    %c0_39 = arith.constant 0 : index
    %c0_40 = arith.constant 0 : index
    %c0_41 = arith.constant 0 : index
    %c0_42 = arith.constant 0 : index
    %21 = vector.load %arg1[%c0_39, %c0_40, %c0_41, %c0_42] : memref<1x2x8x8xf32, #tpu.memory_space<vmem>>, vector<1x1x8x8xf32>
    %22 = vector.shape_cast %21 : vector<1x1x8x8xf32> to vector<8x8xf32>
    %cst_43 = arith.constant dense<0.000000e+00> : vector<16x8xf32>
    %23 = tpu.matmul %19, %22, %cst_43 {dimension_numbers = #tpu.dot_dimension_numbers<[1], [0], [0], [1], [0, 0, 1, 1], [], []>} : vector<16x8xf32>, vector<8x8xf32>, vector<16x8xf32> -> vector<16x8xf32>
    %cst_44 = arith.constant dense<0.000000e+00> : vector<16x16xf32>
    %24 = tpu.matmul %23, %20, %cst_44 {dimension_numbers = #tpu.dot_dimension_numbers<[1], [0], [0], [1], [0, 0, 1, 1], [], []>} : vector<16x8xf32>, vector<8x16xf32>, vector<16x16xf32> -> vector<16x16xf32>
    %c2 = arith.constant 2 : index
    %c1_45 = arith.constant 1 : index
    %c1_46 = arith.constant 1 : index
    %25 = vector.load %arg12[%c2, %c1_45, %c1_46] : memref<4x18x18xf32, #tpu.memory_space<vmem>>, vector<1x16x16xf32>
    %26 = vector.shape_cast %25 : vector<1x16x16xf32> to vector<16x16xf32>
    %27 = vector.shape_cast %24 : vector<16x16xf32> to vector<1x16x16xf32>
    tpu.vector_store %arg12[%c2, %c1_45, %c1_46], %27 {strides = array<i32>} : memref<4x18x18xf32, #tpu.memory_space<vmem>>, vector<1x16x16xf32>,
    %c0_47 = arith.constant 0 : index
    %c1_48 = arith.constant 1 : index
    %c0_49 = arith.constant 0 : index
    %c0_50 = arith.constant 0 : index
    %28 = vector.load %arg1[%c0_47, %c1_48, %c0_49, %c0_50] : memref<1x2x8x8xf32, #tpu.memory_space<vmem>>, vector<1x1x8x8xf32>
    %29 = vector.shape_cast %28 : vector<1x1x8x8xf32> to vector<8x8xf32>
    %cst_51 = arith.constant dense<0.000000e+00> : vector<16x8xf32>
    %30 = tpu.matmul %19, %29, %cst_51 {dimension_numbers = #tpu.dot_dimension_numbers<[1], [0], [0], [1], [0, 0, 1, 1], [], []>} : vector<16x8xf32>, vector<8x8xf32>, vector<16x8xf32> -> vector<16x8xf32>
    %cst_52 = arith.constant dense<0.000000e+00> : vector<16x16xf32>
    %31 = tpu.matmul %30, %20, %cst_52 {dimension_numbers = #tpu.dot_dimension_numbers<[1], [0], [0], [1], [0, 0, 1, 1], [], []>} : vector<16x8xf32>, vector<8x16xf32>, vector<16x16xf32> -> vector<16x16xf32>
    %c3 = arith.constant 3 : index
    %c1_53 = arith.constant 1 : index
    %c1_54 = arith.constant 1 : index
    %32 = vector.load %arg12[%c3, %c1_53, %c1_54] : memref<4x18x18xf32, #tpu.memory_space<vmem>>, vector<1x16x16xf32>
    %33 = vector.shape_cast %32 : vector<1x16x16xf32> to vector<16x16xf32>
    %34 = vector.shape_cast %31 : vector<16x16xf32> to vector<1x16x16xf32>
    tpu.vector_store %arg12[%c3, %c1_53, %c1_54], %34 {strides = array<i32>} : memref<4x18x18xf32, #tpu.memory_space<vmem>>, vector<1x16x16xf32>,
    %cst_55 = arith.constant 0.000000e+00 : f32
    %35 = vector.broadcast %cst_55 : f32 to vector<16x16xf32>
    %cst_56 = arith.constant 0.000000e+00 : f32
    %36 = vector.broadcast %cst_56 : f32 to vector<16x16xf32>
    %c0_57 = arith.constant 0 : index
    %c0_58 = arith.constant 0 : index
    %c0_59 = arith.constant 0 : index
    %37 = vector.load %arg12[%c0_57, %c0_58, %c0_59] : memref<4x18x18xf32, #tpu.memory_space<vmem>>, vector<1x16x16xf32>
    %38 = vector.shape_cast %37 : vector<1x16x16xf32> to vector<16x16xf32>
    %c0_60 = arith.constant 0 : index
    %c0_61 = arith.constant 0 : index
    %c1_62 = arith.constant 1 : index
    %39 = vector.load %arg12[%c0_60, %c0_61, %c1_62] : memref<4x18x18xf32, #tpu.memory_space<vmem>>, vector<1x16x16xf32>
    %40 = vector.shape_cast %39 : vector<1x16x16xf32> to vector<16x16xf32>
    %c0_63 = arith.constant 0 : index
    %c0_64 = arith.constant 0 : index
    %c2_65 = arith.constant 2 : index
    %41 = vector.load %arg12[%c0_63, %c0_64, %c2_65] : memref<4x18x18xf32, #tpu.memory_space<vmem>>, vector<1x16x16xf32>
    %42 = vector.shape_cast %41 : vector<1x16x16xf32> to vector<16x16xf32>
    %c0_66 = arith.constant 0 : index
    %c1_67 = arith.constant 1 : index
    %c0_68 = arith.constant 0 : index
    %43 = vector.load %arg12[%c0_66, %c1_67, %c0_68] : memref<4x18x18xf32, #tpu.memory_space<vmem>>, vector<1x16x16xf32>
    %44 = vector.shape_cast %43 : vector<1x16x16xf32> to vector<16x16xf32>
    %c0_69 = arith.constant 0 : index
    %c1_70 = arith.constant 1 : index
    %c1_71 = arith.constant 1 : index
    %45 = vector.load %arg12[%c0_69, %c1_70, %c1_71] : memref<4x18x18xf32, #tpu.memory_space<vmem>>, vector<1x16x16xf32>
    %46 = vector.shape_cast %45 : vector<1x16x16xf32> to vector<16x16xf32>
    %c0_72 = arith.constant 0 : index
    %c1_73 = arith.constant 1 : index
    %c2_74 = arith.constant 2 : index
    %47 = vector.load %arg12[%c0_72, %c1_73, %c2_74] : memref<4x18x18xf32, #tpu.memory_space<vmem>>, vector<1x16x16xf32>
    %48 = vector.shape_cast %47 : vector<1x16x16xf32> to vector<16x16xf32>
    %c0_75 = arith.constant 0 : index
    %c2_76 = arith.constant 2 : index
    %c0_77 = arith.constant 0 : index
    %49 = vector.load %arg12[%c0_75, %c2_76, %c0_77] : memref<4x18x18xf32, #tpu.memory_space<vmem>>, vector<1x16x16xf32>
    %50 = vector.shape_cast %49 : vector<1x16x16xf32> to vector<16x16xf32>
    %c0_78 = arith.constant 0 : index
    %c2_79 = arith.constant 2 : index
    %c1_80 = arith.constant 1 : index
    %51 = vector.load %arg12[%c0_78, %c2_79, %c1_80] : memref<4x18x18xf32, #tpu.memory_space<vmem>>, vector<1x16x16xf32>
    %52 = vector.shape_cast %51 : vector<1x16x16xf32> to vector<16x16xf32>
    %c0_81 = arith.constant 0 : index
    %c2_82 = arith.constant 2 : index
    %c2_83 = arith.constant 2 : index
    %53 = vector.load %arg12[%c0_81, %c2_82, %c2_83] : memref<4x18x18xf32, #tpu.memory_space<vmem>>, vector<1x16x16xf32>
    %54 = vector.shape_cast %53 : vector<1x16x16xf32> to vector<16x16xf32>
    %c0_84 = arith.constant 0 : index
    %55 = memref.load %arg5[%c0_84] : memref<72xf32, #tpu.memory_space<smem>>
    %56 = vector.broadcast %55 : f32 to vector<16x16xf32>
    %57 = arith.mulf %56, %38 : vector<16x16xf32>
    %58 = arith.addf %35, %57 : vector<16x16xf32>
    %c1_85 = arith.constant 1 : index
    %59 = memref.load %arg5[%c1_85] : memref<72xf32, #tpu.memory_space<smem>>
    %60 = vector.broadcast %59 : f32 to vector<16x16xf32>
    %61 = arith.mulf %60, %40 : vector<16x16xf32>
    %62 = arith.addf %58, %61 : vector<16x16xf32>
    %c2_86 = arith.constant 2 : index
    %63 = memref.load %arg5[%c2_86] : memref<72xf32, #tpu.memory_space<smem>>
    %64 = vector.broadcast %63 : f32 to vector<16x16xf32>
    %65 = arith.mulf %64, %42 : vector<16x16xf32>
    %66 = arith.addf %62, %65 : vector<16x16xf32>
    %c3_87 = arith.constant 3 : index
    %67 = memref.load %arg5[%c3_87] : memref<72xf32, #tpu.memory_space<smem>>
    %68 = vector.broadcast %67 : f32 to vector<16x16xf32>
    %69 = arith.mulf %68, %44 : vector<16x16xf32>
    %70 = arith.addf %66, %69 : vector<16x16xf32>
    %c4 = arith.constant 4 : index
    %71 = memref.load %arg5[%c4] : memref<72xf32, #tpu.memory_space<smem>>
    %72 = vector.broadcast %71 : f32 to vector<16x16xf32>
    %73 = arith.mulf %72, %46 : vector<16x16xf32>
    %74 = arith.addf %70, %73 : vector<16x16xf32>
    %c5 = arith.constant 5 : index
    %75 = memref.load %arg5[%c5] : memref<72xf32, #tpu.memory_space<smem>>
    %76 = vector.broadcast %75 : f32 to vector<16x16xf32>
    %77 = arith.mulf %76, %48 : vector<16x16xf32>
    %78 = arith.addf %74, %77 : vector<16x16xf32>
    %c6 = arith.constant 6 : index
    %79 = memref.load %arg5[%c6] : memref<72xf32, #tpu.memory_space<smem>>
    %80 = vector.broadcast %79 : f32 to vector<16x16xf32>
    %81 = arith.mulf %80, %50 : vector<16x16xf32>
    %82 = arith.addf %78, %81 : vector<16x16xf32>
    %c7 = arith.constant 7 : index
    %83 = memref.load %arg5[%c7] : memref<72xf32, #tpu.memory_space<smem>>
    %84 = vector.broadcast %83 : f32 to vector<16x16xf32>
    %85 = arith.mulf %84, %52 : vector<16x16xf32>
    %86 = arith.addf %82, %85 : vector<16x16xf32>
    %c8 = arith.constant 8 : index
    %87 = memref.load %arg5[%c8] : memref<72xf32, #tpu.memory_space<smem>>
    %88 = vector.broadcast %87 : f32 to vector<16x16xf32>
    %89 = arith.mulf %88, %54 : vector<16x16xf32>
    %90 = arith.addf %86, %89 : vector<16x16xf32>
    %c36 = arith.constant 36 : index
    %91 = memref.load %arg5[%c36] : memref<72xf32, #tpu.memory_space<smem>>
    %92 = vector.broadcast %91 : f32 to vector<16x16xf32>
    %93 = arith.mulf %92, %38 : vector<16x16xf32>
    %94 = arith.addf %36, %93 : vector<16x16xf32>
    %c37 = arith.constant 37 : index
    %95 = memref.load %arg5[%c37] : memref<72xf32, #tpu.memory_space<smem>>
    %96 = vector.broadcast %95 : f32 to vector<16x16xf32>
    %97 = arith.mulf %96, %40 : vector<16x16xf32>
    %98 = arith.addf %94, %97 : vector<16x16xf32>
    %c38 = arith.constant 38 : index
    %99 = memref.load %arg5[%c38] : memref<72xf32, #tpu.memory_space<smem>>
    %100 = vector.broadcast %99 : f32 to vector<16x16xf32>
    %101 = arith.mulf %100, %42 : vector<16x16xf32>
    %102 = arith.addf %98, %101 : vector<16x16xf32>
    %c39 = arith.constant 39 : index
    %103 = memref.load %arg5[%c39] : memref<72xf32, #tpu.memory_space<smem>>
    %104 = vector.broadcast %103 : f32 to vector<16x16xf32>
    %105 = arith.mulf %104, %44 : vector<16x16xf32>
    %106 = arith.addf %102, %105 : vector<16x16xf32>
    %c40 = arith.constant 40 : index
    %107 = memref.load %arg5[%c40] : memref<72xf32, #tpu.memory_space<smem>>
    %108 = vector.broadcast %107 : f32 to vector<16x16xf32>
    %109 = arith.mulf %108, %46 : vector<16x16xf32>
    %110 = arith.addf %106, %109 : vector<16x16xf32>
    %c41 = arith.constant 41 : index
    %111 = memref.load %arg5[%c41] : memref<72xf32, #tpu.memory_space<smem>>
    %112 = vector.broadcast %111 : f32 to vector<16x16xf32>
    %113 = arith.mulf %112, %48 : vector<16x16xf32>
    %114 = arith.addf %110, %113 : vector<16x16xf32>
    %c42 = arith.constant 42 : index
    %115 = memref.load %arg5[%c42] : memref<72xf32, #tpu.memory_space<smem>>
    %116 = vector.broadcast %115 : f32 to vector<16x16xf32>
    %117 = arith.mulf %116, %50 : vector<16x16xf32>
    %118 = arith.addf %114, %117 : vector<16x16xf32>
    %c43 = arith.constant 43 : index
    %119 = memref.load %arg5[%c43] : memref<72xf32, #tpu.memory_space<smem>>
    %120 = vector.broadcast %119 : f32 to vector<16x16xf32>
    %121 = arith.mulf %120, %52 : vector<16x16xf32>
    %122 = arith.addf %118, %121 : vector<16x16xf32>
    %c44 = arith.constant 44 : index
    %123 = memref.load %arg5[%c44] : memref<72xf32, #tpu.memory_space<smem>>
    %124 = vector.broadcast %123 : f32 to vector<16x16xf32>
    %125 = arith.mulf %124, %54 : vector<16x16xf32>
    %126 = arith.addf %122, %125 : vector<16x16xf32>
    %c1_88 = arith.constant 1 : index
    %c0_89 = arith.constant 0 : index
    %c0_90 = arith.constant 0 : index
    %127 = vector.load %arg12[%c1_88, %c0_89, %c0_90] : memref<4x18x18xf32, #tpu.memory_space<vmem>>, vector<1x16x16xf32>
    %128 = vector.shape_cast %127 : vector<1x16x16xf32> to vector<16x16xf32>
    %c1_91 = arith.constant 1 : index
    %c0_92 = arith.constant 0 : index
    %c1_93 = arith.constant 1 : index
    %129 = vector.load %arg12[%c1_91, %c0_92, %c1_93] : memref<4x18x18xf32, #tpu.memory_space<vmem>>, vector<1x16x16xf32>
    %130 = vector.shape_cast %129 : vector<1x16x16xf32> to vector<16x16xf32>
    %c1_94 = arith.constant 1 : index
    %c0_95 = arith.constant 0 : index
    %c2_96 = arith.constant 2 : index
    %131 = vector.load %arg12[%c1_94, %c0_95, %c2_96] : memref<4x18x18xf32, #tpu.memory_space<vmem>>, vector<1x16x16xf32>
    %132 = vector.shape_cast %131 : vector<1x16x16xf32> to vector<16x16xf32>
    %c1_97 = arith.constant 1 : index
    %c1_98 = arith.constant 1 : index
    %c0_99 = arith.constant 0 : index
    %133 = vector.load %arg12[%c1_97, %c1_98, %c0_99] : memref<4x18x18xf32, #tpu.memory_space<vmem>>, vector<1x16x16xf32>
    %134 = vector.shape_cast %133 : vector<1x16x16xf32> to vector<16x16xf32>
    %c1_100 = arith.constant 1 : index
    %c1_101 = arith.constant 1 : index
    %c1_102 = arith.constant 1 : index
    %135 = vector.load %arg12[%c1_100, %c1_101, %c1_102] : memref<4x18x18xf32, #tpu.memory_space<vmem>>, vector<1x16x16xf32>
    %136 = vector.shape_cast %135 : vector<1x16x16xf32> to vector<16x16xf32>
    %c1_103 = arith.constant 1 : index
    %c1_104 = arith.constant 1 : index
    %c2_105 = arith.constant 2 : index
    %137 = vector.load %arg12[%c1_103, %c1_104, %c2_105] : memref<4x18x18xf32, #tpu.memory_space<vmem>>, vector<1x16x16xf32>
    %138 = vector.shape_cast %137 : vector<1x16x16xf32> to vector<16x16xf32>
    %c1_106 = arith.constant 1 : index
    %c2_107 = arith.constant 2 : index
    %c0_108 = arith.constant 0 : index
    %139 = vector.load %arg12[%c1_106, %c2_107, %c0_108] : memref<4x18x18xf32, #tpu.memory_space<vmem>>, vector<1x16x16xf32>
    %140 = vector.shape_cast %139 : vector<1x16x16xf32> to vector<16x16xf32>
    %c1_109 = arith.constant 1 : index
    %c2_110 = arith.constant 2 : index
    %c1_111 = arith.constant 1 : index
    %141 = vector.load %arg12[%c1_109, %c2_110, %c1_111] : memref<4x18x18xf32, #tpu.memory_space<vmem>>, vector<1x16x16xf32>
    %142 = vector.shape_cast %141 : vector<1x16x16xf32> to vector<16x16xf32>
    %c1_112 = arith.constant 1 : index
    %c2_113 = arith.constant 2 : index
    %c2_114 = arith.constant 2 : index
    %143 = vector.load %arg12[%c1_112, %c2_113, %c2_114] : memref<4x18x18xf32, #tpu.memory_space<vmem>>, vector<1x16x16xf32>
    %144 = vector.shape_cast %143 : vector<1x16x16xf32> to vector<16x16xf32>
    %c9 = arith.constant 9 : index
    %145 = memref.load %arg5[%c9] : memref<72xf32, #tpu.memory_space<smem>>
    %146 = vector.broadcast %145 : f32 to vector<16x16xf32>
    %147 = arith.mulf %146, %128 : vector<16x16xf32>
    %148 = arith.addf %90, %147 : vector<16x16xf32>
    %c10 = arith.constant 10 : index
    %149 = memref.load %arg5[%c10] : memref<72xf32, #tpu.memory_space<smem>>
    %150 = vector.broadcast %149 : f32 to vector<16x16xf32>
    %151 = arith.mulf %150, %130 : vector<16x16xf32>
    %152 = arith.addf %148, %151 : vector<16x16xf32>
    %c11 = arith.constant 11 : index
    %153 = memref.load %arg5[%c11] : memref<72xf32, #tpu.memory_space<smem>>
    %154 = vector.broadcast %153 : f32 to vector<16x16xf32>
    %155 = arith.mulf %154, %132 : vector<16x16xf32>
    %156 = arith.addf %152, %155 : vector<16x16xf32>
    %c12 = arith.constant 12 : index
    %157 = memref.load %arg5[%c12] : memref<72xf32, #tpu.memory_space<smem>>
    %158 = vector.broadcast %157 : f32 to vector<16x16xf32>
    %159 = arith.mulf %158, %134 : vector<16x16xf32>
    %160 = arith.addf %156, %159 : vector<16x16xf32>
    %c13 = arith.constant 13 : index
    %161 = memref.load %arg5[%c13] : memref<72xf32, #tpu.memory_space<smem>>
    %162 = vector.broadcast %161 : f32 to vector<16x16xf32>
    %163 = arith.mulf %162, %136 : vector<16x16xf32>
    %164 = arith.addf %160, %163 : vector<16x16xf32>
    %c14 = arith.constant 14 : index
    %165 = memref.load %arg5[%c14] : memref<72xf32, #tpu.memory_space<smem>>
    %166 = vector.broadcast %165 : f32 to vector<16x16xf32>
    %167 = arith.mulf %166, %138 : vector<16x16xf32>
    %168 = arith.addf %164, %167 : vector<16x16xf32>
    %c15 = arith.constant 15 : index
    %169 = memref.load %arg5[%c15] : memref<72xf32, #tpu.memory_space<smem>>
    %170 = vector.broadcast %169 : f32 to vector<16x16xf32>
    %171 = arith.mulf %170, %140 : vector<16x16xf32>
    %172 = arith.addf %168, %171 : vector<16x16xf32>
    %c16 = arith.constant 16 : index
    %173 = memref.load %arg5[%c16] : memref<72xf32, #tpu.memory_space<smem>>
    %174 = vector.broadcast %173 : f32 to vector<16x16xf32>
    %175 = arith.mulf %174, %142 : vector<16x16xf32>
    %176 = arith.addf %172, %175 : vector<16x16xf32>
    %c17_115 = arith.constant 17 : index
    %177 = memref.load %arg5[%c17_115] : memref<72xf32, #tpu.memory_space<smem>>
    %178 = vector.broadcast %177 : f32 to vector<16x16xf32>
    %179 = arith.mulf %178, %144 : vector<16x16xf32>
    %180 = arith.addf %176, %179 : vector<16x16xf32>
    %c45 = arith.constant 45 : index
    %181 = memref.load %arg5[%c45] : memref<72xf32, #tpu.memory_space<smem>>
    %182 = vector.broadcast %181 : f32 to vector<16x16xf32>
    %183 = arith.mulf %182, %128 : vector<16x16xf32>
    %184 = arith.addf %126, %183 : vector<16x16xf32>
    %c46 = arith.constant 46 : index
    %185 = memref.load %arg5[%c46] : memref<72xf32, #tpu.memory_space<smem>>
    %186 = vector.broadcast %185 : f32 to vector<16x16xf32>
    %187 = arith.mulf %186, %130 : vector<16x16xf32>
    %188 = arith.addf %184, %187 : vector<16x16xf32>
    %c47 = arith.constant 47 : index
    %189 = memref.load %arg5[%c47] : memref<72xf32, #tpu.memory_space<smem>>
    %190 = vector.broadcast %189 : f32 to vector<16x16xf32>
    %191 = arith.mulf %190, %132 : vector<16x16xf32>
    %192 = arith.addf %188, %191 : vector<16x16xf32>
    %c48 = arith.constant 48 : index
    %193 = memref.load %arg5[%c48] : memref<72xf32, #tpu.memory_space<smem>>
    %194 = vector.broadcast %193 : f32 to vector<16x16xf32>
    %195 = arith.mulf %194, %134 : vector<16x16xf32>
    %196 = arith.addf %192, %195 : vector<16x16xf32>
    %c49 = arith.constant 49 : index
    %197 = memref.load %arg5[%c49] : memref<72xf32, #tpu.memory_space<smem>>
    %198 = vector.broadcast %197 : f32 to vector<16x16xf32>
    %199 = arith.mulf %198, %136 : vector<16x16xf32>
    %200 = arith.addf %196, %199 : vector<16x16xf32>
    %c50 = arith.constant 50 : index
    %201 = memref.load %arg5[%c50] : memref<72xf32, #tpu.memory_space<smem>>
    %202 = vector.broadcast %201 : f32 to vector<16x16xf32>
    %203 = arith.mulf %202, %138 : vector<16x16xf32>
    %204 = arith.addf %200, %203 : vector<16x16xf32>
    %c51 = arith.constant 51 : index
    %205 = memref.load %arg5[%c51] : memref<72xf32, #tpu.memory_space<smem>>
    %206 = vector.broadcast %205 : f32 to vector<16x16xf32>
    %207 = arith.mulf %206, %140 : vector<16x16xf32>
    %208 = arith.addf %204, %207 : vector<16x16xf32>
    %c52 = arith.constant 52 : index
    %209 = memref.load %arg5[%c52] : memref<72xf32, #tpu.memory_space<smem>>
    %210 = vector.broadcast %209 : f32 to vector<16x16xf32>
    %211 = arith.mulf %210, %142 : vector<16x16xf32>
    %212 = arith.addf %208, %211 : vector<16x16xf32>
    %c53 = arith.constant 53 : index
    %213 = memref.load %arg5[%c53] : memref<72xf32, #tpu.memory_space<smem>>
    %214 = vector.broadcast %213 : f32 to vector<16x16xf32>
    %215 = arith.mulf %214, %144 : vector<16x16xf32>
    %216 = arith.addf %212, %215 : vector<16x16xf32>
    %c2_116 = arith.constant 2 : index
    %c0_117 = arith.constant 0 : index
    %c0_118 = arith.constant 0 : index
    %217 = vector.load %arg12[%c2_116, %c0_117, %c0_118] : memref<4x18x18xf32, #tpu.memory_space<vmem>>, vector<1x16x16xf32>
    %218 = vector.shape_cast %217 : vector<1x16x16xf32> to vector<16x16xf32>
    %c2_119 = arith.constant 2 : index
    %c0_120 = arith.constant 0 : index
    %c1_121 = arith.constant 1 : index
    %219 = vector.load %arg12[%c2_119, %c0_120, %c1_121] : memref<4x18x18xf32, #tpu.memory_space<vmem>>, vector<1x16x16xf32>
    %220 = vector.shape_cast %219 : vector<1x16x16xf32> to vector<16x16xf32>
    %c2_122 = arith.constant 2 : index
    %c0_123 = arith.constant 0 : index
    %c2_124 = arith.constant 2 : index
    %221 = vector.load %arg12[%c2_122, %c0_123, %c2_124] : memref<4x18x18xf32, #tpu.memory_space<vmem>>, vector<1x16x16xf32>
    %222 = vector.shape_cast %221 : vector<1x16x16xf32> to vector<16x16xf32>
    %c2_125 = arith.constant 2 : index
    %c1_126 = arith.constant 1 : index
    %c0_127 = arith.constant 0 : index
    %223 = vector.load %arg12[%c2_125, %c1_126, %c0_127] : memref<4x18x18xf32, #tpu.memory_space<vmem>>, vector<1x16x16xf32>
    %224 = vector.shape_cast %223 : vector<1x16x16xf32> to vector<16x16xf32>
    %c2_128 = arith.constant 2 : index
    %c1_129 = arith.constant 1 : index
    %c1_130 = arith.constant 1 : index
    %225 = vector.load %arg12[%c2_128, %c1_129, %c1_130] : memref<4x18x18xf32, #tpu.memory_space<vmem>>, vector<1x16x16xf32>
    %226 = vector.shape_cast %225 : vector<1x16x16xf32> to vector<16x16xf32>
    %c2_131 = arith.constant 2 : index
    %c1_132 = arith.constant 1 : index
    %c2_133 = arith.constant 2 : index
    %227 = vector.load %arg12[%c2_131, %c1_132, %c2_133] : memref<4x18x18xf32, #tpu.memory_space<vmem>>, vector<1x16x16xf32>
    %228 = vector.shape_cast %227 : vector<1x16x16xf32> to vector<16x16xf32>
    %c2_134 = arith.constant 2 : index
    %c2_135 = arith.constant 2 : index
    %c0_136 = arith.constant 0 : index
    %229 = vector.load %arg12[%c2_134, %c2_135, %c0_136] : memref<4x18x18xf32, #tpu.memory_space<vmem>>, vector<1x16x16xf32>
    %230 = vector.shape_cast %229 : vector<1x16x16xf32> to vector<16x16xf32>
    %c2_137 = arith.constant 2 : index
    %c2_138 = arith.constant 2 : index
    %c1_139 = arith.constant 1 : index
    %231 = vector.load %arg12[%c2_137, %c2_138, %c1_139] : memref<4x18x18xf32, #tpu.memory_space<vmem>>, vector<1x16x16xf32>
    %232 = vector.shape_cast %231 : vector<1x16x16xf32> to vector<16x16xf32>
    %c2_140 = arith.constant 2 : index
    %c2_141 = arith.constant 2 : index
    %c2_142 = arith.constant 2 : index
    %233 = vector.load %arg12[%c2_140, %c2_141, %c2_142] : memref<4x18x18xf32, #tpu.memory_space<vmem>>, vector<1x16x16xf32>
    %234 = vector.shape_cast %233 : vector<1x16x16xf32> to vector<16x16xf32>
    %c18 = arith.constant 18 : index
    %235 = memref.load %arg5[%c18] : memref<72xf32, #tpu.memory_space<smem>>
    %236 = vector.broadcast %235 : f32 to vector<16x16xf32>
    %237 = arith.mulf %236, %218 : vector<16x16xf32>
    %238 = arith.addf %180, %237 : vector<16x16xf32>
    %c19 = arith.constant 19 : index
    %239 = memref.load %arg5[%c19] : memref<72xf32, #tpu.memory_space<smem>>
    %240 = vector.broadcast %239 : f32 to vector<16x16xf32>
    %241 = arith.mulf %240, %220 : vector<16x16xf32>
    %242 = arith.addf %238, %241 : vector<16x16xf32>
    %c20 = arith.constant 20 : index
    %243 = memref.load %arg5[%c20] : memref<72xf32, #tpu.memory_space<smem>>
    %244 = vector.broadcast %243 : f32 to vector<16x16xf32>
    %245 = arith.mulf %244, %222 : vector<16x16xf32>
    %246 = arith.addf %242, %245 : vector<16x16xf32>
    %c21 = arith.constant 21 : index
    %247 = memref.load %arg5[%c21] : memref<72xf32, #tpu.memory_space<smem>>
    %248 = vector.broadcast %247 : f32 to vector<16x16xf32>
    %249 = arith.mulf %248, %224 : vector<16x16xf32>
    %250 = arith.addf %246, %249 : vector<16x16xf32>
    %c22 = arith.constant 22 : index
    %251 = memref.load %arg5[%c22] : memref<72xf32, #tpu.memory_space<smem>>
    %252 = vector.broadcast %251 : f32 to vector<16x16xf32>
    %253 = arith.mulf %252, %226 : vector<16x16xf32>
    %254 = arith.addf %250, %253 : vector<16x16xf32>
    %c23 = arith.constant 23 : index
    %255 = memref.load %arg5[%c23] : memref<72xf32, #tpu.memory_space<smem>>
    %256 = vector.broadcast %255 : f32 to vector<16x16xf32>
    %257 = arith.mulf %256, %228 : vector<16x16xf32>
    %258 = arith.addf %254, %257 : vector<16x16xf32>
    %c24 = arith.constant 24 : index
    %259 = memref.load %arg5[%c24] : memref<72xf32, #tpu.memory_space<smem>>
    %260 = vector.broadcast %259 : f32 to vector<16x16xf32>
    %261 = arith.mulf %260, %230 : vector<16x16xf32>
    %262 = arith.addf %258, %261 : vector<16x16xf32>
    %c25 = arith.constant 25 : index
    %263 = memref.load %arg5[%c25] : memref<72xf32, #tpu.memory_space<smem>>
    %264 = vector.broadcast %263 : f32 to vector<16x16xf32>
    %265 = arith.mulf %264, %232 : vector<16x16xf32>
    %266 = arith.addf %262, %265 : vector<16x16xf32>
    %c26 = arith.constant 26 : index
    %267 = memref.load %arg5[%c26] : memref<72xf32, #tpu.memory_space<smem>>
    %268 = vector.broadcast %267 : f32 to vector<16x16xf32>
    %269 = arith.mulf %268, %234 : vector<16x16xf32>
    %270 = arith.addf %266, %269 : vector<16x16xf32>
    %c54 = arith.constant 54 : index
    %271 = memref.load %arg5[%c54] : memref<72xf32, #tpu.memory_space<smem>>
    %272 = vector.broadcast %271 : f32 to vector<16x16xf32>
    %273 = arith.mulf %272, %218 : vector<16x16xf32>
    %274 = arith.addf %216, %273 : vector<16x16xf32>
    %c55 = arith.constant 55 : index
    %275 = memref.load %arg5[%c55] : memref<72xf32, #tpu.memory_space<smem>>
    %276 = vector.broadcast %275 : f32 to vector<16x16xf32>
    %277 = arith.mulf %276, %220 : vector<16x16xf32>
    %278 = arith.addf %274, %277 : vector<16x16xf32>
    %c56 = arith.constant 56 : index
    %279 = memref.load %arg5[%c56] : memref<72xf32, #tpu.memory_space<smem>>
    %280 = vector.broadcast %279 : f32 to vector<16x16xf32>
    %281 = arith.mulf %280, %222 : vector<16x16xf32>
    %282 = arith.addf %278, %281 : vector<16x16xf32>
    %c57 = arith.constant 57 : index
    %283 = memref.load %arg5[%c57] : memref<72xf32, #tpu.memory_space<smem>>
    %284 = vector.broadcast %283 : f32 to vector<16x16xf32>
    %285 = arith.mulf %284, %224 : vector<16x16xf32>
    %286 = arith.addf %282, %285 : vector<16x16xf32>
    %c58 = arith.constant 58 : index
    %287 = memref.load %arg5[%c58] : memref<72xf32, #tpu.memory_space<smem>>
    %288 = vector.broadcast %287 : f32 to vector<16x16xf32>
    %289 = arith.mulf %288, %226 : vector<16x16xf32>
    %290 = arith.addf %286, %289 : vector<16x16xf32>
    %c59 = arith.constant 59 : index
    %291 = memref.load %arg5[%c59] : memref<72xf32, #tpu.memory_space<smem>>
    %292 = vector.broadcast %291 : f32 to vector<16x16xf32>
    %293 = arith.mulf %292, %228 : vector<16x16xf32>
    %294 = arith.addf %290, %293 : vector<16x16xf32>
    %c60 = arith.constant 60 : index
    %295 = memref.load %arg5[%c60] : memref<72xf32, #tpu.memory_space<smem>>
    %296 = vector.broadcast %295 : f32 to vector<16x16xf32>
    %297 = arith.mulf %296, %230 : vector<16x16xf32>
    %298 = arith.addf %294, %297 : vector<16x16xf32>
    %c61 = arith.constant 61 : index
    %299 = memref.load %arg5[%c61] : memref<72xf32, #tpu.memory_space<smem>>
    %300 = vector.broadcast %299 : f32 to vector<16x16xf32>
    %301 = arith.mulf %300, %232 : vector<16x16xf32>
    %302 = arith.addf %298, %301 : vector<16x16xf32>
    %c62 = arith.constant 62 : index
    %303 = memref.load %arg5[%c62] : memref<72xf32, #tpu.memory_space<smem>>
    %304 = vector.broadcast %303 : f32 to vector<16x16xf32>
    %305 = arith.mulf %304, %234 : vector<16x16xf32>
    %306 = arith.addf %302, %305 : vector<16x16xf32>
    %c3_143 = arith.constant 3 : index
    %c0_144 = arith.constant 0 : index
    %c0_145 = arith.constant 0 : index
    %307 = vector.load %arg12[%c3_143, %c0_144, %c0_145] : memref<4x18x18xf32, #tpu.memory_space<vmem>>, vector<1x16x16xf32>
    %308 = vector.shape_cast %307 : vector<1x16x16xf32> to vector<16x16xf32>
    %c3_146 = arith.constant 3 : index
    %c0_147 = arith.constant 0 : index
    %c1_148 = arith.constant 1 : index
    %309 = vector.load %arg12[%c3_146, %c0_147, %c1_148] : memref<4x18x18xf32, #tpu.memory_space<vmem>>, vector<1x16x16xf32>
    %310 = vector.shape_cast %309 : vector<1x16x16xf32> to vector<16x16xf32>
    %c3_149 = arith.constant 3 : index
    %c0_150 = arith.constant 0 : index
    %c2_151 = arith.constant 2 : index
    %311 = vector.load %arg12[%c3_149, %c0_150, %c2_151] : memref<4x18x18xf32, #tpu.memory_space<vmem>>, vector<1x16x16xf32>
    %312 = vector.shape_cast %311 : vector<1x16x16xf32> to vector<16x16xf32>
    %c3_152 = arith.constant 3 : index
    %c1_153 = arith.constant 1 : index
    %c0_154 = arith.constant 0 : index
    %313 = vector.load %arg12[%c3_152, %c1_153, %c0_154] : memref<4x18x18xf32, #tpu.memory_space<vmem>>, vector<1x16x16xf32>
    %314 = vector.shape_cast %313 : vector<1x16x16xf32> to vector<16x16xf32>
    %c3_155 = arith.constant 3 : index
    %c1_156 = arith.constant 1 : index
    %c1_157 = arith.constant 1 : index
    %315 = vector.load %arg12[%c3_155, %c1_156, %c1_157] : memref<4x18x18xf32, #tpu.memory_space<vmem>>, vector<1x16x16xf32>
    %316 = vector.shape_cast %315 : vector<1x16x16xf32> to vector<16x16xf32>
    %c3_158 = arith.constant 3 : index
    %c1_159 = arith.constant 1 : index
    %c2_160 = arith.constant 2 : index
    %317 = vector.load %arg12[%c3_158, %c1_159, %c2_160] : memref<4x18x18xf32, #tpu.memory_space<vmem>>, vector<1x16x16xf32>
    %318 = vector.shape_cast %317 : vector<1x16x16xf32> to vector<16x16xf32>
    %c3_161 = arith.constant 3 : index
    %c2_162 = arith.constant 2 : index
    %c0_163 = arith.constant 0 : index
    %319 = vector.load %arg12[%c3_161, %c2_162, %c0_163] : memref<4x18x18xf32, #tpu.memory_space<vmem>>, vector<1x16x16xf32>
    %320 = vector.shape_cast %319 : vector<1x16x16xf32> to vector<16x16xf32>
    %c3_164 = arith.constant 3 : index
    %c2_165 = arith.constant 2 : index
    %c1_166 = arith.constant 1 : index
    %321 = vector.load %arg12[%c3_164, %c2_165, %c1_166] : memref<4x18x18xf32, #tpu.memory_space<vmem>>, vector<1x16x16xf32>
    %322 = vector.shape_cast %321 : vector<1x16x16xf32> to vector<16x16xf32>
    %c3_167 = arith.constant 3 : index
    %c2_168 = arith.constant 2 : index
    %c2_169 = arith.constant 2 : index
    %323 = vector.load %arg12[%c3_167, %c2_168, %c2_169] : memref<4x18x18xf32, #tpu.memory_space<vmem>>, vector<1x16x16xf32>
    %324 = vector.shape_cast %323 : vector<1x16x16xf32> to vector<16x16xf32>
    %c27 = arith.constant 27 : index
    %325 = memref.load %arg5[%c27] : memref<72xf32, #tpu.memory_space<smem>>
    %326 = vector.broadcast %325 : f32 to vector<16x16xf32>
    %327 = arith.mulf %326, %308 : vector<16x16xf32>
    %328 = arith.addf %270, %327 : vector<16x16xf32>
    %c28 = arith.constant 28 : index
    %329 = memref.load %arg5[%c28] : memref<72xf32, #tpu.memory_space<smem>>
    %330 = vector.broadcast %329 : f32 to vector<16x16xf32>
    %331 = arith.mulf %330, %310 : vector<16x16xf32>
    %332 = arith.addf %328, %331 : vector<16x16xf32>
    %c29 = arith.constant 29 : index
    %333 = memref.load %arg5[%c29] : memref<72xf32, #tpu.memory_space<smem>>
    %334 = vector.broadcast %333 : f32 to vector<16x16xf32>
    %335 = arith.mulf %334, %312 : vector<16x16xf32>
    %336 = arith.addf %332, %335 : vector<16x16xf32>
    %c30 = arith.constant 30 : index
    %337 = memref.load %arg5[%c30] : memref<72xf32, #tpu.memory_space<smem>>
    %338 = vector.broadcast %337 : f32 to vector<16x16xf32>
    %339 = arith.mulf %338, %314 : vector<16x16xf32>
    %340 = arith.addf %336, %339 : vector<16x16xf32>
    %c31 = arith.constant 31 : index
    %341 = memref.load %arg5[%c31] : memref<72xf32, #tpu.memory_space<smem>>
    %342 = vector.broadcast %341 : f32 to vector<16x16xf32>
    %343 = arith.mulf %342, %316 : vector<16x16xf32>
    %344 = arith.addf %340, %343 : vector<16x16xf32>
    %c32 = arith.constant 32 : index
    %345 = memref.load %arg5[%c32] : memref<72xf32, #tpu.memory_space<smem>>
    %346 = vector.broadcast %345 : f32 to vector<16x16xf32>
    %347 = arith.mulf %346, %318 : vector<16x16xf32>
    %348 = arith.addf %344, %347 : vector<16x16xf32>
    %c33 = arith.constant 33 : index
    %349 = memref.load %arg5[%c33] : memref<72xf32, #tpu.memory_space<smem>>
    %350 = vector.broadcast %349 : f32 to vector<16x16xf32>
    %351 = arith.mulf %350, %320 : vector<16x16xf32>
    %352 = arith.addf %348, %351 : vector<16x16xf32>
    %c34 = arith.constant 34 : index
    %353 = memref.load %arg5[%c34] : memref<72xf32, #tpu.memory_space<smem>>
    %354 = vector.broadcast %353 : f32 to vector<16x16xf32>
    %355 = arith.mulf %354, %322 : vector<16x16xf32>
    %356 = arith.addf %352, %355 : vector<16x16xf32>
    %c35 = arith.constant 35 : index
    %357 = memref.load %arg5[%c35] : memref<72xf32, #tpu.memory_space<smem>>
    %358 = vector.broadcast %357 : f32 to vector<16x16xf32>
    %359 = arith.mulf %358, %324 : vector<16x16xf32>
    %360 = arith.addf %356, %359 : vector<16x16xf32>
    %c63 = arith.constant 63 : index
    %361 = memref.load %arg5[%c63] : memref<72xf32, #tpu.memory_space<smem>>
    %362 = vector.broadcast %361 : f32 to vector<16x16xf32>
    %363 = arith.mulf %362, %308 : vector<16x16xf32>
    %364 = arith.addf %306, %363 : vector<16x16xf32>
    %c64 = arith.constant 64 : index
    %365 = memref.load %arg5[%c64] : memref<72xf32, #tpu.memory_space<smem>>
    %366 = vector.broadcast %365 : f32 to vector<16x16xf32>
    %367 = arith.mulf %366, %310 : vector<16x16xf32>
    %368 = arith.addf %364, %367 : vector<16x16xf32>
    %c65 = arith.constant 65 : index
    %369 = memref.load %arg5[%c65] : memref<72xf32, #tpu.memory_space<smem>>
    %370 = vector.broadcast %369 : f32 to vector<16x16xf32>
    %371 = arith.mulf %370, %312 : vector<16x16xf32>
    %372 = arith.addf %368, %371 : vector<16x16xf32>
    %c66 = arith.constant 66 : index
    %373 = memref.load %arg5[%c66] : memref<72xf32, #tpu.memory_space<smem>>
    %374 = vector.broadcast %373 : f32 to vector<16x16xf32>
    %375 = arith.mulf %374, %314 : vector<16x16xf32>
    %376 = arith.addf %372, %375 : vector<16x16xf32>
    %c67 = arith.constant 67 : index
    %377 = memref.load %arg5[%c67] : memref<72xf32, #tpu.memory_space<smem>>
    %378 = vector.broadcast %377 : f32 to vector<16x16xf32>
    %379 = arith.mulf %378, %316 : vector<16x16xf32>
    %380 = arith.addf %376, %379 : vector<16x16xf32>
    %c68 = arith.constant 68 : index
    %381 = memref.load %arg5[%c68] : memref<72xf32, #tpu.memory_space<smem>>
    %382 = vector.broadcast %381 : f32 to vector<16x16xf32>
    %383 = arith.mulf %382, %318 : vector<16x16xf32>
    %384 = arith.addf %380, %383 : vector<16x16xf32>
    %c69 = arith.constant 69 : index
    %385 = memref.load %arg5[%c69] : memref<72xf32, #tpu.memory_space<smem>>
    %386 = vector.broadcast %385 : f32 to vector<16x16xf32>
    %387 = arith.mulf %386, %320 : vector<16x16xf32>
    %388 = arith.addf %384, %387 : vector<16x16xf32>
    %c70 = arith.constant 70 : index
    %389 = memref.load %arg5[%c70] : memref<72xf32, #tpu.memory_space<smem>>
    %390 = vector.broadcast %389 : f32 to vector<16x16xf32>
    %391 = arith.mulf %390, %322 : vector<16x16xf32>
    %392 = arith.addf %388, %391 : vector<16x16xf32>
    %c71 = arith.constant 71 : index
    %393 = memref.load %arg5[%c71] : memref<72xf32, #tpu.memory_space<smem>>
    %394 = vector.broadcast %393 : f32 to vector<16x16xf32>
    %395 = arith.mulf %394, %324 : vector<16x16xf32>
    %396 = arith.addf %392, %395 : vector<16x16xf32>
    %c0_170 = arith.constant 0 : index
    %397 = memref.load %arg6[%c0_170] : memref<2xf32, #tpu.memory_space<smem>>
    %398 = vector.broadcast %397 : f32 to vector<16x16xf32>
    %399 = arith.mulf %360, %398 : vector<16x16xf32>
    %c0_171 = arith.constant 0 : index
    %400 = memref.load %arg7[%c0_171] : memref<2xf32, #tpu.memory_space<smem>>
    %401 = vector.broadcast %400 : f32 to vector<16x16xf32>
    %402 = arith.addf %399, %401 : vector<16x16xf32>
    %cst_172 = arith.constant 0.000000e+00 : f32
    %403 = vector.broadcast %cst_172 : f32 to vector<16x16xf32>
    %404 = arith.maximumf %402, %403 : vector<16x16xf32>
    %c0_173 = arith.constant 0 : index
    %c1_174 = arith.constant 1 : index
    %c1_175 = arith.constant 1 : index
    %405 = vector.load %arg13[%c0_173, %c1_174, %c1_175] : memref<2x18x18xf32, #tpu.memory_space<vmem>>, vector<1x16x16xf32>
    %406 = vector.shape_cast %405 : vector<1x16x16xf32> to vector<16x16xf32>
    %407 = vector.shape_cast %404 : vector<16x16xf32> to vector<1x16x16xf32>
    tpu.vector_store %arg13[%c0_173, %c1_174, %c1_175], %407 {strides = array<i32>} : memref<2x18x18xf32, #tpu.memory_space<vmem>>, vector<1x16x16xf32>,
    %c1_176 = arith.constant 1 : index
    %408 = memref.load %arg6[%c1_176] : memref<2xf32, #tpu.memory_space<smem>>
    %409 = vector.broadcast %408 : f32 to vector<16x16xf32>
    %410 = arith.mulf %396, %409 : vector<16x16xf32>
    %c1_177 = arith.constant 1 : index
    %411 = memref.load %arg7[%c1_177] : memref<2xf32, #tpu.memory_space<smem>>
    %412 = vector.broadcast %411 : f32 to vector<16x16xf32>
    %413 = arith.addf %410, %412 : vector<16x16xf32>
    %cst_178 = arith.constant 0.000000e+00 : f32
    %414 = vector.broadcast %cst_178 : f32 to vector<16x16xf32>
    %415 = arith.maximumf %413, %414 : vector<16x16xf32>
    %c1_179 = arith.constant 1 : index
    %c1_180 = arith.constant 1 : index
    %c1_181 = arith.constant 1 : index
    %416 = vector.load %arg13[%c1_179, %c1_180, %c1_181] : memref<2x18x18xf32, #tpu.memory_space<vmem>>, vector<1x16x16xf32>
    %417 = vector.shape_cast %416 : vector<1x16x16xf32> to vector<16x16xf32>
    %418 = vector.shape_cast %415 : vector<16x16xf32> to vector<1x16x16xf32>
    tpu.vector_store %arg13[%c1_179, %c1_180, %c1_181], %418 {strides = array<i32>} : memref<2x18x18xf32, #tpu.memory_space<vmem>>, vector<1x16x16xf32>,
    %cst_182 = arith.constant 0.000000e+00 : f32
    %419 = vector.broadcast %cst_182 : f32 to vector<16x16xf32>
    %cst_183 = arith.constant 0.000000e+00 : f32
    %420 = vector.broadcast %cst_183 : f32 to vector<16x16xf32>
    %cst_184 = arith.constant 0.000000e+00 : f32
    %421 = vector.broadcast %cst_184 : f32 to vector<16x16xf32>
    %cst_185 = arith.constant 0.000000e+00 : f32
    %422 = vector.broadcast %cst_185 : f32 to vector<16x16xf32>
    %c0_186 = arith.constant 0 : index
    %c0_187 = arith.constant 0 : index
    %c0_188 = arith.constant 0 : index
    %423 = vector.load %arg13[%c0_186, %c0_187, %c0_188] : memref<2x18x18xf32, #tpu.memory_space<vmem>>, vector<1x16x16xf32>
    %424 = vector.shape_cast %423 : vector<1x16x16xf32> to vector<16x16xf32>
    %c0_189 = arith.constant 0 : index
    %c0_190 = arith.constant 0 : index
    %c1_191 = arith.constant 1 : index
    %425 = vector.load %arg13[%c0_189, %c0_190, %c1_191] : memref<2x18x18xf32, #tpu.memory_space<vmem>>, vector<1x16x16xf32>
    %426 = vector.shape_cast %425 : vector<1x16x16xf32> to vector<16x16xf32>
    %c0_192 = arith.constant 0 : index
    %c0_193 = arith.constant 0 : index
    %c2_194 = arith.constant 2 : index
    %427 = vector.load %arg13[%c0_192, %c0_193, %c2_194] : memref<2x18x18xf32, #tpu.memory_space<vmem>>, vector<1x16x16xf32>
    %428 = vector.shape_cast %427 : vector<1x16x16xf32> to vector<16x16xf32>
    %c0_195 = arith.constant 0 : index
    %c1_196 = arith.constant 1 : index
    %c0_197 = arith.constant 0 : index
    %429 = vector.load %arg13[%c0_195, %c1_196, %c0_197] : memref<2x18x18xf32, #tpu.memory_space<vmem>>, vector<1x16x16xf32>
    %430 = vector.shape_cast %429 : vector<1x16x16xf32> to vector<16x16xf32>
    %c0_198 = arith.constant 0 : index
    %c1_199 = arith.constant 1 : index
    %c1_200 = arith.constant 1 : index
    %431 = vector.load %arg13[%c0_198, %c1_199, %c1_200] : memref<2x18x18xf32, #tpu.memory_space<vmem>>, vector<1x16x16xf32>
    %432 = vector.shape_cast %431 : vector<1x16x16xf32> to vector<16x16xf32>
    %c0_201 = arith.constant 0 : index
    %c1_202 = arith.constant 1 : index
    %c2_203 = arith.constant 2 : index
    %433 = vector.load %arg13[%c0_201, %c1_202, %c2_203] : memref<2x18x18xf32, #tpu.memory_space<vmem>>, vector<1x16x16xf32>
    %434 = vector.shape_cast %433 : vector<1x16x16xf32> to vector<16x16xf32>
    %c0_204 = arith.constant 0 : index
    %c2_205 = arith.constant 2 : index
    %c0_206 = arith.constant 0 : index
    %435 = vector.load %arg13[%c0_204, %c2_205, %c0_206] : memref<2x18x18xf32, #tpu.memory_space<vmem>>, vector<1x16x16xf32>
    %436 = vector.shape_cast %435 : vector<1x16x16xf32> to vector<16x16xf32>
    %c0_207 = arith.constant 0 : index
    %c2_208 = arith.constant 2 : index
    %c1_209 = arith.constant 1 : index
    %437 = vector.load %arg13[%c0_207, %c2_208, %c1_209] : memref<2x18x18xf32, #tpu.memory_space<vmem>>, vector<1x16x16xf32>
    %438 = vector.shape_cast %437 : vector<1x16x16xf32> to vector<16x16xf32>
    %c0_210 = arith.constant 0 : index
    %c2_211 = arith.constant 2 : index
    %c2_212 = arith.constant 2 : index
    %439 = vector.load %arg13[%c0_210, %c2_211, %c2_212] : memref<2x18x18xf32, #tpu.memory_space<vmem>>, vector<1x16x16xf32>
    %440 = vector.shape_cast %439 : vector<1x16x16xf32> to vector<16x16xf32>
    %c0_213 = arith.constant 0 : index
    %441 = memref.load %arg8[%c0_213] : memref<72xf32, #tpu.memory_space<smem>>
    %442 = vector.broadcast %441 : f32 to vector<16x16xf32>
    %443 = arith.mulf %442, %424 : vector<16x16xf32>
    %444 = arith.addf %419, %443 : vector<16x16xf32>
    %c1_214 = arith.constant 1 : index
    %445 = memref.load %arg8[%c1_214] : memref<72xf32, #tpu.memory_space<smem>>
    %446 = vector.broadcast %445 : f32 to vector<16x16xf32>
    %447 = arith.mulf %446, %426 : vector<16x16xf32>
    %448 = arith.addf %444, %447 : vector<16x16xf32>
    %c2_215 = arith.constant 2 : index
    %449 = memref.load %arg8[%c2_215] : memref<72xf32, #tpu.memory_space<smem>>
    %450 = vector.broadcast %449 : f32 to vector<16x16xf32>
    %451 = arith.mulf %450, %428 : vector<16x16xf32>
    %452 = arith.addf %448, %451 : vector<16x16xf32>
    %c3_216 = arith.constant 3 : index
    %453 = memref.load %arg8[%c3_216] : memref<72xf32, #tpu.memory_space<smem>>
    %454 = vector.broadcast %453 : f32 to vector<16x16xf32>
    %455 = arith.mulf %454, %430 : vector<16x16xf32>
    %456 = arith.addf %452, %455 : vector<16x16xf32>
    %c4_217 = arith.constant 4 : index
    %457 = memref.load %arg8[%c4_217] : memref<72xf32, #tpu.memory_space<smem>>
    %458 = vector.broadcast %457 : f32 to vector<16x16xf32>
    %459 = arith.mulf %458, %432 : vector<16x16xf32>
    %460 = arith.addf %456, %459 : vector<16x16xf32>
    %c5_218 = arith.constant 5 : index
    %461 = memref.load %arg8[%c5_218] : memref<72xf32, #tpu.memory_space<smem>>
    %462 = vector.broadcast %461 : f32 to vector<16x16xf32>
    %463 = arith.mulf %462, %434 : vector<16x16xf32>
    %464 = arith.addf %460, %463 : vector<16x16xf32>
    %c6_219 = arith.constant 6 : index
    %465 = memref.load %arg8[%c6_219] : memref<72xf32, #tpu.memory_space<smem>>
    %466 = vector.broadcast %465 : f32 to vector<16x16xf32>
    %467 = arith.mulf %466, %436 : vector<16x16xf32>
    %468 = arith.addf %464, %467 : vector<16x16xf32>
    %c7_220 = arith.constant 7 : index
    %469 = memref.load %arg8[%c7_220] : memref<72xf32, #tpu.memory_space<smem>>
    %470 = vector.broadcast %469 : f32 to vector<16x16xf32>
    %471 = arith.mulf %470, %438 : vector<16x16xf32>
    %472 = arith.addf %468, %471 : vector<16x16xf32>
    %c8_221 = arith.constant 8 : index
    %473 = memref.load %arg8[%c8_221] : memref<72xf32, #tpu.memory_space<smem>>
    %474 = vector.broadcast %473 : f32 to vector<16x16xf32>
    %475 = arith.mulf %474, %440 : vector<16x16xf32>
    %476 = arith.addf %472, %475 : vector<16x16xf32>
    %c18_222 = arith.constant 18 : index
    %477 = memref.load %arg8[%c18_222] : memref<72xf32, #tpu.memory_space<smem>>
    %478 = vector.broadcast %477 : f32 to vector<16x16xf32>
    %479 = arith.mulf %478, %424 : vector<16x16xf32>
    %480 = arith.addf %420, %479 : vector<16x16xf32>
    %c19_223 = arith.constant 19 : index
    %481 = memref.load %arg8[%c19_223] : memref<72xf32, #tpu.memory_space<smem>>
    %482 = vector.broadcast %481 : f32 to vector<16x16xf32>
    %483 = arith.mulf %482, %426 : vector<16x16xf32>
    %484 = arith.addf %480, %483 : vector<16x16xf32>
    %c20_224 = arith.constant 20 : index
    %485 = memref.load %arg8[%c20_224] : memref<72xf32, #tpu.memory_space<smem>>
    %486 = vector.broadcast %485 : f32 to vector<16x16xf32>
    %487 = arith.mulf %486, %428 : vector<16x16xf32>
    %488 = arith.addf %484, %487 : vector<16x16xf32>
    %c21_225 = arith.constant 21 : index
    %489 = memref.load %arg8[%c21_225] : memref<72xf32, #tpu.memory_space<smem>>
    %490 = vector.broadcast %489 : f32 to vector<16x16xf32>
    %491 = arith.mulf %490, %430 : vector<16x16xf32>
    %492 = arith.addf %488, %491 : vector<16x16xf32>
    %c22_226 = arith.constant 22 : index
    %493 = memref.load %arg8[%c22_226] : memref<72xf32, #tpu.memory_space<smem>>
    %494 = vector.broadcast %493 : f32 to vector<16x16xf32>
    %495 = arith.mulf %494, %432 : vector<16x16xf32>
    %496 = arith.addf %492, %495 : vector<16x16xf32>
    %c23_227 = arith.constant 23 : index
    %497 = memref.load %arg8[%c23_227] : memref<72xf32, #tpu.memory_space<smem>>
    %498 = vector.broadcast %497 : f32 to vector<16x16xf32>
    %499 = arith.mulf %498, %434 : vector<16x16xf32>
    %500 = arith.addf %496, %499 : vector<16x16xf32>
    %c24_228 = arith.constant 24 : index
    %501 = memref.load %arg8[%c24_228] : memref<72xf32, #tpu.memory_space<smem>>
    %502 = vector.broadcast %501 : f32 to vector<16x16xf32>
    %503 = arith.mulf %502, %436 : vector<16x16xf32>
    %504 = arith.addf %500, %503 : vector<16x16xf32>
    %c25_229 = arith.constant 25 : index
    %505 = memref.load %arg8[%c25_229] : memref<72xf32, #tpu.memory_space<smem>>
    %506 = vector.broadcast %505 : f32 to vector<16x16xf32>
    %507 = arith.mulf %506, %438 : vector<16x16xf32>
    %508 = arith.addf %504, %507 : vector<16x16xf32>
    %c26_230 = arith.constant 26 : index
    %509 = memref.load %arg8[%c26_230] : memref<72xf32, #tpu.memory_space<smem>>
    %510 = vector.broadcast %509 : f32 to vector<16x16xf32>
    %511 = arith.mulf %510, %440 : vector<16x16xf32>
    %512 = arith.addf %508, %511 : vector<16x16xf32>
    %c36_231 = arith.constant 36 : index
    %513 = memref.load %arg8[%c36_231] : memref<72xf32, #tpu.memory_space<smem>>
    %514 = vector.broadcast %513 : f32 to vector<16x16xf32>
    %515 = arith.mulf %514, %424 : vector<16x16xf32>
    %516 = arith.addf %421, %515 : vector<16x16xf32>
    %c37_232 = arith.constant 37 : index
    %517 = memref.load %arg8[%c37_232] : memref<72xf32, #tpu.memory_space<smem>>
    %518 = vector.broadcast %517 : f32 to vector<16x16xf32>
    %519 = arith.mulf %518, %426 : vector<16x16xf32>
    %520 = arith.addf %516, %519 : vector<16x16xf32>
    %c38_233 = arith.constant 38 : index
    %521 = memref.load %arg8[%c38_233] : memref<72xf32, #tpu.memory_space<smem>>
    %522 = vector.broadcast %521 : f32 to vector<16x16xf32>
    %523 = arith.mulf %522, %428 : vector<16x16xf32>
    %524 = arith.addf %520, %523 : vector<16x16xf32>
    %c39_234 = arith.constant 39 : index
    %525 = memref.load %arg8[%c39_234] : memref<72xf32, #tpu.memory_space<smem>>
    %526 = vector.broadcast %525 : f32 to vector<16x16xf32>
    %527 = arith.mulf %526, %430 : vector<16x16xf32>
    %528 = arith.addf %524, %527 : vector<16x16xf32>
    %c40_235 = arith.constant 40 : index
    %529 = memref.load %arg8[%c40_235] : memref<72xf32, #tpu.memory_space<smem>>
    %530 = vector.broadcast %529 : f32 to vector<16x16xf32>
    %531 = arith.mulf %530, %432 : vector<16x16xf32>
    %532 = arith.addf %528, %531 : vector<16x16xf32>
    %c41_236 = arith.constant 41 : index
    %533 = memref.load %arg8[%c41_236] : memref<72xf32, #tpu.memory_space<smem>>
    %534 = vector.broadcast %533 : f32 to vector<16x16xf32>
    %535 = arith.mulf %534, %434 : vector<16x16xf32>
    %536 = arith.addf %532, %535 : vector<16x16xf32>
    %c42_237 = arith.constant 42 : index
    %537 = memref.load %arg8[%c42_237] : memref<72xf32, #tpu.memory_space<smem>>
    %538 = vector.broadcast %537 : f32 to vector<16x16xf32>
    %539 = arith.mulf %538, %436 : vector<16x16xf32>
    %540 = arith.addf %536, %539 : vector<16x16xf32>
    %c43_238 = arith.constant 43 : index
    %541 = memref.load %arg8[%c43_238] : memref<72xf32, #tpu.memory_space<smem>>
    %542 = vector.broadcast %541 : f32 to vector<16x16xf32>
    %543 = arith.mulf %542, %438 : vector<16x16xf32>
    %544 = arith.addf %540, %543 : vector<16x16xf32>
    %c44_239 = arith.constant 44 : index
    %545 = memref.load %arg8[%c44_239] : memref<72xf32, #tpu.memory_space<smem>>
    %546 = vector.broadcast %545 : f32 to vector<16x16xf32>
    %547 = arith.mulf %546, %440 : vector<16x16xf32>
    %548 = arith.addf %544, %547 : vector<16x16xf32>
    %c54_240 = arith.constant 54 : index
    %549 = memref.load %arg8[%c54_240] : memref<72xf32, #tpu.memory_space<smem>>
    %550 = vector.broadcast %549 : f32 to vector<16x16xf32>
    %551 = arith.mulf %550, %424 : vector<16x16xf32>
    %552 = arith.addf %422, %551 : vector<16x16xf32>
    %c55_241 = arith.constant 55 : index
    %553 = memref.load %arg8[%c55_241] : memref<72xf32, #tpu.memory_space<smem>>
    %554 = vector.broadcast %553 : f32 to vector<16x16xf32>
    %555 = arith.mulf %554, %426 : vector<16x16xf32>
    %556 = arith.addf %552, %555 : vector<16x16xf32>
    %c56_242 = arith.constant 56 : index
    %557 = memref.load %arg8[%c56_242] : memref<72xf32, #tpu.memory_space<smem>>
    %558 = vector.broadcast %557 : f32 to vector<16x16xf32>
    %559 = arith.mulf %558, %428 : vector<16x16xf32>
    %560 = arith.addf %556, %559 : vector<16x16xf32>
    %c57_243 = arith.constant 57 : index
    %561 = memref.load %arg8[%c57_243] : memref<72xf32, #tpu.memory_space<smem>>
    %562 = vector.broadcast %561 : f32 to vector<16x16xf32>
    %563 = arith.mulf %562, %430 : vector<16x16xf32>
    %564 = arith.addf %560, %563 : vector<16x16xf32>
    %c58_244 = arith.constant 58 : index
    %565 = memref.load %arg8[%c58_244] : memref<72xf32, #tpu.memory_space<smem>>
    %566 = vector.broadcast %565 : f32 to vector<16x16xf32>
    %567 = arith.mulf %566, %432 : vector<16x16xf32>
    %568 = arith.addf %564, %567 : vector<16x16xf32>
    %c59_245 = arith.constant 59 : index
    %569 = memref.load %arg8[%c59_245] : memref<72xf32, #tpu.memory_space<smem>>
    %570 = vector.broadcast %569 : f32 to vector<16x16xf32>
    %571 = arith.mulf %570, %434 : vector<16x16xf32>
    %572 = arith.addf %568, %571 : vector<16x16xf32>
    %c60_246 = arith.constant 60 : index
    %573 = memref.load %arg8[%c60_246] : memref<72xf32, #tpu.memory_space<smem>>
    %574 = vector.broadcast %573 : f32 to vector<16x16xf32>
    %575 = arith.mulf %574, %436 : vector<16x16xf32>
    %576 = arith.addf %572, %575 : vector<16x16xf32>
    %c61_247 = arith.constant 61 : index
    %577 = memref.load %arg8[%c61_247] : memref<72xf32, #tpu.memory_space<smem>>
    %578 = vector.broadcast %577 : f32 to vector<16x16xf32>
    %579 = arith.mulf %578, %438 : vector<16x16xf32>
    %580 = arith.addf %576, %579 : vector<16x16xf32>
    %c62_248 = arith.constant 62 : index
    %581 = memref.load %arg8[%c62_248] : memref<72xf32, #tpu.memory_space<smem>>
    %582 = vector.broadcast %581 : f32 to vector<16x16xf32>
    %583 = arith.mulf %582, %440 : vector<16x16xf32>
    %584 = arith.addf %580, %583 : vector<16x16xf32>
    %c1_249 = arith.constant 1 : index
    %c0_250 = arith.constant 0 : index
    %c0_251 = arith.constant 0 : index
    %585 = vector.load %arg13[%c1_249, %c0_250, %c0_251] : memref<2x18x18xf32, #tpu.memory_space<vmem>>, vector<1x16x16xf32>
    %586 = vector.shape_cast %585 : vector<1x16x16xf32> to vector<16x16xf32>
    %c1_252 = arith.constant 1 : index
    %c0_253 = arith.constant 0 : index
    %c1_254 = arith.constant 1 : index
    %587 = vector.load %arg13[%c1_252, %c0_253, %c1_254] : memref<2x18x18xf32, #tpu.memory_space<vmem>>, vector<1x16x16xf32>
    %588 = vector.shape_cast %587 : vector<1x16x16xf32> to vector<16x16xf32>
    %c1_255 = arith.constant 1 : index
    %c0_256 = arith.constant 0 : index
    %c2_257 = arith.constant 2 : index
    %589 = vector.load %arg13[%c1_255, %c0_256, %c2_257] : memref<2x18x18xf32, #tpu.memory_space<vmem>>, vector<1x16x16xf32>
    %590 = vector.shape_cast %589 : vector<1x16x16xf32> to vector<16x16xf32>
    %c1_258 = arith.constant 1 : index
    %c1_259 = arith.constant 1 : index
    %c0_260 = arith.constant 0 : index
    %591 = vector.load %arg13[%c1_258, %c1_259, %c0_260] : memref<2x18x18xf32, #tpu.memory_space<vmem>>, vector<1x16x16xf32>
    %592 = vector.shape_cast %591 : vector<1x16x16xf32> to vector<16x16xf32>
    %c1_261 = arith.constant 1 : index
    %c1_262 = arith.constant 1 : index
    %c1_263 = arith.constant 1 : index
    %593 = vector.load %arg13[%c1_261, %c1_262, %c1_263] : memref<2x18x18xf32, #tpu.memory_space<vmem>>, vector<1x16x16xf32>
    %594 = vector.shape_cast %593 : vector<1x16x16xf32> to vector<16x16xf32>
    %c1_264 = arith.constant 1 : index
    %c1_265 = arith.constant 1 : index
    %c2_266 = arith.constant 2 : index
    %595 = vector.load %arg13[%c1_264, %c1_265, %c2_266] : memref<2x18x18xf32, #tpu.memory_space<vmem>>, vector<1x16x16xf32>
    %596 = vector.shape_cast %595 : vector<1x16x16xf32> to vector<16x16xf32>
    %c1_267 = arith.constant 1 : index
    %c2_268 = arith.constant 2 : index
    %c0_269 = arith.constant 0 : index
    %597 = vector.load %arg13[%c1_267, %c2_268, %c0_269] : memref<2x18x18xf32, #tpu.memory_space<vmem>>, vector<1x16x16xf32>
    %598 = vector.shape_cast %597 : vector<1x16x16xf32> to vector<16x16xf32>
    %c1_270 = arith.constant 1 : index
    %c2_271 = arith.constant 2 : index
    %c1_272 = arith.constant 1 : index
    %599 = vector.load %arg13[%c1_270, %c2_271, %c1_272] : memref<2x18x18xf32, #tpu.memory_space<vmem>>, vector<1x16x16xf32>
    %600 = vector.shape_cast %599 : vector<1x16x16xf32> to vector<16x16xf32>
    %c1_273 = arith.constant 1 : index
    %c2_274 = arith.constant 2 : index
    %c2_275 = arith.constant 2 : index
    %601 = vector.load %arg13[%c1_273, %c2_274, %c2_275] : memref<2x18x18xf32, #tpu.memory_space<vmem>>, vector<1x16x16xf32>
    %602 = vector.shape_cast %601 : vector<1x16x16xf32> to vector<16x16xf32>
    %c9_276 = arith.constant 9 : index
    %603 = memref.load %arg8[%c9_276] : memref<72xf32, #tpu.memory_space<smem>>
    %604 = vector.broadcast %603 : f32 to vector<16x16xf32>
    %605 = arith.mulf %604, %586 : vector<16x16xf32>
    %606 = arith.addf %476, %605 : vector<16x16xf32>
    %c10_277 = arith.constant 10 : index
    %607 = memref.load %arg8[%c10_277] : memref<72xf32, #tpu.memory_space<smem>>
    %608 = vector.broadcast %607 : f32 to vector<16x16xf32>
    %609 = arith.mulf %608, %588 : vector<16x16xf32>
    %610 = arith.addf %606, %609 : vector<16x16xf32>
    %c11_278 = arith.constant 11 : index
    %611 = memref.load %arg8[%c11_278] : memref<72xf32, #tpu.memory_space<smem>>
    %612 = vector.broadcast %611 : f32 to vector<16x16xf32>
    %613 = arith.mulf %612, %590 : vector<16x16xf32>
    %614 = arith.addf %610, %613 : vector<16x16xf32>
    %c12_279 = arith.constant 12 : index
    %615 = memref.load %arg8[%c12_279] : memref<72xf32, #tpu.memory_space<smem>>
    %616 = vector.broadcast %615 : f32 to vector<16x16xf32>
    %617 = arith.mulf %616, %592 : vector<16x16xf32>
    %618 = arith.addf %614, %617 : vector<16x16xf32>
    %c13_280 = arith.constant 13 : index
    %619 = memref.load %arg8[%c13_280] : memref<72xf32, #tpu.memory_space<smem>>
    %620 = vector.broadcast %619 : f32 to vector<16x16xf32>
    %621 = arith.mulf %620, %594 : vector<16x16xf32>
    %622 = arith.addf %618, %621 : vector<16x16xf32>
    %c14_281 = arith.constant 14 : index
    %623 = memref.load %arg8[%c14_281] : memref<72xf32, #tpu.memory_space<smem>>
    %624 = vector.broadcast %623 : f32 to vector<16x16xf32>
    %625 = arith.mulf %624, %596 : vector<16x16xf32>
    %626 = arith.addf %622, %625 : vector<16x16xf32>
    %c15_282 = arith.constant 15 : index
    %627 = memref.load %arg8[%c15_282] : memref<72xf32, #tpu.memory_space<smem>>
    %628 = vector.broadcast %627 : f32 to vector<16x16xf32>
    %629 = arith.mulf %628, %598 : vector<16x16xf32>
    %630 = arith.addf %626, %629 : vector<16x16xf32>
    %c16_283 = arith.constant 16 : index
    %631 = memref.load %arg8[%c16_283] : memref<72xf32, #tpu.memory_space<smem>>
    %632 = vector.broadcast %631 : f32 to vector<16x16xf32>
    %633 = arith.mulf %632, %600 : vector<16x16xf32>
    %634 = arith.addf %630, %633 : vector<16x16xf32>
    %c17_284 = arith.constant 17 : index
    %635 = memref.load %arg8[%c17_284] : memref<72xf32, #tpu.memory_space<smem>>
    %636 = vector.broadcast %635 : f32 to vector<16x16xf32>
    %637 = arith.mulf %636, %602 : vector<16x16xf32>
    %638 = arith.addf %634, %637 : vector<16x16xf32>
    %c27_285 = arith.constant 27 : index
    %639 = memref.load %arg8[%c27_285] : memref<72xf32, #tpu.memory_space<smem>>
    %640 = vector.broadcast %639 : f32 to vector<16x16xf32>
    %641 = arith.mulf %640, %586 : vector<16x16xf32>
    %642 = arith.addf %512, %641 : vector<16x16xf32>
    %c28_286 = arith.constant 28 : index
    %643 = memref.load %arg8[%c28_286] : memref<72xf32, #tpu.memory_space<smem>>
    %644 = vector.broadcast %643 : f32 to vector<16x16xf32>
    %645 = arith.mulf %644, %588 : vector<16x16xf32>
    %646 = arith.addf %642, %645 : vector<16x16xf32>
    %c29_287 = arith.constant 29 : index
    %647 = memref.load %arg8[%c29_287] : memref<72xf32, #tpu.memory_space<smem>>
    %648 = vector.broadcast %647 : f32 to vector<16x16xf32>
    %649 = arith.mulf %648, %590 : vector<16x16xf32>
    %650 = arith.addf %646, %649 : vector<16x16xf32>
    %c30_288 = arith.constant 30 : index
    %651 = memref.load %arg8[%c30_288] : memref<72xf32, #tpu.memory_space<smem>>
    %652 = vector.broadcast %651 : f32 to vector<16x16xf32>
    %653 = arith.mulf %652, %592 : vector<16x16xf32>
    %654 = arith.addf %650, %653 : vector<16x16xf32>
    %c31_289 = arith.constant 31 : index
    %655 = memref.load %arg8[%c31_289] : memref<72xf32, #tpu.memory_space<smem>>
    %656 = vector.broadcast %655 : f32 to vector<16x16xf32>
    %657 = arith.mulf %656, %594 : vector<16x16xf32>
    %658 = arith.addf %654, %657 : vector<16x16xf32>
    %c32_290 = arith.constant 32 : index
    %659 = memref.load %arg8[%c32_290] : memref<72xf32, #tpu.memory_space<smem>>
    %660 = vector.broadcast %659 : f32 to vector<16x16xf32>
    %661 = arith.mulf %660, %596 : vector<16x16xf32>
    %662 = arith.addf %658, %661 : vector<16x16xf32>
    %c33_291 = arith.constant 33 : index
    %663 = memref.load %arg8[%c33_291] : memref<72xf32, #tpu.memory_space<smem>>
    %664 = vector.broadcast %663 : f32 to vector<16x16xf32>
    %665 = arith.mulf %664, %598 : vector<16x16xf32>
    %666 = arith.addf %662, %665 : vector<16x16xf32>
    %c34_292 = arith.constant 34 : index
    %667 = memref.load %arg8[%c34_292] : memref<72xf32, #tpu.memory_space<smem>>
    %668 = vector.broadcast %667 : f32 to vector<16x16xf32>
    %669 = arith.mulf %668, %600 : vector<16x16xf32>
    %670 = arith.addf %666, %669 : vector<16x16xf32>
    %c35_293 = arith.constant 35 : index
    %671 = memref.load %arg8[%c35_293] : memref<72xf32, #tpu.memory_space<smem>>
    %672 = vector.broadcast %671 : f32 to vector<16x16xf32>
    %673 = arith.mulf %672, %602 : vector<16x16xf32>
    %674 = arith.addf %670, %673 : vector<16x16xf32>
    %c45_294 = arith.constant 45 : index
    %675 = memref.load %arg8[%c45_294] : memref<72xf32, #tpu.memory_space<smem>>
    %676 = vector.broadcast %675 : f32 to vector<16x16xf32>
    %677 = arith.mulf %676, %586 : vector<16x16xf32>
    %678 = arith.addf %548, %677 : vector<16x16xf32>
    %c46_295 = arith.constant 46 : index
    %679 = memref.load %arg8[%c46_295] : memref<72xf32, #tpu.memory_space<smem>>
    %680 = vector.broadcast %679 : f32 to vector<16x16xf32>
    %681 = arith.mulf %680, %588 : vector<16x16xf32>
    %682 = arith.addf %678, %681 : vector<16x16xf32>
    %c47_296 = arith.constant 47 : index
    %683 = memref.load %arg8[%c47_296] : memref<72xf32, #tpu.memory_space<smem>>
    %684 = vector.broadcast %683 : f32 to vector<16x16xf32>
    %685 = arith.mulf %684, %590 : vector<16x16xf32>
    %686 = arith.addf %682, %685 : vector<16x16xf32>
    %c48_297 = arith.constant 48 : index
    %687 = memref.load %arg8[%c48_297] : memref<72xf32, #tpu.memory_space<smem>>
    %688 = vector.broadcast %687 : f32 to vector<16x16xf32>
    %689 = arith.mulf %688, %592 : vector<16x16xf32>
    %690 = arith.addf %686, %689 : vector<16x16xf32>
    %c49_298 = arith.constant 49 : index
    %691 = memref.load %arg8[%c49_298] : memref<72xf32, #tpu.memory_space<smem>>
    %692 = vector.broadcast %691 : f32 to vector<16x16xf32>
    %693 = arith.mulf %692, %594 : vector<16x16xf32>
    %694 = arith.addf %690, %693 : vector<16x16xf32>
    %c50_299 = arith.constant 50 : index
    %695 = memref.load %arg8[%c50_299] : memref<72xf32, #tpu.memory_space<smem>>
    %696 = vector.broadcast %695 : f32 to vector<16x16xf32>
    %697 = arith.mulf %696, %596 : vector<16x16xf32>
    %698 = arith.addf %694, %697 : vector<16x16xf32>
    %c51_300 = arith.constant 51 : index
    %699 = memref.load %arg8[%c51_300] : memref<72xf32, #tpu.memory_space<smem>>
    %700 = vector.broadcast %699 : f32 to vector<16x16xf32>
    %701 = arith.mulf %700, %598 : vector<16x16xf32>
    %702 = arith.addf %698, %701 : vector<16x16xf32>
    %c52_301 = arith.constant 52 : index
    %703 = memref.load %arg8[%c52_301] : memref<72xf32, #tpu.memory_space<smem>>
    %704 = vector.broadcast %703 : f32 to vector<16x16xf32>
    %705 = arith.mulf %704, %600 : vector<16x16xf32>
    %706 = arith.addf %702, %705 : vector<16x16xf32>
    %c53_302 = arith.constant 53 : index
    %707 = memref.load %arg8[%c53_302] : memref<72xf32, #tpu.memory_space<smem>>
    %708 = vector.broadcast %707 : f32 to vector<16x16xf32>
    %709 = arith.mulf %708, %602 : vector<16x16xf32>
    %710 = arith.addf %706, %709 : vector<16x16xf32>
    %c63_303 = arith.constant 63 : index
    %711 = memref.load %arg8[%c63_303] : memref<72xf32, #tpu.memory_space<smem>>
    %712 = vector.broadcast %711 : f32 to vector<16x16xf32>
    %713 = arith.mulf %712, %586 : vector<16x16xf32>
    %714 = arith.addf %584, %713 : vector<16x16xf32>
    %c64_304 = arith.constant 64 : index
    %715 = memref.load %arg8[%c64_304] : memref<72xf32, #tpu.memory_space<smem>>
    %716 = vector.broadcast %715 : f32 to vector<16x16xf32>
    %717 = arith.mulf %716, %588 : vector<16x16xf32>
    %718 = arith.addf %714, %717 : vector<16x16xf32>
    %c65_305 = arith.constant 65 : index
    %719 = memref.load %arg8[%c65_305] : memref<72xf32, #tpu.memory_space<smem>>
    %720 = vector.broadcast %719 : f32 to vector<16x16xf32>
    %721 = arith.mulf %720, %590 : vector<16x16xf32>
    %722 = arith.addf %718, %721 : vector<16x16xf32>
    %c66_306 = arith.constant 66 : index
    %723 = memref.load %arg8[%c66_306] : memref<72xf32, #tpu.memory_space<smem>>
    %724 = vector.broadcast %723 : f32 to vector<16x16xf32>
    %725 = arith.mulf %724, %592 : vector<16x16xf32>
    %726 = arith.addf %722, %725 : vector<16x16xf32>
    %c67_307 = arith.constant 67 : index
    %727 = memref.load %arg8[%c67_307] : memref<72xf32, #tpu.memory_space<smem>>
    %728 = vector.broadcast %727 : f32 to vector<16x16xf32>
    %729 = arith.mulf %728, %594 : vector<16x16xf32>
    %730 = arith.addf %726, %729 : vector<16x16xf32>
    %c68_308 = arith.constant 68 : index
    %731 = memref.load %arg8[%c68_308] : memref<72xf32, #tpu.memory_space<smem>>
    %732 = vector.broadcast %731 : f32 to vector<16x16xf32>
    %733 = arith.mulf %732, %596 : vector<16x16xf32>
    %734 = arith.addf %730, %733 : vector<16x16xf32>
    %c69_309 = arith.constant 69 : index
    %735 = memref.load %arg8[%c69_309] : memref<72xf32, #tpu.memory_space<smem>>
    %736 = vector.broadcast %735 : f32 to vector<16x16xf32>
    %737 = arith.mulf %736, %598 : vector<16x16xf32>
    %738 = arith.addf %734, %737 : vector<16x16xf32>
    %c70_310 = arith.constant 70 : index
    %739 = memref.load %arg8[%c70_310] : memref<72xf32, #tpu.memory_space<smem>>
    %740 = vector.broadcast %739 : f32 to vector<16x16xf32>
    %741 = arith.mulf %740, %600 : vector<16x16xf32>
    %742 = arith.addf %738, %741 : vector<16x16xf32>
    %c71_311 = arith.constant 71 : index
    %743 = memref.load %arg8[%c71_311] : memref<72xf32, #tpu.memory_space<smem>>
    %744 = vector.broadcast %743 : f32 to vector<16x16xf32>
    %745 = arith.mulf %744, %602 : vector<16x16xf32>
    %746 = arith.addf %742, %745 : vector<16x16xf32>
    %c0_312 = arith.constant 0 : index
    %747 = memref.load %arg9[%c0_312] : memref<4xf32, #tpu.memory_space<smem>>
    %748 = vector.broadcast %747 : f32 to vector<16x16xf32>
    %749 = arith.mulf %638, %748 : vector<16x16xf32>
    %c0_313 = arith.constant 0 : index
    %750 = memref.load %arg10[%c0_313] : memref<4xf32, #tpu.memory_space<smem>>
    %751 = vector.broadcast %750 : f32 to vector<16x16xf32>
    %752 = arith.addf %749, %751 : vector<16x16xf32>
    %cst_314 = arith.constant 0.000000e+00 : f32
    %753 = vector.broadcast %cst_314 : f32 to vector<16x16xf32>
    %754 = arith.maximumf %752, %753 : vector<16x16xf32>
    %c0_315 = arith.constant 0 : index
    %c0_316 = arith.constant 0 : index
    %c0_317 = arith.constant 0 : index
    %c0_318 = arith.constant 0 : index
    %755 = vector.load %arg11[%c0_315, %c0_316, %c0_317, %c0_318] : memref<1x4x16x16xf32, #tpu.memory_space<vmem>>, vector<1x1x16x16xf32>
    %756 = vector.shape_cast %755 : vector<1x1x16x16xf32> to vector<16x16xf32>
    %757 = vector.shape_cast %754 : vector<16x16xf32> to vector<1x1x16x16xf32>
    tpu.vector_store %arg11[%c0_315, %c0_316, %c0_317, %c0_318], %757 {strides = array<i32>} : memref<1x4x16x16xf32, #tpu.memory_space<vmem>>, vector<1x1x16x16xf32>,
    %c1_319 = arith.constant 1 : index
    %758 = memref.load %arg9[%c1_319] : memref<4xf32, #tpu.memory_space<smem>>
    %759 = vector.broadcast %758 : f32 to vector<16x16xf32>
    %760 = arith.mulf %674, %759 : vector<16x16xf32>
    %c1_320 = arith.constant 1 : index
    %761 = memref.load %arg10[%c1_320] : memref<4xf32, #tpu.memory_space<smem>>
    %762 = vector.broadcast %761 : f32 to vector<16x16xf32>
    %763 = arith.addf %760, %762 : vector<16x16xf32>
    %cst_321 = arith.constant 0.000000e+00 : f32
    %764 = vector.broadcast %cst_321 : f32 to vector<16x16xf32>
    %765 = arith.maximumf %763, %764 : vector<16x16xf32>
    %c0_322 = arith.constant 0 : index
    %c1_323 = arith.constant 1 : index
    %c0_324 = arith.constant 0 : index
    %c0_325 = arith.constant 0 : index
    %766 = vector.load %arg11[%c0_322, %c1_323, %c0_324, %c0_325] : memref<1x4x16x16xf32, #tpu.memory_space<vmem>>, vector<1x1x16x16xf32>
    %767 = vector.shape_cast %766 : vector<1x1x16x16xf32> to vector<16x16xf32>
    %768 = vector.shape_cast %765 : vector<16x16xf32> to vector<1x1x16x16xf32>
    tpu.vector_store %arg11[%c0_322, %c1_323, %c0_324, %c0_325], %768 {strides = array<i32>} : memref<1x4x16x16xf32, #tpu.memory_space<vmem>>, vector<1x1x16x16xf32>,
    %c2_326 = arith.constant 2 : index
    %769 = memref.load %arg9[%c2_326] : memref<4xf32, #tpu.memory_space<smem>>
    %770 = vector.broadcast %769 : f32 to vector<16x16xf32>
    %771 = arith.mulf %710, %770 : vector<16x16xf32>
    %c2_327 = arith.constant 2 : index
    %772 = memref.load %arg10[%c2_327] : memref<4xf32, #tpu.memory_space<smem>>
    %773 = vector.broadcast %772 : f32 to vector<16x16xf32>
    %774 = arith.addf %771, %773 : vector<16x16xf32>
    %cst_328 = arith.constant 0.000000e+00 : f32
    %775 = vector.broadcast %cst_328 : f32 to vector<16x16xf32>
    %776 = arith.maximumf %774, %775 : vector<16x16xf32>
    %c0_329 = arith.constant 0 : index
    %c2_330 = arith.constant 2 : index
    %c0_331 = arith.constant 0 : index
    %c0_332 = arith.constant 0 : index
    %777 = vector.load %arg11[%c0_329, %c2_330, %c0_331, %c0_332] : memref<1x4x16x16xf32, #tpu.memory_space<vmem>>, vector<1x1x16x16xf32>
    %778 = vector.shape_cast %777 : vector<1x1x16x16xf32> to vector<16x16xf32>
    %779 = vector.shape_cast %776 : vector<16x16xf32> to vector<1x1x16x16xf32>
    tpu.vector_store %arg11[%c0_329, %c2_330, %c0_331, %c0_332], %779 {strides = array<i32>} : memref<1x4x16x16xf32, #tpu.memory_space<vmem>>, vector<1x1x16x16xf32>,
    %c3_333 = arith.constant 3 : index
    %780 = memref.load %arg9[%c3_333] : memref<4xf32, #tpu.memory_space<smem>>
    %781 = vector.broadcast %780 : f32 to vector<16x16xf32>
    %782 = arith.mulf %746, %781 : vector<16x16xf32>
    %c3_334 = arith.constant 3 : index
    %783 = memref.load %arg10[%c3_334] : memref<4xf32, #tpu.memory_space<smem>>
    %784 = vector.broadcast %783 : f32 to vector<16x16xf32>
    %785 = arith.addf %782, %784 : vector<16x16xf32>
    %cst_335 = arith.constant 0.000000e+00 : f32
    %786 = vector.broadcast %cst_335 : f32 to vector<16x16xf32>
    %787 = arith.maximumf %785, %786 : vector<16x16xf32>
    %c0_336 = arith.constant 0 : index
    %c3_337 = arith.constant 3 : index
    %c0_338 = arith.constant 0 : index
    %c0_339 = arith.constant 0 : index
    %788 = vector.load %arg11[%c0_336, %c3_337, %c0_338, %c0_339] : memref<1x4x16x16xf32, #tpu.memory_space<vmem>>, vector<1x1x16x16xf32>
    %789 = vector.shape_cast %788 : vector<1x1x16x16xf32> to vector<16x16xf32>
    %790 = vector.shape_cast %787 : vector<16x16xf32> to vector<1x1x16x16xf32>
    tpu.vector_store %arg11[%c0_336, %c3_337, %c0_338, %c0_339], %790 {strides = array<i32>} : memref<1x4x16x16xf32, #tpu.memory_space<vmem>>, vector<1x1x16x16xf32>,
    return
  }
  func.func @transform_0(%arg0: i32) -> (i32, i32, i32, i32) {
    %c0_i32 = arith.constant 0 : i32
    %c0_i32_0 = arith.constant 0 : i32
    %c0_i32_1 = arith.constant 0 : i32
    %c0_i32_2 = arith.constant 0 : i32
    return %arg0, %c0_i32, %c0_i32_0, %c0_i32_1 : i32, i32, i32, i32
  }
  func.func @transform_1(%arg0: i32) -> (i32, i32, i32, i32) {
    %c0_i32 = arith.constant 0 : i32
    %c0_i32_0 = arith.constant 0 : i32
    %c0_i32_1 = arith.constant 0 : i32
    %c0_i32_2 = arith.constant 0 : i32
    return %arg0, %c0_i32, %c0_i32_0, %c0_i32_1 : i32, i32, i32, i32
  }
  func.func @transform_2(%arg0: i32) -> (i32, i32) {
    %c0_i32 = arith.constant 0 : i32
    %c0_i32_0 = arith.constant 0 : i32
    %c0_i32_1 = arith.constant 0 : i32
    return %c0_i32, %c0_i32_0 : i32, i32
  }
  func.func @transform_3(%arg0: i32) -> (i32, i32) {
    %c0_i32 = arith.constant 0 : i32
    %c0_i32_0 = arith.constant 0 : i32
    %c0_i32_1 = arith.constant 0 : i32
    return %c0_i32, %c0_i32_0 : i32, i32
  }
  func.func @transform_4(%arg0: i32) -> i32 {
    %c0_i32 = arith.constant 0 : i32
    %c0_i32_0 = arith.constant 0 : i32
    return %c0_i32 : i32
  }
  func.func @transform_5(%arg0: i32) -> i32 {
    %c0_i32 = arith.constant 0 : i32
    %c0_i32_0 = arith.constant 0 : i32
    return %c0_i32 : i32
  }
  func.func @transform_6(%arg0: i32) -> i32 {
    %c0_i32 = arith.constant 0 : i32
    %c0_i32_0 = arith.constant 0 : i32
    return %c0_i32 : i32
  }
  func.func @transform_7(%arg0: i32) -> i32 {
    %c0_i32 = arith.constant 0 : i32
    %c0_i32_0 = arith.constant 0 : i32
    return %c0_i32 : i32
  }
  func.func @transform_8(%arg0: i32) -> i32 {
    %c0_i32 = arith.constant 0 : i32
    %c0_i32_0 = arith.constant 0 : i32
    return %c0_i32 : i32
  }
  func.func @transform_9(%arg0: i32) -> i32 {
    %c0_i32 = arith.constant 0 : i32
    %c0_i32_0 = arith.constant 0 : i32
    return %c0_i32 : i32
  }
  func.func @transform_10(%arg0: i32) -> (i32, i32, i32, i32) {
    %c0_i32 = arith.constant 0 : i32
    %c0_i32_0 = arith.constant 0 : i32
    %c0_i32_1 = arith.constant 0 : i32
    %c0_i32_2 = arith.constant 0 : i32
    return %arg0, %c0_i32, %c0_i32_0, %c0_i32_1 : i32, i32, i32, i32
  }
}

</mosaic_0001>

<llo_original>
// kernel: tpu_custom_call.1
$region0: #{tpu_custom_call.1}
  #allocation0 [shape = 'u32[]', space=smem, size = 0x4, offset = 0x4, fixed_abs, tag = 'smem constant byte address 0x4 - core index']
  #allocation1 [shape = 'u32[144,128]{1,0:T(1,128)}', space=vmem, size = 0x12000, scoped, tag = 'internal scratch']
  #allocation2 [shape = 'f32[4,18,18]{2,1,0:T(8,128)}', space=vmem, size = 0xc000, scoped, tag = 'scratch operand']
  #allocation3 [shape = 'f32[2,18,18]{2,1,0:T(8,128)}', space=vmem, size = 0x6000, scoped, tag = 'scratch operand']
  %s0 = inlined_call_operand.hbm [shape: f32[2,2,8,8], index: 0, kind: input, shape index: {}]
  %s1 = inlined_call_operand.hbm [shape: f32[2,2,16,16], index: 1, kind: input, shape index: {}]
  %s2 = inlined_call_operand.vmem [shape: f32[16,8], index: 2, kind: input, shape index: {}]
  %s3 = inlined_call_operand.vmem [shape: f32[8,16], index: 3, kind: input, shape index: {}]
  %s4 = inlined_call_operand.vmem [shape: f32[72], index: 4, kind: input, shape index: {}]
  %s5 = inlined_call_operand.vmem [shape: f32[2], index: 5, kind: input, shape index: {}]
  %s6 = inlined_call_operand.vmem [shape: f32[2], index: 6, kind: input, shape index: {}]
  %s7 = inlined_call_operand.vmem [shape: f32[72], index: 7, kind: input, shape index: {}]
  %s8 = inlined_call_operand.vmem [shape: f32[4], index: 8, kind: input, shape index: {}]
  %s9 = inlined_call_operand.vmem [shape: f32[4], index: 9, kind: input, shape index: {}]
  %s10 = inlined_call_operand.hbm [shape: f32[2,4,16,16], index: 10, kind: output, shape index: {}]
  %s11 = sld [smem:[#allocation0]]
  $region105: #{tpu_custom_call.1} parent=0
    _
  %s13 = ssub.s32 1, %s11
  %s14 = scalar_select 0, %s13, %s11
  $region1: #{tpu_custom_call.1} parent=0
    #allocation4 [shape = 'u8[16384]{0}', space=vmem, size = 0x4000, scoped, tag = 'input window, operand 0']
    #allocation5 [shape = 's32[2]{0}', space=sflag, size = 0x8, scoped, tag = 'scoped memory for tpu_custom_call.1']
    #allocation6 [shape = 's32[2]{0}', space=sflag, size = 0x8, scoped, tag = 'scoped memory for tpu_custom_call.1']
    #allocation7 [shape = 's32[2]{0}', space=sflag, size = 0x8, scoped, tag = 'scoped memory for tpu_custom_call.1']
    #allocation8 [shape = 'u8[32768]{0}', space=vmem, size = 0x8000, scoped, tag = 'input window, operand 1']
    #allocation9 [shape = 's32[2]{0}', space=sflag, size = 0x8, scoped, tag = 'scoped memory for tpu_custom_call.1']
    #allocation10 [shape = 'u8[512]{0}', space=smem, size = 0x200, scoped, tag = 'input window, operand 4, single buffered']
    #allocation11 [shape = 'u8[512]{0}', space=smem, size = 0x200, scoped, tag = 'input window, operand 5, single buffered']
    #allocation12 [shape = 's32[1]{0}', space=sflag, size = 0x4, scoped, tag = 'scoped memory for tpu_custom_call.1']
    #allocation13 [shape = 'u8[512]{0}', space=smem, size = 0x200, scoped, tag = 'input window, operand 6, single buffered']
    #allocation14 [shape = 'u8[512]{0}', space=smem, size = 0x200, scoped, tag = 'input window, operand 7, single buffered']
    #allocation15 [shape = 's32[1]{0}', space=sflag, size = 0x4, scoped, tag = 'scoped memory for tpu_custom_call.1']
    #allocation16 [shape = 'u8[512]{0}', space=smem, size = 0x200, scoped, tag = 'input window, operand 8, single buffered']
    #allocation17 [shape = 'u8[512]{0}', space=smem, size = 0x200, scoped, tag = 'input window, operand 9, single buffered']
    #allocation18 [shape = 's32[1]{0}', space=sflag, size = 0x4, scoped, tag = 'scoped memory for tpu_custom_call.1']
    #allocation19 [shape = 'u8[65536]{0}', space=vmem, size = 0x10000, scoped, tag = 'output window, operand 0']
    %15 = vsyncpa [#allocation5], 0
    %s16 = scalar_lea.sflag [#allocation5], 1
    %17 = vsyncpa %s16, 0
    %18 = vsyncpa [#allocation9], 0
    %s19 = scalar_lea.sflag [#allocation9], 1
    %20 = vsyncpa %s19, 0
    %21 = vsyncpa [#allocation7], 0
    %22 = vsyncpa [#allocation12], 0
    %23 = vsyncpa [#allocation15], 0
    %24 = vsyncpa [#allocation18], 0
    %25 = vsyncpa [#allocation6], 0
    %s26 = scalar_lea.sflag [#allocation6], 1
    %27 = vsyncpa %s26, 0
    loop: start=0, step=1, limit=4
    $region2: #{tpu_custom_call.1} parent=1 // loop_pre_header
      _
    $region3: #{tpu_custom_call.1} parent=1 // loop_header
      %s29 = sphi 0, %s33
      %p30 = scmp.ge.s32.totalorder %s29, 4
      %s39 = sphi 0, %s41
      %s42 = sphi 0, %s39
      %s43 = sphi 0, %s42
      %s59 = sphi 0, %s43
      %s65 = sphi 0, %s67
      %s68 = sphi 0, %s65
      %s69 = sphi 0, %s68
      %s85 = sphi 0, %s69
      %s89 = sphi 0, %s89
      %s91 = sphi 0, %s89
      %s92 = sphi 0, %s91
      %s106 = sphi 0, %s92
      %s110 = sphi 0, %s110
      %s112 = sphi 0, %s110
      %s113 = sphi 0, %s112
      %s127 = sphi 0, %s113
      %s131 = sphi 0, %s131
      %s133 = sphi 0, %s131
      %s134 = sphi 0, %s133
      %s148 = sphi 0, %s134
      %s152 = sphi 0, %s152
      %s154 = sphi 0, %s152
      %s155 = sphi 0, %s154
      %s169 = sphi 0, %s155
      %s173 = sphi 0, %s173
      %s175 = sphi 0, %s173
      %s176 = sphi 0, %s175
      %s190 = sphi 0, %s176
      %s194 = sphi 0, %s194
      %s196 = sphi 0, %s194
      %s197 = sphi 0, %s196
      %s211 = sphi 0, %s197
      %s215 = sphi 0, %s215
      %s217 = sphi 0, %s215
      %s218 = sphi 0, %s217
      %s232 = sphi 0, %s218
      %s236 = sphi 0, %s236
      %s238 = sphi 0, %s236
      %s239 = sphi 0, %s238
      %s253 = sphi 0, %s239
      %s259 = sphi 0, %s261
      %s262 = sphi 0, %s259
      %s263 = sphi 0, %s262
      %s279 = sphi 0, %s263
    $region4: #{tpu_custom_call.1} parent=1 // loop_header_branch
      %32 = sbr.rel (%p30) target = $region8
    $region5: #{tpu_custom_call.1} parent=1 // loop_body
      %s34 = ssub.s32 %s29, 1
      %s35 = ssub.s32 %s29, 2
      %s36 = sadd.s32 %s29, 1
      %s37 = ssub.s32 %s29, %s36
      %p38 = scmp.eq.s32.totalorder %s37, 0
      %s40 = sadd.s32 %s39, 1
      %s41 = scalar_select %p38, %s39, %s40
      %p44 = pneg %p38
      %p45 = scmp.eq.s32.totalorder %s29, 1
      %p46 = por %p44, %p45
      %p47 = scmp.ne.s32.totalorder %s39, %s42
      %p48 = scmp.eq.s32.totalorder %s29, 0
      %p49 = por %p47, %p48
      %p50 = scmp.ne.s32.totalorder %s39, %s42
      %p51 = scmp.eq.s32.totalorder %s34, 1
      %p52 = por %p50, %p51
      %p53 = scmp.ne.s32.totalorder %s42, %s43
      %p54 = scmp.eq.s32.totalorder %s34, 0
      %p55 = por %p53, %p54
      %p56 = scmp.ne.s32.totalorder %s42, %s43
      %p57 = scmp.eq.s32.totalorder %s35, 1
      %p58 = por %p56, %p57
      %p60 = scmp.ne.s32.totalorder %s43, %s59
      %p61 = scmp.eq.s32.totalorder %s35, 0
      %p62 = por %p60, %p61
      %s63 = ssub.s32 %s29, %s36
      %p64 = scmp.eq.s32.totalorder %s63, 0
      %s66 = sadd.s32 %s65, 1
      %s67 = scalar_select %p64, %s65, %s66
      %p70 = pneg %p64
      %p71 = scmp.eq.s32.totalorder %s29, 1
      %p72 = por %p70, %p71
      %p73 = scmp.ne.s32.totalorder %s65, %s68
      %p74 = scmp.eq.s32.totalorder %s29, 0
      %p75 = por %p73, %p74
      %p76 = scmp.ne.s32.totalorder %s65, %s68
      %p77 = scmp.eq.s32.totalorder %s34, 1
      %p78 = por %p76, %p77
      %p79 = scmp.ne.s32.totalorder %s68, %s69
      %p80 = scmp.eq.s32.totalorder %s34, 0
      %p81 = por %p79, %p80
      %p82 = scmp.ne.s32.totalorder %s68, %s69
      %p83 = scmp.eq.s32.totalorder %s35, 1
      %p84 = por %p82, %p83
      %p86 = scmp.ne.s32.totalorder %s69, %s85
      %p87 = scmp.eq.s32.totalorder %s35, 0
      %p88 = por %p86, %p87
      %s90 = sadd.s32 %s89, 1
      %p93 = scmp.eq.s32.totalorder %s29, 1
      %p94 = scmp.ne.s32.totalorder %s89, %s91
      %p95 = scmp.eq.s32.totalorder %s29, 0
      %p96 = por %p94, %p95
      %p97 = scmp.ne.s32.totalorder %s89, %s91
      %p98 = scmp.eq.s32.totalorder %s34, 1
      %p99 = por %p97, %p98
      %p100 = scmp.ne.s32.totalorder %s91, %s92
      %p101 = scmp.eq.s32.totalorder %s34, 0
      %p102 = por %p100, %p101
      %p103 = scmp.ne.s32.totalorder %s91, %s92
      %p104 = scmp.eq.s32.totalorder %s35, 1
      %p105 = por %p103, %p104
      %p107 = scmp.ne.s32.totalorder %s92, %s106
      %p108 = scmp.eq.s32.totalorder %s35, 0
      %p109 = por %p107, %p108
      %s111 = sadd.s32 %s110, 1
      %p114 = scmp.eq.s32.totalorder %s29, 1
      %p115 = scmp.ne.s32.totalorder %s110, %s112
      %p116 = scmp.eq.s32.totalorder %s29, 0
      %p117 = por %p115, %p116
      %p118 = scmp.ne.s32.totalorder %s110, %s112
      %p119 = scmp.eq.s32.totalorder %s34, 1
      %p120 = por %p118, %p119
      %p121 = scmp.ne.s32.totalorder %s112, %s113
      %p122 = scmp.eq.s32.totalorder %s34, 0
      %p123 = por %p121, %p122
      %p124 = scmp.ne.s32.totalorder %s112, %s113
      %p125 = scmp.eq.s32.totalorder %s35, 1
      %p126 = por %p124, %p125
      %p128 = scmp.ne.s32.totalorder %s113, %s127
      %p129 = scmp.eq.s32.totalorder %s35, 0
      %p130 = por %p128, %p129
      %s132 = sadd.s32 %s131, 1
      %p135 = scmp.eq.s32.totalorder %s29, 1
      %p136 = scmp.ne.s32.totalorder %s131, %s133
      %p137 = scmp.eq.s32.totalorder %s29, 0
      %p138 = por %p136, %p137
      %p139 = scmp.ne.s32.totalorder %s131, %s133
      %p140 = scmp.eq.s32.totalorder %s34, 1
      %p141 = por %p139, %p140
      %p142 = scmp.ne.s32.totalorder %s133, %s134
      %p143 = scmp.eq.s32.totalorder %s34, 0
      %p144 = por %p142, %p143
      %p145 = scmp.ne.s32.totalorder %s133, %s134
      %p146 = scmp.eq.s32.totalorder %s35, 1
      %p147 = por %p145, %p146
      %p149 = scmp.ne.s32.totalorder %s134, %s148
      %p150 = scmp.eq.s32.totalorder %s35, 0
      %p151 = por %p149, %p150
      %s153 = sadd.s32 %s152, 1
      %p156 = scmp.eq.s32.totalorder %s29, 1
      %p157 = scmp.ne.s32.totalorder %s152, %s154
      %p158 = scmp.eq.s32.totalorder %s29, 0
      %p159 = por %p157, %p158
      %p160 = scmp.ne.s32.totalorder %s152, %s154
      %p161 = scmp.eq.s32.totalorder %s34, 1
      %p162 = por %p160, %p161
      %p163 = scmp.ne.s32.totalorder %s154, %s155
      %p164 = scmp.eq.s32.totalorder %s34, 0
      %p165 = por %p163, %p164
      %p166 = scmp.ne.s32.totalorder %s154, %s155
      %p167 = scmp.eq.s32.totalorder %s35, 1
      %p168 = por %p166, %p167
      %p170 = scmp.ne.s32.totalorder %s155, %s169
      %p171 = scmp.eq.s32.totalorder %s35, 0
      %p172 = por %p170, %p171
      %s174 = sadd.s32 %s173, 1
      %p177 = scmp.eq.s32.totalorder %s29, 1
      %p178 = scmp.ne.s32.totalorder %s173, %s175
      %p179 = scmp.eq.s32.totalorder %s29, 0
      %p180 = por %p178, %p179
      %p181 = scmp.ne.s32.totalorder %s173, %s175
      %p182 = scmp.eq.s32.totalorder %s34, 1
      %p183 = por %p181, %p182
      %p184 = scmp.ne.s32.totalorder %s175, %s176
      %p185 = scmp.eq.s32.totalorder %s34, 0
      %p186 = por %p184, %p185
      %p187 = scmp.ne.s32.totalorder %s175, %s176
      %p188 = scmp.eq.s32.totalorder %s35, 1
      %p189 = por %p187, %p188
      %p191 = scmp.ne.s32.totalorder %s176, %s190
      %p192 = scmp.eq.s32.totalorder %s35, 0
      %p193 = por %p191, %p192
      %s195 = sadd.s32 %s194, 1
      %p198 = scmp.eq.s32.totalorder %s29, 1
      %p199 = scmp.ne.s32.totalorder %s194, %s196
      %p200 = scmp.eq.s32.totalorder %s29, 0
      %p201 = por %p199, %p200
      %p202 = scmp.ne.s32.totalorder %s194, %s196
      %p203 = scmp.eq.s32.totalorder %s34, 1
      %p204 = por %p202, %p203
      %p205 = scmp.ne.s32.totalorder %s196, %s197
      %p206 = scmp.eq.s32.totalorder %s34, 0
      %p207 = por %p205, %p206
      %p208 = scmp.ne.s32.totalorder %s196, %s197
      %p209 = scmp.eq.s32.totalorder %s35, 1
      %p210 = por %p208, %p209
      %p212 = scmp.ne.s32.totalorder %s197, %s211
      %p213 = scmp.eq.s32.totalorder %s35, 0
      %p214 = por %p212, %p213
      %s216 = sadd.s32 %s215, 1
      %p219 = scmp.eq.s32.totalorder %s29, 1
      %p220 = scmp.ne.s32.totalorder %s215, %s217
      %p221 = scmp.eq.s32.totalorder %s29, 0
      %p222 = por %p220, %p221
      %p223 = scmp.ne.s32.totalorder %s215, %s217
      %p224 = scmp.eq.s32.totalorder %s34, 1
      %p225 = por %p223, %p224
      %p226 = scmp.ne.s32.totalorder %s217, %s218
      %p227 = scmp.eq.s32.totalorder %s34, 0
      %p228 = por %p226, %p227
      %p229 = scmp.ne.s32.totalorder %s217, %s218
      %p230 = scmp.eq.s32.totalorder %s35, 1
      %p231 = por %p229, %p230
      %p233 = scmp.ne.s32.totalorder %s218, %s232
      %p234 = scmp.eq.s32.totalorder %s35, 0
      %p235 = por %p233, %p234
      %s237 = sadd.s32 %s236, 1
      %p240 = scmp.eq.s32.totalorder %s29, 1
      %p241 = scmp.ne.s32.totalorder %s236, %s238
      %p242 = scmp.eq.s32.totalorder %s29, 0
      %p243 = por %p241, %p242
      %p244 = scmp.ne.s32.totalorder %s236, %s238
      %p245 = scmp.eq.s32.totalorder %s34, 1
      %p246 = por %p244, %p245
      %p247 = scmp.ne.s32.totalorder %s238, %s239
      %p248 = scmp.eq.s32.totalorder %s34, 0
      %p249 = por %p247, %p248
      %p250 = scmp.ne.s32.totalorder %s238, %s239
      %p251 = scmp.eq.s32.totalorder %s35, 1
      %p252 = por %p250, %p251
      %p254 = scmp.ne.s32.totalorder %s239, %s253
      %p255 = scmp.eq.s32.totalorder %s35, 0
      %p256 = por %p254, %p255
      %s257 = ssub.s32 %s29, %s36
      %p258 = scmp.eq.s32.totalorder %s257, 0
      %s260 = sadd.s32 %s259, 1
      %s261 = scalar_select %p258, %s259, %s260
      %p264 = pneg %p258
      %p265 = scmp.eq.s32.totalorder %s29, 1
      %p266 = por %p264, %p265
      %p267 = scmp.ne.s32.totalorder %s259, %s262
      %p268 = scmp.eq.s32.totalorder %s29, 0
      %p269 = por %p267, %p268
      %p270 = scmp.ne.s32.totalorder %s259, %s262
      %p271 = scmp.eq.s32.totalorder %s34, 1
      %p272 = por %p270, %p271
      %p273 = scmp.ne.s32.totalorder %s262, %s263
      %p274 = scmp.eq.s32.totalorder %s34, 0
      %p275 = por %p273, %p274
      %p276 = scmp.ne.s32.totalorder %s262, %s263
      %p277 = scmp.eq.s32.totalorder %s35, 1
      %p278 = por %p276, %p277
      %p280 = scmp.ne.s32.totalorder %s263, %s279
      %p281 = scmp.eq.s32.totalorder %s35, 0
      %p282 = por %p280, %p281
      %p283 = scmp.le.s32.totalorder 1, %s29
      %p284 = scmp.lt.s32.totalorder %s29, 3
      %p285 = pnand %p283, %p284
      %p286 = pneg %p285
      // Predicated region
      $region9: #{tpu_custom_call.1} parent=5 // pred_check
        _
      $region10: #{tpu_custom_call.1} parent=5 // pred_check_branch
        %288 = sbr.rel (%p285) target = $region12
      $region11: #{tpu_custom_call.1} parent=5 // pred_region
        %s289 = ssub.s32 %s29, 1
        // Predicated region
        $region13: #{tpu_custom_call.1} parent=11 // pred_check
          %p290 = pneg %p102
        $region14: #{tpu_custom_call.1} parent=11 // pred_check_branch
          %292 = sbr.rel (%p290) target = $region16
        $region15: #{tpu_custom_call.1} parent=11 // pred_region
          _
        $region16: #{tpu_custom_call.1} parent=11 // pred_fallthru
          _
        // Predicated region
        $region17: #{tpu_custom_call.1} parent=11 // pred_check
          %p293 = pneg %p123
        $region18: #{tpu_custom_call.1} parent=11 // pred_check_branch
          %295 = sbr.rel (%p293) target = $region20
        $region19: #{tpu_custom_call.1} parent=11 // pred_region
          _
        $region20: #{tpu_custom_call.1} parent=11 // pred_fallthru
          _
        // Predicated region
        $region21: #{tpu_custom_call.1} parent=11 // pred_check
          %p296 = pneg %p144
        $region22: #{tpu_custom_call.1} parent=11 // pred_check_branch
          %298 = sbr.rel (%p296) target = $region24
        $region23: #{tpu_custom_call.1} parent=11 // pred_region
          %s300 = ssub.s32 16, 16
          %301 = vsyncadd [#allocation7], %s300
          %s303 = sshll.u32 %s4, 4
          %s304 = int_to_ptr.vmem [resolvable:$true] %s303
          %306 = dma.vmem_to_smem %s304, 16, [#allocation10], [#allocation7]
        $region24: #{tpu_custom_call.1} parent=11 // pred_fallthru
          _
        // Predicated region
        $region25: #{tpu_custom_call.1} parent=11 // pred_check
          %p307 = pneg %p165
        $region26: #{tpu_custom_call.1} parent=11 // pred_check_branch
          %309 = sbr.rel (%p307) target = $region28
        $region27: #{tpu_custom_call.1} parent=11 // pred_region
          %s311 = ssub.s32 16, 16
          %312 = vsyncadd [#allocation12], %s311
          %s314 = sshll.u32 %s5, 4
          %s315 = int_to_ptr.vmem [resolvable:$true] %s314
          %317 = dma.vmem_to_smem %s315, 16, [#allocation11], [#allocation12]
        $region28: #{tpu_custom_call.1} parent=11 // pred_fallthru
          _
        // Predicated region
        $region29: #{tpu_custom_call.1} parent=11 // pred_check
          %p318 = pneg %p186
        $region30: #{tpu_custom_call.1} parent=11 // pred_check_branch
          %320 = sbr.rel (%p318) target = $region32
        $region31: #{tpu_custom_call.1} parent=11 // pred_region
          %s322 = ssub.s32 16, 16
          %323 = vsyncadd [#allocation12], %s322
          %s325 = sshll.u32 %s6, 4
          %s326 = int_to_ptr.vmem [resolvable:$true] %s325
          %328 = dma.vmem_to_smem %s326, 16, [#allocation13], [#allocation12]
        $region32: #{tpu_custom_call.1} parent=11 // pred_fallthru
          _
        // Predicated region
        $region33: #{tpu_custom_call.1} parent=11 // pred_check
          %p329 = pneg %p207
        $region34: #{tpu_custom_call.1} parent=11 // pred_check_branch
          %331 = sbr.rel (%p329) target = $region36
        $region35: #{tpu_custom_call.1} parent=11 // pred_region
          %s333 = ssub.s32 16, 16
          %334 = vsyncadd [#allocation15], %s333
          %s336 = sshll.u32 %s7, 4
          %s337 = int_to_ptr.vmem [resolvable:$true] %s336
          %339 = dma.vmem_to_smem %s337, 16, [#allocation14], [#allocation15]
        $region36: #{tpu_custom_call.1} parent=11 // pred_fallthru
          _
        // Predicated region
        $region37: #{tpu_custom_call.1} parent=11 // pred_check
          %p340 = pneg %p228
        $region38: #{tpu_custom_call.1} parent=11 // pred_check_branch
          %342 = sbr.rel (%p340) target = $region40
        $region39: #{tpu_custom_call.1} parent=11 // pred_region
          %s344 = ssub.s32 16, 16
          %345 = vsyncadd [#allocation15], %s344
          %s347 = sshll.u32 %s8, 4
          %s348 = int_to_ptr.vmem [resolvable:$true] %s347
          %350 = dma.vmem_to_smem %s348, 16, [#allocation16], [#allocation15]
        $region40: #{tpu_custom_call.1} parent=11 // pred_fallthru
          _
        // Predicated region
        $region41: #{tpu_custom_call.1} parent=11 // pred_check
          %p351 = pneg %p249
        $region42: #{tpu_custom_call.1} parent=11 // pred_check_branch
          %353 = sbr.rel (%p351) target = $region44
        $region43: #{tpu_custom_call.1} parent=11 // pred_region
          %s355 = ssub.s32 16, 16
          %356 = vsyncadd [#allocation18], %s355
          %s358 = sshll.u32 %s9, 4
          %s359 = int_to_ptr.vmem [resolvable:$true] %s358
          %361 = dma.vmem_to_smem %s359, 16, [#allocation17], [#allocation18]
        $region44: #{tpu_custom_call.1} parent=11 // pred_fallthru
          _
      $region12: #{tpu_custom_call.1} parent=5 // pred_fallthru
        _
      %p362 = scmp.lt.s32.totalorder %s29, 2
      // Predicated region
      $region45: #{tpu_custom_call.1} parent=5 // pred_check
        %p363 = pneg %p362
      $region46: #{tpu_custom_call.1} parent=5 // pred_check_branch
        %365 = sbr.rel (%p363) target = $region48
      $region47: #{tpu_custom_call.1} parent=5 // pred_region
        // Predicated region
        $region49: #{tpu_custom_call.1} parent=47 // pred_check
          %p366 = pneg %p49
        $region50: #{tpu_custom_call.1} parent=47 // pred_check_branch
          %368 = sbr.rel (%p366) target = $region52
        $region51: #{tpu_custom_call.1} parent=47 // pred_region
          %s369 = sand.u32 %s39, 1
          %s370 = scalar_lea.sflag [#allocation5], %s369
          %s371 = sand.u32 %s39, 1
          %s372 = smul.addr %s371, 16
          %s373 = scalar_lea.vmem [#allocation4], %s372
          %s375 = ssub.s32 256, 256
          %376 = vsyncadd %s370, %s375
          %s377 = smul.addr %s29, 2
          %s378 = smul.addr %s377, 128
          %s379 = scalar_lea.hbm %s0, %s378
          %s380 = sshll.u32 %s373, 4
          %s381 = int_to_ptr.vmem [resolvable:$true] %s380
          %386 = dma.hbm_to_vmem [thread:$0]  %s379, 256, %s381, %s370, 128, 128, 8
        $region52: #{tpu_custom_call.1} parent=47 // pred_fallthru
          _
        // Predicated region
        $region53: #{tpu_custom_call.1} parent=47 // pred_check
          %p387 = pneg %p75
        $region54: #{tpu_custom_call.1} parent=47 // pred_check_branch
          %389 = sbr.rel (%p387) target = $region56
        $region55: #{tpu_custom_call.1} parent=47 // pred_region
          %s390 = sand.u32 %s65, 1
          %s391 = scalar_lea.sflag [#allocation9], %s390
          %s392 = sand.u32 %s65, 1
          %s393 = smul.addr %s392, 32
          %s394 = scalar_lea.vmem [#allocation8], %s393
          %s396 = ssub.s32 512, 512
          %397 = vsyncadd %s391, %s396
          %s398 = smul.addr %s29, 4
          %s399 = smul.addr %s398, 128
          %s400 = scalar_lea.hbm %s1, %s399
          %s401 = sshll.u32 %s394, 4
          %s402 = int_to_ptr.vmem [resolvable:$true] %s401
          %407 = dma.hbm_to_vmem [thread:$0]  %s400, 512, %s402, %s391, 128, 128, 8
        $region56: #{tpu_custom_call.1} parent=47 // pred_fallthru
          _
      $region48: #{tpu_custom_call.1} parent=5 // pred_fallthru
        _
      %p408 = scmp.le.s32.totalorder 1, %s29
      %p409 = scmp.lt.s32.totalorder %s29, 3
      %p410 = pnand %p408, %p409
      %p411 = pneg %p410
      // Predicated region
      $region57: #{tpu_custom_call.1} parent=5 // pred_check
        _
      $region58: #{tpu_custom_call.1} parent=5 // pred_check_branch
        %413 = sbr.rel (%p410) target = $region60
      $region59: #{tpu_custom_call.1} parent=5 // pred_region
        %s414 = ssub.s32 %s29, 1
        %s415 = sand.u32 %s42, 1
        %s416 = scalar_lea.sflag [#allocation5], %s415
        %s417 = sand.u32 %s42, 1
        %s418 = smul.addr %s417, 16
        %s419 = scalar_lea.vmem [#allocation4], %s418
        // Predicated region
        $region61: #{tpu_custom_call.1} parent=59 // pred_check
          %p420 = pneg %p55
        $region62: #{tpu_custom_call.1} parent=59 // pred_check_branch
          %422 = sbr.rel (%p420) target = $region64
        $region63: #{tpu_custom_call.1} parent=59 // pred_region
          %423 = dma.done %s416, 256
        $region64: #{tpu_custom_call.1} parent=59 // pred_fallthru
          _
        %s424 = sand.u32 %s68, 1
        %s425 = scalar_lea.sflag [#allocation9], %s424
        %s426 = sand.u32 %s68, 1
        %s427 = smul.addr %s426, 32
        %s428 = scalar_lea.vmem [#allocation8], %s427
        // Predicated region
        $region65: #{tpu_custom_call.1} parent=59 // pred_check
          %p429 = pneg %p81
        $region66: #{tpu_custom_call.1} parent=59 // pred_check_branch
          %431 = sbr.rel (%p429) target = $region68
        $region67: #{tpu_custom_call.1} parent=59 // pred_region
          %432 = dma.done %s425, 512
        $region68: #{tpu_custom_call.1} parent=59 // pred_fallthru
          _
        // Predicated region
        $region69: #{tpu_custom_call.1} parent=59 // pred_check
          %p433 = pneg %p144
        $region70: #{tpu_custom_call.1} parent=59 // pred_check_branch
          %435 = sbr.rel (%p433) target = $region72
        $region71: #{tpu_custom_call.1} parent=59 // pred_region
          %436 = dma.done [#allocation7], 16
        $region72: #{tpu_custom_call.1} parent=59 // pred_fallthru
          _
        // Predicated region
        $region73: #{tpu_custom_call.1} parent=59 // pred_check
          %p437 = pneg %p165
        $region74: #{tpu_custom_call.1} parent=59 // pred_check_branch
          %439 = sbr.rel (%p437) target = $region76
        $region75: #{tpu_custom_call.1} parent=59 // pred_region
          %440 = dma.done [#allocation12], 16
        $region76: #{tpu_custom_call.1} parent=59 // pred_fallthru
          _
        // Predicated region
        $region77: #{tpu_custom_call.1} parent=59 // pred_check
          %p441 = pneg %p186
        $region78: #{tpu_custom_call.1} parent=59 // pred_check_branch
          %443 = sbr.rel (%p441) target = $region80
        $region79: #{tpu_custom_call.1} parent=59 // pred_region
          %444 = dma.done [#allocation12], 16
        $region80: #{tpu_custom_call.1} parent=59 // pred_fallthru
          _
        // Predicated region
        $region81: #{tpu_custom_call.1} parent=59 // pred_check
          %p445 = pneg %p207
        $region82: #{tpu_custom_call.1} parent=59 // pred_check_branch
          %447 = sbr.rel (%p445) target = $region84
        $region83: #{tpu_custom_call.1} parent=59 // pred_region
          %448 = dma.done [#allocation15], 16
        $region84: #{tpu_custom_call.1} parent=59 // pred_fallthru
          _
        // Predicated region
        $region85: #{tpu_custom_call.1} parent=59 // pred_check
          %p449 = pneg %p228
        $region86: #{tpu_custom_call.1} parent=59 // pred_check_branch
          %451 = sbr.rel (%p449) target = $region88
        $region87: #{tpu_custom_call.1} parent=59 // pred_region
          %452 = dma.done [#allocation15], 16
        $region88: #{tpu_custom_call.1} parent=59 // pred_fallthru
          _
        // Predicated region
        $region89: #{tpu_custom_call.1} parent=59 // pred_check
          %p453 = pneg %p249
        $region90: #{tpu_custom_call.1} parent=59 // pred_check_branch
          %455 = sbr.rel (%p453) target = $region92
        $region91: #{tpu_custom_call.1} parent=59 // pred_region
          %456 = dma.done [#allocation18], 16
        $region92: #{tpu_custom_call.1} parent=59 // pred_fallthru
          _
        %457 = sfence
        %s458 = sand.u32 %s42, 1
        %s459 = scalar_lea.sflag [#allocation5], %s458
        %s460 = sand.u32 %s42, 1
        %s461 = smul.addr %s460, 16
        %s462 = scalar_lea.vmem [#allocation4], %s461
        %p463 = pneg %p55
        %p464 = pneg %p52
        %s465 = sand.u32 %s68, 1
        %s466 = scalar_lea.sflag [#allocation9], %s465
        %s467 = sand.u32 %s68, 1
        %s468 = smul.addr %s467, 32
        %s469 = scalar_lea.vmem [#allocation8], %s468
        %p470 = pneg %p81
        %p471 = pneg %p78
        %p472 = pneg %p102
        %p473 = pneg %p99
        %p474 = pneg %p123
        %p475 = pneg %p120
        %p476 = pneg %p144
        %p477 = pneg %p141
        %p478 = pneg %p165
        %p479 = pneg %p162
        %p480 = pneg %p186
        %p481 = pneg %p183
        %p482 = pneg %p207
        %p483 = pneg %p204
        %p484 = pneg %p228
        %p485 = pneg %p225
        %p486 = pneg %p249
        %p487 = pneg %p246
        %p488 = pneg %p275
        %p489 = pneg %p272
        %s490 = sand.u32 %s262, 1
        %s491 = scalar_lea.sflag [#allocation6], %s490
        %s492 = sand.u32 %s262, 1
        %s493 = smul.addr %s492, 64
        %s494 = scalar_lea.vmem [#allocation19], %s493
        %vm495 = vcmask 139264
        %496 = vst.msk [vmem:[#allocation2] sm:$0x1] %vm495, 0.0
        %497 = vst.msk [vmem:[#allocation2 + $0x18] sm:$0x1] %vm495, 0.0
        %498 = vst.msk [vmem:[#allocation2 + $0x30] sm:$0x1] %vm495, 0.0
        %499 = vst.msk [vmem:[#allocation2 + $0x48] sm:$0x1] %vm495, 0.0
        %500 = vst.msk [vmem:[#allocation2 + $0x11] sm:$0x1] %vm495, 0.0
        %501 = vst.msk [vmem:[#allocation2 + $0x29] sm:$0x1] %vm495, 0.0
        %502 = vst.msk [vmem:[#allocation2 + $0x41] sm:$0x1] %vm495, 0.0
        %503 = vst.msk [vmem:[#allocation2 + $0x59] sm:$0x1] %vm495, 0.0
        %vm504 = vcmask 7168
        %505 = vst.msk [vmem:[#allocation2] sm:$0xff] %vm504, 0.0
        %506 = vst.msk [vmem:[#allocation2 + $0x8] sm:$0xff] %vm504, 0.0
        %vm507 = vcmask 1024
        %508 = vst.msk [vmem:[#allocation2 + $0x10] sm:$0x3] %vm507, 0.0
        %509 = vst.msk [vmem:[#allocation2 + $0x18] sm:$0xff] %vm504, 0.0
        %510 = vst.msk [vmem:[#allocation2 + $0x20] sm:$0xff] %vm504, 0.0
        %511 = vst.msk [vmem:[#allocation2 + $0x28] sm:$0x3] %vm507, 0.0
        %512 = vst.msk [vmem:[#allocation2 + $0x30] sm:$0xff] %vm504, 0.0
        %513 = vst.msk [vmem:[#allocation2 + $0x38] sm:$0xff] %vm504, 0.0
        %514 = vst.msk [vmem:[#allocation2 + $0x40] sm:$0x3] %vm507, 0.0
        %515 = vst.msk [vmem:[#allocation2 + $0x48] sm:$0xff] %vm504, 0.0
        %516 = vst.msk [vmem:[#allocation2 + $0x50] sm:$0xff] %vm504, 0.0
        %517 = vst.msk [vmem:[#allocation2 + $0x58] sm:$0x3] %vm507, 0.0
        %vm518 = vcmask 146568
        %519 = vst.msk [vmem:[#allocation2] sm:$0xff] %vm518, 0.0
        %520 = vst.msk [vmem:[#allocation2 + $0x8] sm:$0xff] %vm518, 0.0
        %vm521 = vcmask 140424
        %522 = vst.msk [vmem:[#allocation2 + $0x10] sm:$0x3] %vm521, 0.0
        %523 = vst.msk [vmem:[#allocation2 + $0x18] sm:$0xff] %vm518, 0.0
        %524 = vst.msk [vmem:[#allocation2 + $0x20] sm:$0xff] %vm518, 0.0
        %525 = vst.msk [vmem:[#allocation2 + $0x28] sm:$0x3] %vm521, 0.0
        %526 = vst.msk [vmem:[#allocation2 + $0x30] sm:$0xff] %vm518, 0.0
        %527 = vst.msk [vmem:[#allocation2 + $0x38] sm:$0xff] %vm518, 0.0
        %528 = vst.msk [vmem:[#allocation2 + $0x40] sm:$0x3] %vm521, 0.0
        %529 = vst.msk [vmem:[#allocation2 + $0x48] sm:$0xff] %vm518, 0.0
        %530 = vst.msk [vmem:[#allocation2 + $0x50] sm:$0xff] %vm518, 0.0
        %531 = vst.msk [vmem:[#allocation2 + $0x58] sm:$0x3] %vm521, 0.0
        %532 = vst.msk [vmem:[#allocation3] sm:$0x1] %vm495, 0.0
        %533 = vst.msk [vmem:[#allocation3 + $0x18] sm:$0x1] %vm495, 0.0
        %534 = vst.msk [vmem:[#allocation3 + $0x11] sm:$0x1] %vm495, 0.0
        %535 = vst.msk [vmem:[#allocation3 + $0x29] sm:$0x1] %vm495, 0.0
        %536 = vst.msk [vmem:[#allocation3] sm:$0xff] %vm504, 0.0
        %537 = vst.msk [vmem:[#allocation3 + $0x8] sm:$0xff] %vm504, 0.0
        %538 = vst.msk [vmem:[#allocation3 + $0x10] sm:$0x3] %vm507, 0.0
        %539 = vst.msk [vmem:[#allocation3 + $0x18] sm:$0xff] %vm504, 0.0
        %540 = vst.msk [vmem:[#allocation3 + $0x20] sm:$0xff] %vm504, 0.0
        %541 = vst.msk [vmem:[#allocation3 + $0x28] sm:$0x3] %vm507, 0.0
        %542 = vst.msk [vmem:[#allocation3] sm:$0xff] %vm518, 0.0
        %543 = vst.msk [vmem:[#allocation3 + $0x8] sm:$0xff] %vm518, 0.0
        %544 = vst.msk [vmem:[#allocation3 + $0x10] sm:$0x3] %vm521, 0.0
        %545 = vst.msk [vmem:[#allocation3 + $0x18] sm:$0xff] %vm518, 0.0
        %546 = vst.msk [vmem:[#allocation3 + $0x20] sm:$0xff] %vm518, 0.0
        %547 = vst.msk [vmem:[#allocation3 + $0x28] sm:$0x3] %vm521, 0.0
        %v548 = vld [vmem:[%s428] sm:$0xff]
        %v549 = vld [vmem:[%s428 + $0x8] sm:$0xff]
        %v550 = vld [vmem:[%s428 + $0x10] sm:$0xff]
        %v551 = vld [vmem:[%s428 + $0x18] sm:$0xff]
        %556 = vrot.lane.b32.xlu0 %v548, 1
        %v557 = vpop.permute.xlu0 %556
        %558 = vrot.lane.b32.xlu0 %v549, 1
        %v559 = vpop.permute.xlu0 %558
        %560 = vrot.lane.b32.xlu0 %v550, 1
        %v561 = vpop.permute.xlu0 %560
        %562 = vrot.lane.b32.xlu0 %v551, 1
        %v563 = vpop.permute.xlu0 %562
        %vm568 = vcmask 138248
        %569 = vst.msk [vmem:[#allocation2 + $0x1] sm:$0xff] %vm568, %v557
        %570 = vst.msk [vmem:[#allocation2 + $0x9] sm:$0xff] %vm568, %v559
        %571 = vst.msk [vmem:[#allocation2 + $0x19] sm:$0xff] %vm568, %v561
        %572 = vst.msk [vmem:[#allocation2 + $0x21] sm:$0xff] %vm568, %v563
        %v573 = vld [vmem:[%s2] sm:$0xff]
        %v574 = vld [vmem:[%s2 + $0x8] sm:$0xff]
        %v575 = vld [vmem:[%s3] sm:$0xff]
        %v576 = vld [vmem:[%s419] sm:$0xff]
        %vm577 = vcmask 64512
        %v579 = vsel %vm577, %v573, 0
        %v582 = vsel %vm577, %v574, 0
        %584 = vmatprep.subr.mxu0 0.0
        %585 = vmatpush1.msra.mxu0 0.0
        %586 = vmatprep.subr.mxu0 0.0
        %587 = vmatpush1.msra.mxu0 0.0
        %588 = vmatprep.subr.mxu0 0.0
        %589 = vmatpush1.msra.mxu0 0.0
        %590 = vmatprep.subr.mxu0 0.0
        %591 = vmatpush1.msra.mxu0 0.0
        %592 = vmatprep.subr.mxu0 0.0
        %593 = vmatpush1.msra.mxu0 0.0
        %594 = vmatprep.subr.mxu0 0.0
        %595 = vmatpush1.msra.mxu0 0.0
        %596 = vmatprep.subr.mxu0 0.0
        %597 = vmatpush1.msra.mxu0 0.0
        %598 = vmatprep.subr.mxu0 0.0
        %599 = vmatpush1.msra.mxu0 0.0
        %600 = vmatprep.subr.mxu0 0.0
        %601 = vmatpush1.msra.mxu0 0.0
        %602 = vmatprep.subr.mxu0 0.0
        %603 = vmatpush1.msra.mxu0 0.0
        %604 = vmatprep.subr.mxu0 0.0
        %605 = vmatpush1.msra.mxu0 0.0
        %606 = vmatprep.subr.mxu0 0.0
        %607 = vmatpush1.msra.mxu0 0.0
        %608 = vmatprep.subr.mxu0 0.0
        %609 = vmatpush1.msra.mxu0 0.0
        %610 = vmatprep.subr.mxu0 0.0
        %611 = vmatpush1.msra.mxu0 0.0
        %612 = vmatprep.subr.mxu0 0.0
        %613 = vmatpush1.msra.mxu0 0.0
        %614 = vmatprep.subr.mxu0 0.0
        %615 = vmatpush1.msra.mxu0 %v576
        %616 = vmatprep.subr.mxu0 0.0
        %617 = vmatpush2.msra.mxu0 0.0
        %618 = vmatprep.subr.mxu0 0.0
        %619 = vmatpush2.msra.mxu0 0.0
        %620 = vmatprep.subr.mxu0 0.0
        %621 = vmatpush2.msra.mxu0 0.0
        %622 = vmatprep.subr.mxu0 0.0
        %623 = vmatpush2.msra.mxu0 0.0
        %624 = vmatprep.subr.mxu0 0.0
        %625 = vmatpush2.msra.mxu0 0.0
        %626 = vmatprep.subr.mxu0 0.0
        %627 = vmatpush2.msra.mxu0 0.0
        %628 = vmatprep.subr.mxu0 0.0
        %629 = vmatpush2.msra.mxu0 0.0
        %630 = vmatprep.subr.mxu0 0.0
        %631 = vmatpush2.msra.mxu0 0.0
        %632 = vmatprep.subr.mxu0 0.0
        %633 = vmatpush2.msra.mxu0 0.0
        %634 = vmatprep.subr.mxu0 0.0
        %635 = vmatpush2.msra.mxu0 0.0
        %636 = vmatprep.subr.mxu0 0.0
        %637 = vmatpush2.msra.mxu0 0.0
        %638 = vmatprep.subr.mxu0 0.0
        %639 = vmatpush2.msra.mxu0 0.0
        %640 = vmatprep.subr.mxu0 0.0
        %641 = vmatpush2.msra.mxu0 0.0
        %642 = vmatprep.subr.mxu0 0.0
        %643 = vmatpush2.msra.mxu0 0.0
        %644 = vmatprep.subr.mxu0 0.0
        %645 = vmatpush2.msra.mxu0 0.0
        %646 = vmatprep.subr.mxu0 0.0
        %647 = vmatpush2.msra.mxu0 0.0
        %648 = vmatprep.mubr.f32.mxu0 0.0
        %649 = vmatmul.mubr.f32.gmra.mxu0 %v579
        %v650 = vpop.f32.mrf.mxu0
        %v651 = vadd.f32 0.0, %v650
        %v652 = vpop.f32.mrf.mxu0
        %653 = vmatprep.mubr.f32.mxu0 0.0
        %654 = vmatmul.mubr.f32.gmra.mxu0 %v582
        %v655 = vpop.f32.mrf.mxu0
        %v656 = vadd.f32 0.0, %v655
        %v657 = vpop.f32.mrf.mxu0
        %658 = vdwg.mxu0
        %v660 = vsel %vm577, %v651, 0
        %v663 = vsel %vm577, %v656, 0
        %665 = vmatprep.subr.mxu0 0.0
        %666 = vmatpush1.msra.mxu0 0.0
        %667 = vmatprep.subr.mxu0 0.0
        %668 = vmatpush1.msra.mxu0 0.0
        %669 = vmatprep.subr.mxu0 0.0
        %670 = vmatpush1.msra.mxu0 0.0
        %671 = vmatprep.subr.mxu0 0.0
        %672 = vmatpush1.msra.mxu0 0.0
        %673 = vmatprep.subr.mxu0 0.0
        %674 = vmatpush1.msra.mxu0 0.0
        %675 = vmatprep.subr.mxu0 0.0
        %676 = vmatpush1.msra.mxu0 0.0
        %677 = vmatprep.subr.mxu0 0.0
        %678 = vmatpush1.msra.mxu0 0.0
        %679 = vmatprep.subr.mxu0 0.0
        %680 = vmatpush1.msra.mxu0 0.0
        %681 = vmatprep.subr.mxu0 0.0
        %682 = vmatpush1.msra.mxu0 0.0
        %683 = vmatprep.subr.mxu0 0.0
        %684 = vmatpush1.msra.mxu0 0.0
        %685 = vmatprep.subr.mxu0 0.0
        %686 = vmatpush1.msra.mxu0 0.0
        %687 = vmatprep.subr.mxu0 0.0
        %688 = vmatpush1.msra.mxu0 0.0
        %689 = vmatprep.subr.mxu0 0.0
        %690 = vmatpush1.msra.mxu0 0.0
        %691 = vmatprep.subr.mxu0 0.0
        %692 = vmatpush1.msra.mxu0 0.0
        %693 = vmatprep.subr.mxu0 0.0
        %694 = vmatpush1.msra.mxu0 0.0
        %695 = vmatprep.subr.mxu0 0.0
        %696 = vmatpush1.msra.mxu0 %v575
        %697 = vmatprep.subr.mxu0 0.0
        %698 = vmatpush2.msra.mxu0 0.0
        %699 = vmatprep.subr.mxu0 0.0
        %700 = vmatpush2.msra.mxu0 0.0
        %701 = vmatprep.subr.mxu0 0.0
        %702 = vmatpush2.msra.mxu0 0.0
        %703 = vmatprep.subr.mxu0 0.0
        %704 = vmatpush2.msra.mxu0 0.0
        %705 = vmatprep.subr.mxu0 0.0
        %706 = vmatpush2.msra.mxu0 0.0
        %707 = vmatprep.subr.mxu0 0.0
        %708 = vmatpush2.msra.mxu0 0.0
        %709 = vmatprep.subr.mxu0 0.0
        %710 = vmatpush2.msra.mxu0 0.0
        %711 = vmatprep.subr.mxu0 0.0
        %712 = vmatpush2.msra.mxu0 0.0
        %713 = vmatprep.subr.mxu0 0.0
        %714 = vmatpush2.msra.mxu0 0.0
        %715 = vmatprep.subr.mxu0 0.0
        %716 = vmatpush2.msra.mxu0 0.0
        %717 = vmatprep.subr.mxu0 0.0
        %718 = vmatpush2.msra.mxu0 0.0
        %719 = vmatprep.subr.mxu0 0.0
        %720 = vmatpush2.msra.mxu0 0.0
        %721 = vmatprep.subr.mxu0 0.0
        %722 = vmatpush2.msra.mxu0 0.0
        %723 = vmatprep.subr.mxu0 0.0
        %724 = vmatpush2.msra.mxu0 0.0
        %725 = vmatprep.subr.mxu0 0.0
        %726 = vmatpush2.msra.mxu0 0.0
        %727 = vmatprep.subr.mxu0 0.0
        %728 = vmatpush2.msra.mxu0 0.0
        %729 = vmatprep.mubr.f32.mxu0 0.0
        %730 = vmatmul.mubr.f32.gmra.mxu0 %v660
        %v731 = vpop.f32.mrf.mxu0
        %v732 = vadd.f32 0.0, %v731
        %v733 = vpop.f32.mrf.mxu0
        %734 = vmatprep.mubr.f32.mxu0 0.0
        %735 = vmatmul.mubr.f32.gmra.mxu0 %v663
        %v736 = vpop.f32.mrf.mxu0
        %v737 = vadd.f32 0.0, %v736
        %v738 = vpop.f32.mrf.mxu0
        %739 = vdwg.mxu0
        %742 = vrot.lane.b32.xlu0 %v732, 1
        %v743 = vpop.permute.xlu0 %742
        %744 = vrot.lane.b32.xlu0 %v737, 1
        %v745 = vpop.permute.xlu0 %744
        %s748 = scalar_lea.vmem [#allocation2], 48
        %749 = vst.msk [vmem:[%s748 + $0x1] sm:$0xff] %vm568, %v743
        %750 = vst.msk [vmem:[%s748 + $0x9] sm:$0xff] %vm568, %v745
        %s751 = scalar_lea.vmem %s419, 8 [#allocation4]
        %v752 = vld [vmem:[%s751] sm:$0xff]
        %753 = vmatprep.subr.mxu0 0.0
        %754 = vmatpush1.msra.mxu0 0.0
        %755 = vmatprep.subr.mxu0 0.0
        %756 = vmatpush1.msra.mxu0 0.0
        %757 = vmatprep.subr.mxu0 0.0
        %758 = vmatpush1.msra.mxu0 0.0
        %759 = vmatprep.subr.mxu0 0.0
        %760 = vmatpush1.msra.mxu0 0.0
        %761 = vmatprep.subr.mxu0 0.0
        %762 = vmatpush1.msra.mxu0 0.0
        %763 = vmatprep.subr.mxu0 0.0
        %764 = vmatpush1.msra.mxu0 0.0
        %765 = vmatprep.subr.mxu0 0.0
        %766 = vmatpush1.msra.mxu0 0.0
        %767 = vmatprep.subr.mxu0 0.0
        %768 = vmatpush1.msra.mxu0 0.0
        %769 = vmatprep.subr.mxu0 0.0
        %770 = vmatpush1.msra.mxu0 0.0
        %771 = vmatprep.subr.mxu0 0.0
        %772 = vmatpush1.msra.mxu0 0.0
        %773 = vmatprep.subr.mxu0 0.0
        %774 = vmatpush1.msra.mxu0 0.0
        %775 = vmatprep.subr.mxu0 0.0
        %776 = vmatpush1.msra.mxu0 0.0
        %777 = vmatprep.subr.mxu0 0.0
        %778 = vmatpush1.msra.mxu0 0.0
        %779 = vmatprep.subr.mxu0 0.0
        %780 = vmatpush1.msra.mxu0 0.0
        %781 = vmatprep.subr.mxu0 0.0
        %782 = vmatpush1.msra.mxu0 0.0
        %783 = vmatprep.subr.mxu0 0.0
        %784 = vmatpush1.msra.mxu0 %v752
        %785 = vmatprep.subr.mxu0 0.0
        %786 = vmatpush2.msra.mxu0 0.0
        %787 = vmatprep.subr.mxu0 0.0
        %788 = vmatpush2.msra.mxu0 0.0
        %789 = vmatprep.subr.mxu0 0.0
        %790 = vmatpush2.msra.mxu0 0.0
        %791 = vmatprep.subr.mxu0 0.0
        %792 = vmatpush2.msra.mxu0 0.0
        %793 = vmatprep.subr.mxu0 0.0
        %794 = vmatpush2.msra.mxu0 0.0
        %795 = vmatprep.subr.mxu0 0.0
        %796 = vmatpush2.msra.mxu0 0.0
        %797 = vmatprep.subr.mxu0 0.0
        %798 = vmatpush2.msra.mxu0 0.0
        %799 = vmatprep.subr.mxu0 0.0
        %800 = vmatpush2.msra.mxu0 0.0
        %801 = vmatprep.subr.mxu0 0.0
        %802 = vmatpush2.msra.mxu0 0.0
        %803 = vmatprep.subr.mxu0 0.0
        %804 = vmatpush2.msra.mxu0 0.0
        %805 = vmatprep.subr.mxu0 0.0
        %806 = vmatpush2.msra.mxu0 0.0
        %807 = vmatprep.subr.mxu0 0.0
        %808 = vmatpush2.msra.mxu0 0.0
        %809 = vmatprep.subr.mxu0 0.0
        %810 = vmatpush2.msra.mxu0 0.0
        %811 = vmatprep.subr.mxu0 0.0
        %812 = vmatpush2.msra.mxu0 0.0
        %813 = vmatprep.subr.mxu0 0.0
        %814 = vmatpush2.msra.mxu0 0.0
        %815 = vmatprep.subr.mxu0 0.0
        %816 = vmatpush2.msra.mxu0 0.0
        %817 = vmatprep.mubr.f32.mxu0 0.0
        %818 = vmatmul.mubr.f32.gmra.mxu0 %v579
        %v819 = vpop.f32.mrf.mxu0
        %v820 = vadd.f32 0.0, %v819
        %v821 = vpop.f32.mrf.mxu0
        %822 = vmatprep.mubr.f32.mxu0 0.0
        %823 = vmatmul.mubr.f32.gmra.mxu0 %v582
        %v824 = vpop.f32.mrf.mxu0
        %v825 = vadd.f32 0.0, %v824
        %v826 = vpop.f32.mrf.mxu0
        %827 = vdwg.mxu0
        %v829 = vsel %vm577, %v820, 0
        %v832 = vsel %vm577, %v825, 0
        %834 = vmatprep.subr.mxu0 0.0
        %835 = vmatpush1.msra.mxu0 0.0
        %836 = vmatprep.subr.mxu0 0.0
        %837 = vmatpush1.msra.mxu0 0.0
        %838 = vmatprep.subr.mxu0 0.0
        %839 = vmatpush1.msra.mxu0 0.0
        %840 = vmatprep.subr.mxu0 0.0
        %841 = vmatpush1.msra.mxu0 0.0
        %842 = vmatprep.subr.mxu0 0.0
        %843 = vmatpush1.msra.mxu0 0.0
        %844 = vmatprep.subr.mxu0 0.0
        %845 = vmatpush1.msra.mxu0 0.0
        %846 = vmatprep.subr.mxu0 0.0
        %847 = vmatpush1.msra.mxu0 0.0
        %848 = vmatprep.subr.mxu0 0.0
        %849 = vmatpush1.msra.mxu0 0.0
        %850 = vmatprep.subr.mxu0 0.0
        %851 = vmatpush1.msra.mxu0 0.0
        %852 = vmatprep.subr.mxu0 0.0
        %853 = vmatpush1.msra.mxu0 0.0
        %854 = vmatprep.subr.mxu0 0.0
        %855 = vmatpush1.msra.mxu0 0.0
        %856 = vmatprep.subr.mxu0 0.0
        %857 = vmatpush1.msra.mxu0 0.0
        %858 = vmatprep.subr.mxu0 0.0
        %859 = vmatpush1.msra.mxu0 0.0
        %860 = vmatprep.subr.mxu0 0.0
        %861 = vmatpush1.msra.mxu0 0.0
        %862 = vmatprep.subr.mxu0 0.0
        %863 = vmatpush1.msra.mxu0 0.0
        %864 = vmatprep.subr.mxu0 0.0
        %865 = vmatpush1.msra.mxu0 %v575
        %866 = vmatprep.subr.mxu0 0.0
        %867 = vmatpush2.msra.mxu0 0.0
        %868 = vmatprep.subr.mxu0 0.0
        %869 = vmatpush2.msra.mxu0 0.0
        %870 = vmatprep.subr.mxu0 0.0
        %871 = vmatpush2.msra.mxu0 0.0
        %872 = vmatprep.subr.mxu0 0.0
        %873 = vmatpush2.msra.mxu0 0.0
        %874 = vmatprep.subr.mxu0 0.0
        %875 = vmatpush2.msra.mxu0 0.0
        %876 = vmatprep.subr.mxu0 0.0
        %877 = vmatpush2.msra.mxu0 0.0
        %878 = vmatprep.subr.mxu0 0.0
        %879 = vmatpush2.msra.mxu0 0.0
        %880 = vmatprep.subr.mxu0 0.0
        %881 = vmatpush2.msra.mxu0 0.0
        %882 = vmatprep.subr.mxu0 0.0
        %883 = vmatpush2.msra.mxu0 0.0
        %884 = vmatprep.subr.mxu0 0.0
        %885 = vmatpush2.msra.mxu0 0.0
        %886 = vmatprep.subr.mxu0 0.0
        %887 = vmatpush2.msra.mxu0 0.0
        %888 = vmatprep.subr.mxu0 0.0
        %889 = vmatpush2.msra.mxu0 0.0
        %890 = vmatprep.subr.mxu0 0.0
        %891 = vmatpush2.msra.mxu0 0.0
        %892 = vmatprep.subr.mxu0 0.0
        %893 = vmatpush2.msra.mxu0 0.0
        %894 = vmatprep.subr.mxu0 0.0
        %895 = vmatpush2.msra.mxu0 0.0
        %896 = vmatprep.subr.mxu0 0.0
        %897 = vmatpush2.msra.mxu0 0.0
        %898 = vmatprep.mubr.f32.mxu0 0.0
        %899 = vmatmul.mubr.f32.gmra.mxu0 %v829
        %v900 = vpop.f32.mrf.mxu0
        %v901 = vadd.f32 0.0, %v900
        %v902 = vpop.f32.mrf.mxu0
        %903 = vmatprep.mubr.f32.mxu0 0.0
        %904 = vmatmul.mubr.f32.gmra.mxu0 %v832
        %v905 = vpop.f32.mrf.mxu0
        %v906 = vadd.f32 0.0, %v905
        %v907 = vpop.f32.mrf.mxu0
        %908 = vdwg.mxu0
        %911 = vrot.lane.b32.xlu0 %v901, 1
        %v912 = vpop.permute.xlu0 %911
        %913 = vrot.lane.b32.xlu0 %v906, 1
        %v914 = vpop.permute.xlu0 %913
        %s917 = scalar_lea.vmem [#allocation2], 72
        %918 = vst.msk [vmem:[%s917 + $0x1] sm:$0xff] %vm568, %v912
        %919 = vst.msk [vmem:[%s917 + $0x9] sm:$0xff] %vm568, %v914
        %v920 = vld [vmem:[#allocation2] sm:$0xff]
        %v921 = vld [vmem:[#allocation2 + $0x8] sm:$0xff]
        %v922 = vld [vmem:[#allocation2 + $0x1] sm:$0xff]
        %v923 = vld [vmem:[#allocation2 + $0x9] sm:$0xff]
        %v924 = vld [vmem:[#allocation2 + $0x2] sm:$0xff]
        %v925 = vld [vmem:[#allocation2 + $0xa] sm:$0xff]
        %s926 = sld [smem:[#allocation10]]
        %v927 = vstv %s926
        %v928 = vmul.f32 %v927, %v920
        %v929 = vmul.f32 %v927, %v921
        %v930 = vadd.f32 %v928, 0.0
        %v931 = vadd.f32 %v929, 0.0
        %s932 = sld [smem:[#allocation10 + $0x1]]
        %v933 = vstv %s932
        %v934 = vmul.f32 %v933, %v920
        %v935 = vmul.f32 %v933, %v921
        %938 = vrot.lane.b32.xlu0 %v934, 127
        %v939 = vpop.permute.xlu0 %938
        %940 = vrot.lane.b32.xlu0 %v935, 127
        %v941 = vpop.permute.xlu0 %940
        %v944 = vadd.f32 %v930, %v939
        %v945 = vadd.f32 %v931, %v941
        %s946 = sld [smem:[#allocation10 + $0x2]]
        %v947 = vstv %s946
        %v948 = vmul.f32 %v947, %v920
        %v949 = vmul.f32 %v947, %v921
        %952 = vrot.lane.b32.xlu0 %v948, 126
        %v953 = vpop.permute.xlu0 %952
        %954 = vrot.lane.b32.xlu0 %v949, 126
        %v955 = vpop.permute.xlu0 %954
        %v958 = vadd.f32 %v944, %v953
        %v959 = vadd.f32 %v945, %v955
        %s960 = sld [smem:[#allocation10 + $0x3]]
        %v961 = vstv %s960
        %v962 = vmul.f32 %v961, %v922
        %v963 = vmul.f32 %v961, %v923
        %v964 = vadd.f32 %v958, %v962
        %v965 = vadd.f32 %v959, %v963
        %s966 = sld [smem:[#allocation10 + $0x4]]
        %v967 = vstv %s966
        %v968 = vmul.f32 %v967, %v922
        %v969 = vmul.f32 %v967, %v923
        %972 = vrot.lane.b32.xlu0 %v968, 127
        %v973 = vpop.permute.xlu0 %972
        %974 = vrot.lane.b32.xlu0 %v969, 127
        %v975 = vpop.permute.xlu0 %974
        %v978 = vadd.f32 %v964, %v973
        %v979 = vadd.f32 %v965, %v975
        %s980 = sld [smem:[#allocation10 + $0x5]]
        %v981 = vstv %s980
        %v982 = vmul.f32 %v981, %v922
        %v983 = vmul.f32 %v981, %v923
        %986 = vrot.lane.b32.xlu0 %v982, 126
        %v987 = vpop.permute.xlu0 %986
        %988 = vrot.lane.b32.xlu0 %v983, 126
        %v989 = vpop.permute.xlu0 %988
        %v992 = vadd.f32 %v978, %v987
        %v993 = vadd.f32 %v979, %v989
        %s994 = sld [smem:[#allocation10 + $0x6]]
        %v995 = vstv %s994
        %v996 = vmul.f32 %v995, %v924
        %v997 = vmul.f32 %v995, %v925
        %v998 = vadd.f32 %v992, %v996
        %v999 = vadd.f32 %v993, %v997
        %s1000 = sld [smem:[#allocation10 + $0x7]]
        %v1001 = vstv %s1000
        %v1002 = vmul.f32 %v1001, %v924
        %v1003 = vmul.f32 %v1001, %v925
        %1006 = vrot.lane.b32.xlu0 %v1002, 127
        %v1007 = vpop.permute.xlu0 %1006
        %1008 = vrot.lane.b32.xlu0 %v1003, 127
        %v1009 = vpop.permute.xlu0 %1008
        %v1012 = vadd.f32 %v998, %v1007
        %v1013 = vadd.f32 %v999, %v1009
        %s1014 = sld [smem:[#allocation10 + $0x8]]
        %v1015 = vstv %s1014
        %v1016 = vmul.f32 %v1015, %v924
        %v1017 = vmul.f32 %v1015, %v925
        %1020 = vrot.lane.b32.xlu0 %v1016, 126
        %v1021 = vpop.permute.xlu0 %1020
        %1022 = vrot.lane.b32.xlu0 %v1017, 126
        %v1023 = vpop.permute.xlu0 %1022
        %v1026 = vadd.f32 %v1012, %v1021
        %v1027 = vadd.f32 %v1013, %v1023
        %s1028 = sld [smem:[#allocation10 + $0x24]]
        %v1029 = vstv %s1028
        %v1030 = vmul.f32 %v1029, %v920
        %v1031 = vmul.f32 %v1029, %v921
        %v1032 = vadd.f32 %v1030, 0.0
        %v1033 = vadd.f32 %v1031, 0.0
        %s1034 = sld [smem:[#allocation10 + $0x25]]
        %v1035 = vstv %s1034
        %v1036 = vmul.f32 %v1035, %v920
        %v1037 = vmul.f32 %v1035, %v921
        %1040 = vrot.lane.b32.xlu0 %v1036, 127
        %v1041 = vpop.permute.xlu0 %1040
        %1042 = vrot.lane.b32.xlu0 %v1037, 127
        %v1043 = vpop.permute.xlu0 %1042
        %v1046 = vadd.f32 %v1032, %v1041
        %v1047 = vadd.f32 %v1033, %v1043
        %s1048 = sld [smem:[#allocation10 + $0x26]]
        %v1049 = vstv %s1048
        %v1050 = vmul.f32 %v1049, %v920
        %v1051 = vmul.f32 %v1049, %v921
        %1054 = vrot.lane.b32.xlu0 %v1050, 126
        %v1055 = vpop.permute.xlu0 %1054
        %1056 = vrot.lane.b32.xlu0 %v1051, 126
        %v1057 = vpop.permute.xlu0 %1056
        %v1060 = vadd.f32 %v1046, %v1055
        %v1061 = vadd.f32 %v1047, %v1057
        %s1062 = sld [smem:[#allocation10 + $0x27]]
        %v1063 = vstv %s1062
        %v1064 = vmul.f32 %v1063, %v922
        %v1065 = vmul.f32 %v1063, %v923
        %v1066 = vadd.f32 %v1060, %v1064
        %v1067 = vadd.f32 %v1061, %v1065
        %s1068 = sld [smem:[#allocation10 + $0x28]]
        %v1069 = vstv %s1068
        %v1070 = vmul.f32 %v1069, %v922
        %v1071 = vmul.f32 %v1069, %v923
        %1074 = vrot.lane.b32.xlu0 %v1070, 127
        %v1075 = vpop.permute.xlu0 %1074
        %1076 = vrot.lane.b32.xlu0 %v1071, 127
        %v1077 = vpop.permute.xlu0 %1076
        %v1080 = vadd.f32 %v1066, %v1075
        %v1081 = vadd.f32 %v1067, %v1077
        %s1082 = sld [smem:[#allocation10 + $0x29]]
        %v1083 = vstv %s1082
        %v1084 = vmul.f32 %v1083, %v922
        %v1085 = vmul.f32 %v1083, %v923
        %1088 = vrot.lane.b32.xlu0 %v1084, 126
        %v1089 = vpop.permute.xlu0 %1088
        %1090 = vrot.lane.b32.xlu0 %v1085, 126
        %v1091 = vpop.permute.xlu0 %1090
        %v1094 = vadd.f32 %v1080, %v1089
        %v1095 = vadd.f32 %v1081, %v1091
        %s1096 = sld [smem:[#allocation10 + $0x2a]]
        %v1097 = vstv %s1096
        %v1098 = vmul.f32 %v1097, %v924
        %v1099 = vmul.f32 %v1097, %v925
        %v1100 = vadd.f32 %v1094, %v1098
        %v1101 = vadd.f32 %v1095, %v1099
        %s1102 = sld [smem:[#allocation10 + $0x2b]]
        %v1103 = vstv %s1102
        %v1104 = vmul.f32 %v1103, %v924
        %v1105 = vmul.f32 %v1103, %v925
        %1108 = vrot.lane.b32.xlu0 %v1104, 127
        %v1109 = vpop.permute.xlu0 %1108
        %1110 = vrot.lane.b32.xlu0 %v1105, 127
        %v1111 = vpop.permute.xlu0 %1110
        %v1114 = vadd.f32 %v1100, %v1109
        %v1115 = vadd.f32 %v1101, %v1111
        %s1116 = sld [smem:[#allocation10 + $0x2c]]
        %v1117 = vstv %s1116
        %v1118 = vmul.f32 %v1117, %v924
        %v1119 = vmul.f32 %v1117, %v925
        %1122 = vrot.lane.b32.xlu0 %v1118, 126
        %v1123 = vpop.permute.xlu0 %1122
        %1124 = vrot.lane.b32.xlu0 %v1119, 126
        %v1125 = vpop.permute.xlu0 %1124
        %v1128 = vadd.f32 %v1114, %v1123
        %v1129 = vadd.f32 %v1115, %v1125
        %s1130 = scalar_lea.vmem [#allocation2], 24
        %v1131 = vld [vmem:[%s1130] sm:$0xff]
        %v1132 = vld [vmem:[%s1130 + $0x8] sm:$0xff]
        %v1133 = vld [vmem:[%s1130 + $0x1] sm:$0xff]
        %v1134 = vld [vmem:[%s1130 + $0x9] sm:$0xff]
        %v1135 = vld [vmem:[%s1130 + $0x2] sm:$0xff]
        %v1136 = vld [vmem:[%s1130 + $0xa] sm:$0xff]
        %s1137 = sld [smem:[#allocation10 + $0x9]]
        %v1138 = vstv %s1137
        %v1139 = vmul.f32 %v1138, %v1131
        %v1140 = vmul.f32 %v1138, %v1132
        %v1141 = vadd.f32 %v1026, %v1139
        %v1142 = vadd.f32 %v1027, %v1140
        %s1143 = sld [smem:[#allocation10 + $0xa]]
        %v1144 = vstv %s1143
        %v1145 = vmul.f32 %v1144, %v1131
        %v1146 = vmul.f32 %v1144, %v1132
        %1149 = vrot.lane.b32.xlu0 %v1145, 127
        %v1150 = vpop.permute.xlu0 %1149
        %1151 = vrot.lane.b32.xlu0 %v1146, 127
        %v1152 = vpop.permute.xlu0 %1151
        %v1155 = vadd.f32 %v1141, %v1150
        %v1156 = vadd.f32 %v1142, %v1152
        %s1157 = sld [smem:[#allocation10 + $0xb]]
        %v1158 = vstv %s1157
        %v1159 = vmul.f32 %v1158, %v1131
        %v1160 = vmul.f32 %v1158, %v1132
        %1163 = vrot.lane.b32.xlu0 %v1159, 126
        %v1164 = vpop.permute.xlu0 %1163
        %1165 = vrot.lane.b32.xlu0 %v1160, 126
        %v1166 = vpop.permute.xlu0 %1165
        %v1169 = vadd.f32 %v1155, %v1164
        %v1170 = vadd.f32 %v1156, %v1166
        %s1171 = sld [smem:[#allocation10 + $0xc]]
        %v1172 = vstv %s1171
        %v1173 = vmul.f32 %v1172, %v1133
        %v1174 = vmul.f32 %v1172, %v1134
        %v1175 = vadd.f32 %v1169, %v1173
        %v1176 = vadd.f32 %v1170, %v1174
        %s1177 = sld [smem:[#allocation10 + $0xd]]
        %v1178 = vstv %s1177
        %v1179 = vmul.f32 %v1178, %v1133
        %v1180 = vmul.f32 %v1178, %v1134
        %1183 = vrot.lane.b32.xlu0 %v1179, 127
        %v1184 = vpop.permute.xlu0 %1183
        %1185 = vrot.lane.b32.xlu0 %v1180, 127
        %v1186 = vpop.permute.xlu0 %1185
        %v1189 = vadd.f32 %v1175, %v1184
        %v1190 = vadd.f32 %v1176, %v1186
        %s1191 = sld [smem:[#allocation10 + $0xe]]
        %v1192 = vstv %s1191
        %v1193 = vmul.f32 %v1192, %v1133
        %v1194 = vmul.f32 %v1192, %v1134
        %1197 = vrot.lane.b32.xlu0 %v1193, 126
        %v1198 = vpop.permute.xlu0 %1197
        %1199 = vrot.lane.b32.xlu0 %v1194, 126
        %v1200 = vpop.permute.xlu0 %1199
        %v1203 = vadd.f32 %v1189, %v1198
        %v1204 = vadd.f32 %v1190, %v1200
        %s1205 = sld [smem:[#allocation10 + $0xf]]
        %v1206 = vstv %s1205
        %v1207 = vmul.f32 %v1206, %v1135
        %v1208 = vmul.f32 %v1206, %v1136
        %v1209 = vadd.f32 %v1203, %v1207
        %v1210 = vadd.f32 %v1204, %v1208
        %s1211 = sld [smem:[#allocation10 + $0x10]]
        %v1212 = vstv %s1211
        %v1213 = vmul.f32 %v1212, %v1135
        %v1214 = vmul.f32 %v1212, %v1136
        %1217 = vrot.lane.b32.xlu0 %v1213, 127
        %v1218 = vpop.permute.xlu0 %1217
        %1219 = vrot.lane.b32.xlu0 %v1214, 127
        %v1220 = vpop.permute.xlu0 %1219
        %v1223 = vadd.f32 %v1209, %v1218
        %v1224 = vadd.f32 %v1210, %v1220
        %s1225 = sld [smem:[#allocation10 + $0x11]]
        %v1226 = vstv %s1225
        %v1227 = vmul.f32 %v1226, %v1135
        %v1228 = vmul.f32 %v1226, %v1136
        %1231 = vrot.lane.b32.xlu0 %v1227, 126
        %v1232 = vpop.permute.xlu0 %1231
        %1233 = vrot.lane.b32.xlu0 %v1228, 126
        %v1234 = vpop.permute.xlu0 %1233
        %v1237 = vadd.f32 %v1223, %v1232
        %v1238 = vadd.f32 %v1224, %v1234
        %s1239 = sld [smem:[#allocation10 + $0x2d]]
        %v1240 = vstv %s1239
        %v1241 = vmul.f32 %v1240, %v1131
        %v1242 = vmul.f32 %v1240, %v1132
        %v1243 = vadd.f32 %v1128, %v1241
        %v1244 = vadd.f32 %v1129, %v1242
        %s1245 = sld [smem:[#allocation10 + $0x2e]]
        %v1246 = vstv %s1245
        %v1247 = vmul.f32 %v1246, %v1131
        %v1248 = vmul.f32 %v1246, %v1132
        %1251 = vrot.lane.b32.xlu0 %v1247, 127
        %v1252 = vpop.permute.xlu0 %1251
        %1253 = vrot.lane.b32.xlu0 %v1248, 127
        %v1254 = vpop.permute.xlu0 %1253
        %v1257 = vadd.f32 %v1243, %v1252
        %v1258 = vadd.f32 %v1244, %v1254
        %s1259 = sld [smem:[#allocation10 + $0x2f]]
        %v1260 = vstv %s1259
        %v1261 = vmul.f32 %v1260, %v1131
        %v1262 = vmul.f32 %v1260, %v1132
        %1265 = vrot.lane.b32.xlu0 %v1261, 126
        %v1266 = vpop.permute.xlu0 %1265
        %1267 = vrot.lane.b32.xlu0 %v1262, 126
        %v1268 = vpop.permute.xlu0 %1267
        %v1271 = vadd.f32 %v1257, %v1266
        %v1272 = vadd.f32 %v1258, %v1268
        %s1273 = sld [smem:[#allocation10 + $0x30]]
        %v1274 = vstv %s1273
        %v1275 = vmul.f32 %v1274, %v1133
        %v1276 = vmul.f32 %v1274, %v1134
        %v1277 = vadd.f32 %v1271, %v1275
        %v1278 = vadd.f32 %v1272, %v1276
        %s1279 = sld [smem:[#allocation10 + $0x31]]
        %v1280 = vstv %s1279
        %v1281 = vmul.f32 %v1280, %v1133
        %v1282 = vmul.f32 %v1280, %v1134
        %1285 = vrot.lane.b32.xlu0 %v1281, 127
        %v1286 = vpop.permute.xlu0 %1285
        %1287 = vrot.lane.b32.xlu0 %v1282, 127
        %v1288 = vpop.permute.xlu0 %1287
        %v1291 = vadd.f32 %v1277, %v1286
        %v1292 = vadd.f32 %v1278, %v1288
        %s1293 = sld [smem:[#allocation10 + $0x32]]
        %v1294 = vstv %s1293
        %v1295 = vmul.f32 %v1294, %v1133
        %v1296 = vmul.f32 %v1294, %v1134
        %1299 = vrot.lane.b32.xlu0 %v1295, 126
        %v1300 = vpop.permute.xlu0 %1299
        %1301 = vrot.lane.b32.xlu0 %v1296, 126
        %v1302 = vpop.permute.xlu0 %1301
        %v1305 = vadd.f32 %v1291, %v1300
        %v1306 = vadd.f32 %v1292, %v1302
        %s1307 = sld [smem:[#allocation10 + $0x33]]
        %v1308 = vstv %s1307
        %v1309 = vmul.f32 %v1308, %v1135
        %v1310 = vmul.f32 %v1308, %v1136
        %v1311 = vadd.f32 %v1305, %v1309
        %v1312 = vadd.f32 %v1306, %v1310
        %s1313 = sld [smem:[#allocation10 + $0x34]]
        %v1314 = vstv %s1313
        %v1315 = vmul.f32 %v1314, %v1135
        %v1316 = vmul.f32 %v1314, %v1136
        %1319 = vrot.lane.b32.xlu0 %v1315, 127
        %v1320 = vpop.permute.xlu0 %1319
        %1321 = vrot.lane.b32.xlu0 %v1316, 127
        %v1322 = vpop.permute.xlu0 %1321
        %v1325 = vadd.f32 %v1311, %v1320
        %v1326 = vadd.f32 %v1312, %v1322
        %s1327 = sld [smem:[#allocation10 + $0x35]]
        %v1328 = vstv %s1327
        %v1329 = vmul.f32 %v1328, %v1135
        %v1330 = vmul.f32 %v1328, %v1136
        %1333 = vrot.lane.b32.xlu0 %v1329, 126
        %v1334 = vpop.permute.xlu0 %1333
        %1335 = vrot.lane.b32.xlu0 %v1330, 126
        %v1336 = vpop.permute.xlu0 %1335
        %v1339 = vadd.f32 %v1325, %v1334
        %v1340 = vadd.f32 %v1326, %v1336
        %v1341 = vld [vmem:[%s748] sm:$0xff]
        %v1342 = vld [vmem:[%s748 + $0x8] sm:$0xff]
        %v1343 = vld [vmem:[%s748 + $0x1] sm:$0xff]
        %v1344 = vld [vmem:[%s748 + $0x9] sm:$0xff]
        %v1345 = vld [vmem:[%s748 + $0x2] sm:$0xff]
        %v1346 = vld [vmem:[%s748 + $0xa] sm:$0xff]
        %s1347 = sld [smem:[#allocation10 + $0x12]]
        %v1348 = vstv %s1347
        %v1349 = vmul.f32 %v1348, %v1341
        %v1350 = vmul.f32 %v1348, %v1342
        %v1351 = vadd.f32 %v1237, %v1349
        %v1352 = vadd.f32 %v1238, %v1350
        %s1353 = sld [smem:[#allocation10 + $0x13]]
        %v1354 = vstv %s1353
        %v1355 = vmul.f32 %v1354, %v1341
        %v1356 = vmul.f32 %v1354, %v1342
        %1359 = vrot.lane.b32.xlu0 %v1355, 127
        %v1360 = vpop.permute.xlu0 %1359
        %1361 = vrot.lane.b32.xlu0 %v1356, 127
        %v1362 = vpop.permute.xlu0 %1361
        %v1365 = vadd.f32 %v1351, %v1360
        %v1366 = vadd.f32 %v1352, %v1362
        %s1367 = sld [smem:[#allocation10 + $0x14]]
        %v1368 = vstv %s1367
        %v1369 = vmul.f32 %v1368, %v1341
        %v1370 = vmul.f32 %v1368, %v1342
        %1373 = vrot.lane.b32.xlu0 %v1369, 126
        %v1374 = vpop.permute.xlu0 %1373
        %1375 = vrot.lane.b32.xlu0 %v1370, 126
        %v1376 = vpop.permute.xlu0 %1375
        %v1379 = vadd.f32 %v1365, %v1374
        %v1380 = vadd.f32 %v1366, %v1376
        %s1381 = sld [smem:[#allocation10 + $0x15]]
        %v1382 = vstv %s1381
        %v1383 = vmul.f32 %v1382, %v1343
        %v1384 = vmul.f32 %v1382, %v1344
        %v1385 = vadd.f32 %v1379, %v1383
        %v1386 = vadd.f32 %v1380, %v1384
        %s1387 = sld [smem:[#allocation10 + $0x16]]
        %v1388 = vstv %s1387
        %v1389 = vmul.f32 %v1388, %v1343
        %v1390 = vmul.f32 %v1388, %v1344
        %1393 = vrot.lane.b32.xlu0 %v1389, 127
        %v1394 = vpop.permute.xlu0 %1393
        %1395 = vrot.lane.b32.xlu0 %v1390, 127
        %v1396 = vpop.permute.xlu0 %1395
        %v1399 = vadd.f32 %v1385, %v1394
        %v1400 = vadd.f32 %v1386, %v1396
        %s1401 = sld [smem:[#allocation10 + $0x17]]
        %v1402 = vstv %s1401
        %v1403 = vmul.f32 %v1402, %v1343
        %v1404 = vmul.f32 %v1402, %v1344
        %1407 = vrot.lane.b32.xlu0 %v1403, 126
        %v1408 = vpop.permute.xlu0 %1407
        %1409 = vrot.lane.b32.xlu0 %v1404, 126
        %v1410 = vpop.permute.xlu0 %1409
        %v1413 = vadd.f32 %v1399, %v1408
        %v1414 = vadd.f32 %v1400, %v1410
        %s1415 = sld [smem:[#allocation10 + $0x18]]
        %v1416 = vstv %s1415
        %v1417 = vmul.f32 %v1416, %v1345
        %v1418 = vmul.f32 %v1416, %v1346
        %v1419 = vadd.f32 %v1413, %v1417
        %v1420 = vadd.f32 %v1414, %v1418
        %s1421 = sld [smem:[#allocation10 + $0x19]]
        %v1422 = vstv %s1421
        %v1423 = vmul.f32 %v1422, %v1345
        %v1424 = vmul.f32 %v1422, %v1346
        %1427 = vrot.lane.b32.xlu0 %v1423, 127
        %v1428 = vpop.permute.xlu0 %1427
        %1429 = vrot.lane.b32.xlu0 %v1424, 127
        %v1430 = vpop.permute.xlu0 %1429
        %v1433 = vadd.f32 %v1419, %v1428
        %v1434 = vadd.f32 %v1420, %v1430
        %s1435 = sld [smem:[#allocation10 + $0x1a]]
        %v1436 = vstv %s1435
        %v1437 = vmul.f32 %v1436, %v1345
        %v1438 = vmul.f32 %v1436, %v1346
        %1441 = vrot.lane.b32.xlu0 %v1437, 126
        %v1442 = vpop.permute.xlu0 %1441
        %1443 = vrot.lane.b32.xlu0 %v1438, 126
        %v1444 = vpop.permute.xlu0 %1443
        %v1447 = vadd.f32 %v1433, %v1442
        %v1448 = vadd.f32 %v1434, %v1444
        %s1449 = sld [smem:[#allocation10 + $0x36]]
        %v1450 = vstv %s1449
        %v1451 = vmul.f32 %v1450, %v1341
        %v1452 = vmul.f32 %v1450, %v1342
        %v1453 = vadd.f32 %v1339, %v1451
        %v1454 = vadd.f32 %v1340, %v1452
        %s1455 = sld [smem:[#allocation10 + $0x37]]
        %v1456 = vstv %s1455
        %v1457 = vmul.f32 %v1456, %v1341
        %v1458 = vmul.f32 %v1456, %v1342
        %1461 = vrot.lane.b32.xlu0 %v1457, 127
        %v1462 = vpop.permute.xlu0 %1461
        %1463 = vrot.lane.b32.xlu0 %v1458, 127
        %v1464 = vpop.permute.xlu0 %1463
        %v1467 = vadd.f32 %v1453, %v1462
        %v1468 = vadd.f32 %v1454, %v1464
        %s1469 = sld [smem:[#allocation10 + $0x38]]
        %v1470 = vstv %s1469
        %v1471 = vmul.f32 %v1470, %v1341
        %v1472 = vmul.f32 %v1470, %v1342
        %1475 = vrot.lane.b32.xlu0 %v1471, 126
        %v1476 = vpop.permute.xlu0 %1475
        %1477 = vrot.lane.b32.xlu0 %v1472, 126
        %v1478 = vpop.permute.xlu0 %1477
        %v1481 = vadd.f32 %v1467, %v1476
        %v1482 = vadd.f32 %v1468, %v1478
        %s1483 = sld [smem:[#allocation10 + $0x39]]
        %v1484 = vstv %s1483
        %v1485 = vmul.f32 %v1484, %v1343
        %v1486 = vmul.f32 %v1484, %v1344
        %v1487 = vadd.f32 %v1481, %v1485
        %v1488 = vadd.f32 %v1482, %v1486
        %s1489 = sld [smem:[#allocation10 + $0x3a]]
        %v1490 = vstv %s1489
        %v1491 = vmul.f32 %v1490, %v1343
        %v1492 = vmul.f32 %v1490, %v1344
        %1495 = vrot.lane.b32.xlu0 %v1491, 127
        %v1496 = vpop.permute.xlu0 %1495
        %1497 = vrot.lane.b32.xlu0 %v1492, 127
        %v1498 = vpop.permute.xlu0 %1497
        %v1501 = vadd.f32 %v1487, %v1496
        %v1502 = vadd.f32 %v1488, %v1498
        %s1503 = sld [smem:[#allocation10 + $0x3b]]
        %v1504 = vstv %s1503
        %v1505 = vmul.f32 %v1504, %v1343
        %v1506 = vmul.f32 %v1504, %v1344
        %1509 = vrot.lane.b32.xlu0 %v1505, 126
        %v1510 = vpop.permute.xlu0 %1509
        %1511 = vrot.lane.b32.xlu0 %v1506, 126
        %v1512 = vpop.permute.xlu0 %1511
        %v1515 = vadd.f32 %v1501, %v1510
        %v1516 = vadd.f32 %v1502, %v1512
        %s1517 = sld [smem:[#allocation10 + $0x3c]]
        %v1518 = vstv %s1517
        %v1519 = vmul.f32 %v1518, %v1345
        %v1520 = vmul.f32 %v1518, %v1346
        %v1521 = vadd.f32 %v1515, %v1519
        %v1522 = vadd.f32 %v1516, %v1520
        %s1523 = sld [smem:[#allocation10 + $0x3d]]
        %v1524 = vstv %s1523
        %v1525 = vmul.f32 %v1524, %v1345
        %v1526 = vmul.f32 %v1524, %v1346
        %1529 = vrot.lane.b32.xlu0 %v1525, 127
        %v1530 = vpop.permute.xlu0 %1529
        %1531 = vrot.lane.b32.xlu0 %v1526, 127
        %v1532 = vpop.permute.xlu0 %1531
        %v1535 = vadd.f32 %v1521, %v1530
        %v1536 = vadd.f32 %v1522, %v1532
        %s1537 = sld [smem:[#allocation10 + $0x3e]]
        %v1538 = vstv %s1537
        %v1539 = vmul.f32 %v1538, %v1345
        %v1540 = vmul.f32 %v1538, %v1346
        %1543 = vrot.lane.b32.xlu0 %v1539, 126
        %v1544 = vpop.permute.xlu0 %1543
        %1545 = vrot.lane.b32.xlu0 %v1540, 126
        %v1546 = vpop.permute.xlu0 %1545
        %v1549 = vadd.f32 %v1535, %v1544
        %v1550 = vadd.f32 %v1536, %v1546
        %v1551 = vld [vmem:[%s917] sm:$0xff]
        %v1552 = vld [vmem:[%s917 + $0x8] sm:$0xff]
        %v1553 = vld [vmem:[%s917 + $0x1] sm:$0xff]
        %v1554 = vld [vmem:[%s917 + $0x9] sm:$0xff]
        %v1555 = vld [vmem:[%s917 + $0x2] sm:$0xff]
        %v1556 = vld [vmem:[%s917 + $0xa] sm:$0xff]
        %s1557 = sld [smem:[#allocation10 + $0x1b]]
        %v1558 = vstv %s1557
        %v1559 = vmul.f32 %v1558, %v1551
        %v1560 = vmul.f32 %v1558, %v1552
        %v1561 = vadd.f32 %v1447, %v1559
        %v1562 = vadd.f32 %v1448, %v1560
        %s1563 = sld [smem:[#allocation10 + $0x1c]]
        %v1564 = vstv %s1563
        %v1565 = vmul.f32 %v1564, %v1551
        %v1566 = vmul.f32 %v1564, %v1552
        %1569 = vrot.lane.b32.xlu0 %v1565, 127
        %v1570 = vpop.permute.xlu0 %1569
        %1571 = vrot.lane.b32.xlu0 %v1566, 127
        %v1572 = vpop.permute.xlu0 %1571
        %v1575 = vadd.f32 %v1561, %v1570
        %v1576 = vadd.f32 %v1562, %v1572
        %s1577 = sld [smem:[#allocation10 + $0x1d]]
        %v1578 = vstv %s1577
        %v1579 = vmul.f32 %v1578, %v1551
        %v1580 = vmul.f32 %v1578, %v1552
        %1583 = vrot.lane.b32.xlu0 %v1579, 126
        %v1584 = vpop.permute.xlu0 %1583
        %1585 = vrot.lane.b32.xlu0 %v1580, 126
        %v1586 = vpop.permute.xlu0 %1585
        %v1589 = vadd.f32 %v1575, %v1584
        %v1590 = vadd.f32 %v1576, %v1586
        %s1591 = sld [smem:[#allocation10 + $0x1e]]
        %v1592 = vstv %s1591
        %v1593 = vmul.f32 %v1592, %v1553
        %v1594 = vmul.f32 %v1592, %v1554
        %v1595 = vadd.f32 %v1589, %v1593
        %v1596 = vadd.f32 %v1590, %v1594
        %s1597 = sld [smem:[#allocation10 + $0x1f]]
        %v1598 = vstv %s1597
        %v1599 = vmul.f32 %v1598, %v1553
        %v1600 = vmul.f32 %v1598, %v1554
        %1603 = vrot.lane.b32.xlu0 %v1599, 127
        %v1604 = vpop.permute.xlu0 %1603
        %1605 = vrot.lane.b32.xlu0 %v1600, 127
        %v1606 = vpop.permute.xlu0 %1605
        %v1609 = vadd.f32 %v1595, %v1604
        %v1610 = vadd.f32 %v1596, %v1606
        %s1611 = sld [smem:[#allocation10 + $0x20]]
        %v1612 = vstv %s1611
        %v1613 = vmul.f32 %v1612, %v1553
        %v1614 = vmul.f32 %v1612, %v1554
        %1617 = vrot.lane.b32.xlu0 %v1613, 126
        %v1618 = vpop.permute.xlu0 %1617
        %1619 = vrot.lane.b32.xlu0 %v1614, 126
        %v1620 = vpop.permute.xlu0 %1619
        %v1623 = vadd.f32 %v1609, %v1618
        %v1624 = vadd.f32 %v1610, %v1620
        %s1625 = sld [smem:[#allocation10 + $0x21]]
        %v1626 = vstv %s1625
        %v1627 = vmul.f32 %v1626, %v1555
        %v1628 = vmul.f32 %v1626, %v1556
        %v1629 = vadd.f32 %v1623, %v1627
        %v1630 = vadd.f32 %v1624, %v1628
        %s1631 = sld [smem:[#allocation10 + $0x22]]
        %v1632 = vstv %s1631
        %v1633 = vmul.f32 %v1632, %v1555
        %v1634 = vmul.f32 %v1632, %v1556
        %1637 = vrot.lane.b32.xlu0 %v1633, 127
        %v1638 = vpop.permute.xlu0 %1637
        %1639 = vrot.lane.b32.xlu0 %v1634, 127
        %v1640 = vpop.permute.xlu0 %1639
        %v1643 = vadd.f32 %v1629, %v1638
        %v1644 = vadd.f32 %v1630, %v1640
        %s1645 = sld [smem:[#allocation10 + $0x23]]
        %v1646 = vstv %s1645
        %v1647 = vmul.f32 %v1646, %v1555
        %v1648 = vmul.f32 %v1646, %v1556
        %1651 = vrot.lane.b32.xlu0 %v1647, 126
        %v1652 = vpop.permute.xlu0 %1651
        %1653 = vrot.lane.b32.xlu0 %v1648, 126
        %v1654 = vpop.permute.xlu0 %1653
        %v1657 = vadd.f32 %v1643, %v1652
        %v1658 = vadd.f32 %v1644, %v1654
        %s1659 = sld [smem:[#allocation10 + $0x3f]]
        %v1660 = vstv %s1659
        %v1661 = vmul.f32 %v1660, %v1551
        %v1662 = vmul.f32 %v1660, %v1552
        %v1663 = vadd.f32 %v1549, %v1661
        %v1664 = vadd.f32 %v1550, %v1662
        %s1665 = sld [smem:[#allocation10 + $0x40]]
        %v1666 = vstv %s1665
        %v1667 = vmul.f32 %v1666, %v1551
        %v1668 = vmul.f32 %v1666, %v1552
        %1671 = vrot.lane.b32.xlu0 %v1667, 127
        %v1672 = vpop.permute.xlu0 %1671
        %1673 = vrot.lane.b32.xlu0 %v1668, 127
        %v1674 = vpop.permute.xlu0 %1673
        %v1677 = vadd.f32 %v1663, %v1672
        %v1678 = vadd.f32 %v1664, %v1674
        %s1679 = sld [smem:[#allocation10 + $0x41]]
        %v1680 = vstv %s1679
        %v1681 = vmul.f32 %v1680, %v1551
        %v1682 = vmul.f32 %v1680, %v1552
        %1685 = vrot.lane.b32.xlu0 %v1681, 126
        %v1686 = vpop.permute.xlu0 %1685
        %1687 = vrot.lane.b32.xlu0 %v1682, 126
        %v1688 = vpop.permute.xlu0 %1687
        %v1691 = vadd.f32 %v1677, %v1686
        %v1692 = vadd.f32 %v1678, %v1688
        %s1693 = sld [smem:[#allocation10 + $0x42]]
        %v1694 = vstv %s1693
        %v1695 = vmul.f32 %v1694, %v1553
        %v1696 = vmul.f32 %v1694, %v1554
        %v1697 = vadd.f32 %v1691, %v1695
        %v1698 = vadd.f32 %v1692, %v1696
        %s1699 = sld [smem:[#allocation10 + $0x43]]
        %v1700 = vstv %s1699
        %v1701 = vmul.f32 %v1700, %v1553
        %v1702 = vmul.f32 %v1700, %v1554
        %1705 = vrot.lane.b32.xlu0 %v1701, 127
        %v1706 = vpop.permute.xlu0 %1705
        %1707 = vrot.lane.b32.xlu0 %v1702, 127
        %v1708 = vpop.permute.xlu0 %1707
        %v1711 = vadd.f32 %v1697, %v1706
        %v1712 = vadd.f32 %v1698, %v1708
        %s1713 = sld [smem:[#allocation10 + $0x44]]
        %v1714 = vstv %s1713
        %v1715 = vmul.f32 %v1714, %v1553
        %v1716 = vmul.f32 %v1714, %v1554
        %1719 = vrot.lane.b32.xlu0 %v1715, 126
        %v1720 = vpop.permute.xlu0 %1719
        %1721 = vrot.lane.b32.xlu0 %v1716, 126
        %v1722 = vpop.permute.xlu0 %1721
        %v1725 = vadd.f32 %v1711, %v1720
        %v1726 = vadd.f32 %v1712, %v1722
        %s1727 = sld [smem:[#allocation10 + $0x45]]
        %v1728 = vstv %s1727
        %v1729 = vmul.f32 %v1728, %v1555
        %v1730 = vmul.f32 %v1728, %v1556
        %v1731 = vadd.f32 %v1725, %v1729
        %v1732 = vadd.f32 %v1726, %v1730
        %s1733 = sld [smem:[#allocation10 + $0x46]]
        %v1734 = vstv %s1733
        %v1735 = vmul.f32 %v1734, %v1555
        %v1736 = vmul.f32 %v1734, %v1556
        %1739 = vrot.lane.b32.xlu0 %v1735, 127
        %v1740 = vpop.permute.xlu0 %1739
        %1741 = vrot.lane.b32.xlu0 %v1736, 127
        %v1742 = vpop.permute.xlu0 %1741
        %v1745 = vadd.f32 %v1731, %v1740
        %v1746 = vadd.f32 %v1732, %v1742
        %s1747 = sld [smem:[#allocation10 + $0x47]]
        %v1748 = vstv %s1747
        %v1749 = vmul.f32 %v1748, %v1555
        %v1750 = vmul.f32 %v1748, %v1556
        %1753 = vrot.lane.b32.xlu0 %v1749, 126
        %v1754 = vpop.permute.xlu0 %1753
        %1755 = vrot.lane.b32.xlu0 %v1750, 126
        %v1756 = vpop.permute.xlu0 %1755
        %v1759 = vadd.f32 %v1745, %v1754
        %v1760 = vadd.f32 %v1746, %v1756
        %s1761 = sld [smem:[#allocation11]]
        %v1762 = vstv %s1761
        %v1763 = vmul.f32 %v1657, %v1762
        %v1764 = vmul.f32 %v1658, %v1762
        %s1765 = sld [smem:[#allocation13]]
        %v1766 = vstv %s1765
        %v1767 = vadd.f32 %v1763, %v1766
        %v1768 = vadd.f32 %v1764, %v1766
        %v1769 = vmax.f32 %v1767, 0.0
        %v1770 = vmax.f32 %v1768, 0.0
        %1773 = vrot.lane.b32.xlu0 %v1769, 1
        %v1774 = vpop.permute.xlu0 %1773
        %1775 = vrot.lane.b32.xlu0 %v1770, 1
        %v1776 = vpop.permute.xlu0 %1775
        %1779 = vst.msk [vmem:[#allocation3 + $0x1] sm:$0xff] %vm568, %v1774
        %1780 = vst.msk [vmem:[#allocation3 + $0x9] sm:$0xff] %vm568, %v1776
        %s1781 = sld [smem:[#allocation11 + $0x1]]
        %v1782 = vstv %s1781
        %v1783 = vmul.f32 %v1759, %v1782
        %v1784 = vmul.f32 %v1760, %v1782
        %s1785 = sld [smem:[#allocation13 + $0x1]]
        %v1786 = vstv %s1785
        %v1787 = vadd.f32 %v1783, %v1786
        %v1788 = vadd.f32 %v1784, %v1786
        %v1789 = vmax.f32 %v1787, 0.0
        %v1790 = vmax.f32 %v1788, 0.0
        %1793 = vrot.lane.b32.xlu0 %v1789, 1
        %v1794 = vpop.permute.xlu0 %1793
        %1795 = vrot.lane.b32.xlu0 %v1790, 1
        %v1796 = vpop.permute.xlu0 %1795
        %s1799 = scalar_lea.vmem [#allocation3], 24
        %1800 = vst.msk [vmem:[%s1799 + $0x1] sm:$0xff] %vm568, %v1794
        %1801 = vst.msk [vmem:[%s1799 + $0x9] sm:$0xff] %vm568, %v1796
        %v1802 = vld [vmem:[#allocation3] sm:$0xff]
        %v1803 = vld [vmem:[#allocation3 + $0x8] sm:$0xff]
        %v1804 = vld [vmem:[#allocation3 + $0x1] sm:$0xff]
        %v1805 = vld [vmem:[#allocation3 + $0x9] sm:$0xff]
        %v1806 = vld [vmem:[#allocation3 + $0x2] sm:$0xff]
        %v1807 = vld [vmem:[#allocation3 + $0xa] sm:$0xff]
        %s1808 = sld [smem:[#allocation14]]
        %v1809 = vstv %s1808
        %v1810 = vmul.f32 %v1809, %v1802
        %v1811 = vmul.f32 %v1809, %v1803
        %v1812 = vadd.f32 %v1810, 0.0
        %v1813 = vadd.f32 %v1811, 0.0
        %s1814 = sld [smem:[#allocation14 + $0x1]]
        %v1815 = vstv %s1814
        %v1816 = vmul.f32 %v1815, %v1802
        %v1817 = vmul.f32 %v1815, %v1803
        %1820 = vrot.lane.b32.xlu0 %v1816, 127
        %v1821 = vpop.permute.xlu0 %1820
        %1822 = vrot.lane.b32.xlu0 %v1817, 127
        %v1823 = vpop.permute.xlu0 %1822
        %v1826 = vadd.f32 %v1812, %v1821
        %v1827 = vadd.f32 %v1813, %v1823
        %s1828 = sld [smem:[#allocation14 + $0x2]]
        %v1829 = vstv %s1828
        %v1830 = vmul.f32 %v1829, %v1802
        %v1831 = vmul.f32 %v1829, %v1803
        %1834 = vrot.lane.b32.xlu0 %v1830, 126
        %v1835 = vpop.permute.xlu0 %1834
        %1836 = vrot.lane.b32.xlu0 %v1831, 126
        %v1837 = vpop.permute.xlu0 %1836
        %v1840 = vadd.f32 %v1826, %v1835
        %v1841 = vadd.f32 %v1827, %v1837
        %s1842 = sld [smem:[#allocation14 + $0x3]]
        %v1843 = vstv %s1842
        %v1844 = vmul.f32 %v1843, %v1804
        %v1845 = vmul.f32 %v1843, %v1805
        %v1846 = vadd.f32 %v1840, %v1844
        %v1847 = vadd.f32 %v1841, %v1845
        %s1848 = sld [smem:[#allocation14 + $0x4]]
        %v1849 = vstv %s1848
        %v1850 = vmul.f32 %v1849, %v1804
        %v1851 = vmul.f32 %v1849, %v1805
        %1854 = vrot.lane.b32.xlu0 %v1850, 127
        %v1855 = vpop.permute.xlu0 %1854
        %1856 = vrot.lane.b32.xlu0 %v1851, 127
        %v1857 = vpop.permute.xlu0 %1856
        %v1860 = vadd.f32 %v1846, %v1855
        %v1861 = vadd.f32 %v1847, %v1857
        %s1862 = sld [smem:[#allocation14 + $0x5]]
        %v1863 = vstv %s1862
        %v1864 = vmul.f32 %v1863, %v1804
        %v1865 = vmul.f32 %v1863, %v1805
        %1868 = vrot.lane.b32.xlu0 %v1864, 126
        %v1869 = vpop.permute.xlu0 %1868
        %1870 = vrot.lane.b32.xlu0 %v1865, 126
        %v1871 = vpop.permute.xlu0 %1870
        %v1874 = vadd.f32 %v1860, %v1869
        %v1875 = vadd.f32 %v1861, %v1871
        %s1876 = sld [smem:[#allocation14 + $0x6]]
        %v1877 = vstv %s1876
        %v1878 = vmul.f32 %v1877, %v1806
        %v1879 = vmul.f32 %v1877, %v1807
        %v1880 = vadd.f32 %v1874, %v1878
        %v1881 = vadd.f32 %v1875, %v1879
        %s1882 = sld [smem:[#allocation14 + $0x7]]
        %v1883 = vstv %s1882
        %v1884 = vmul.f32 %v1883, %v1806
        %v1885 = vmul.f32 %v1883, %v1807
        %1888 = vrot.lane.b32.xlu0 %v1884, 127
        %v1889 = vpop.permute.xlu0 %1888
        %1890 = vrot.lane.b32.xlu0 %v1885, 127
        %v1891 = vpop.permute.xlu0 %1890
        %v1894 = vadd.f32 %v1880, %v1889
        %v1895 = vadd.f32 %v1881, %v1891
        %s1896 = sld [smem:[#allocation14 + $0x8]]
        %v1897 = vstv %s1896
        %v1898 = vmul.f32 %v1897, %v1806
        %v1899 = vmul.f32 %v1897, %v1807
        %1902 = vrot.lane.b32.xlu0 %v1898, 126
        %v1903 = vpop.permute.xlu0 %1902
        %1904 = vrot.lane.b32.xlu0 %v1899, 126
        %v1905 = vpop.permute.xlu0 %1904
        %v1908 = vadd.f32 %v1894, %v1903
        %v1909 = vadd.f32 %v1895, %v1905
        %s1910 = sld [smem:[#allocation14 + $0x12]]
        %v1911 = vstv %s1910
        %v1912 = vmul.f32 %v1911, %v1802
        %v1913 = vmul.f32 %v1911, %v1803
        %v1914 = vadd.f32 %v1912, 0.0
        %v1915 = vadd.f32 %v1913, 0.0
        %s1916 = sld [smem:[#allocation14 + $0x13]]
        %v1917 = vstv %s1916
        %v1918 = vmul.f32 %v1917, %v1802
        %v1919 = vmul.f32 %v1917, %v1803
        %1922 = vrot.lane.b32.xlu0 %v1918, 127
        %v1923 = vpop.permute.xlu0 %1922
        %1924 = vrot.lane.b32.xlu0 %v1919, 127
        %v1925 = vpop.permute.xlu0 %1924
        %v1928 = vadd.f32 %v1914, %v1923
        %v1929 = vadd.f32 %v1915, %v1925
        %s1930 = sld [smem:[#allocation14 + $0x14]]
        %v1931 = vstv %s1930
        %v1932 = vmul.f32 %v1931, %v1802
        %v1933 = vmul.f32 %v1931, %v1803
        %1936 = vrot.lane.b32.xlu0 %v1932, 126
        %v1937 = vpop.permute.xlu0 %1936
        %1938 = vrot.lane.b32.xlu0 %v1933, 126
        %v1939 = vpop.permute.xlu0 %1938
        %v1942 = vadd.f32 %v1928, %v1937
        %v1943 = vadd.f32 %v1929, %v1939
        %s1944 = sld [smem:[#allocation14 + $0x15]]
        %v1945 = vstv %s1944
        %v1946 = vmul.f32 %v1945, %v1804
        %v1947 = vmul.f32 %v1945, %v1805
        %v1948 = vadd.f32 %v1942, %v1946
        %v1949 = vadd.f32 %v1943, %v1947
        %s1950 = sld [smem:[#allocation14 + $0x16]]
        %v1951 = vstv %s1950
        %v1952 = vmul.f32 %v1951, %v1804
        %v1953 = vmul.f32 %v1951, %v1805
        %1956 = vrot.lane.b32.xlu0 %v1952, 127
        %v1957 = vpop.permute.xlu0 %1956
        %1958 = vrot.lane.b32.xlu0 %v1953, 127
        %v1959 = vpop.permute.xlu0 %1958
        %v1962 = vadd.f32 %v1948, %v1957
        %v1963 = vadd.f32 %v1949, %v1959
        %s1964 = sld [smem:[#allocation14 + $0x17]]
        %v1965 = vstv %s1964
        %v1966 = vmul.f32 %v1965, %v1804
        %v1967 = vmul.f32 %v1965, %v1805
        %1970 = vrot.lane.b32.xlu0 %v1966, 126
        %v1971 = vpop.permute.xlu0 %1970
        %1972 = vrot.lane.b32.xlu0 %v1967, 126
        %v1973 = vpop.permute.xlu0 %1972
        %v1976 = vadd.f32 %v1962, %v1971
        %v1977 = vadd.f32 %v1963, %v1973
        %s1978 = sld [smem:[#allocation14 + $0x18]]
        %v1979 = vstv %s1978
        %v1980 = vmul.f32 %v1979, %v1806
        %v1981 = vmul.f32 %v1979, %v1807
        %v1982 = vadd.f32 %v1976, %v1980
        %v1983 = vadd.f32 %v1977, %v1981
        %s1984 = sld [smem:[#allocation14 + $0x19]]
        %v1985 = vstv %s1984
        %v1986 = vmul.f32 %v1985, %v1806
        %v1987 = vmul.f32 %v1985, %v1807
        %1990 = vrot.lane.b32.xlu0 %v1986, 127
        %v1991 = vpop.permute.xlu0 %1990
        %1992 = vrot.lane.b32.xlu0 %v1987, 127
        %v1993 = vpop.permute.xlu0 %1992
        %v1996 = vadd.f32 %v1982, %v1991
        %v1997 = vadd.f32 %v1983, %v1993
        %s1998 = sld [smem:[#allocation14 + $0x1a]]
        %v1999 = vstv %s1998
        %v2000 = vmul.f32 %v1999, %v1806
        %v2001 = vmul.f32 %v1999, %v1807
        %2004 = vrot.lane.b32.xlu0 %v2000, 126
        %v2005 = vpop.permute.xlu0 %2004
        %2006 = vrot.lane.b32.xlu0 %v2001, 126
        %v2007 = vpop.permute.xlu0 %2006
        %v2010 = vadd.f32 %v1996, %v2005
        %v2011 = vadd.f32 %v1997, %v2007
        %s2012 = sld [smem:[#allocation14 + $0x24]]
        %v2013 = vstv %s2012
        %v2014 = vmul.f32 %v2013, %v1802
        %v2015 = vmul.f32 %v2013, %v1803
        %v2016 = vadd.f32 %v2014, 0.0
        %v2017 = vadd.f32 %v2015, 0.0
        %s2018 = sld [smem:[#allocation14 + $0x25]]
        %v2019 = vstv %s2018
        %v2020 = vmul.f32 %v2019, %v1802
        %v2021 = vmul.f32 %v2019, %v1803
        %2024 = vrot.lane.b32.xlu0 %v2020, 127
        %v2025 = vpop.permute.xlu0 %2024
        %2026 = vrot.lane.b32.xlu0 %v2021, 127
        %v2027 = vpop.permute.xlu0 %2026
        %v2030 = vadd.f32 %v2016, %v2025
        %v2031 = vadd.f32 %v2017, %v2027
        %s2032 = sld [smem:[#allocation14 + $0x26]]
        %v2033 = vstv %s2032
        %v2034 = vmul.f32 %v2033, %v1802
        %v2035 = vmul.f32 %v2033, %v1803
        %2038 = vrot.lane.b32.xlu0 %v2034, 126
        %v2039 = vpop.permute.xlu0 %2038
        %2040 = vrot.lane.b32.xlu0 %v2035, 126
        %v2041 = vpop.permute.xlu0 %2040
        %v2044 = vadd.f32 %v2030, %v2039
        %v2045 = vadd.f32 %v2031, %v2041
        %s2046 = sld [smem:[#allocation14 + $0x27]]
        %v2047 = vstv %s2046
        %v2048 = vmul.f32 %v2047, %v1804
        %v2049 = vmul.f32 %v2047, %v1805
        %v2050 = vadd.f32 %v2044, %v2048
        %v2051 = vadd.f32 %v2045, %v2049
        %s2052 = sld [smem:[#allocation14 + $0x28]]
        %v2053 = vstv %s2052
        %v2054 = vmul.f32 %v2053, %v1804
        %v2055 = vmul.f32 %v2053, %v1805
        %2058 = vrot.lane.b32.xlu0 %v2054, 127
        %v2059 = vpop.permute.xlu0 %2058
        %2060 = vrot.lane.b32.xlu0 %v2055, 127
        %v2061 = vpop.permute.xlu0 %2060
        %v2064 = vadd.f32 %v2050, %v2059
        %v2065 = vadd.f32 %v2051, %v2061
        %s2066 = sld [smem:[#allocation14 + $0x29]]
        %v2067 = vstv %s2066
        %v2068 = vmul.f32 %v2067, %v1804
        %v2069 = vmul.f32 %v2067, %v1805
        %2072 = vrot.lane.b32.xlu0 %v2068, 126
        %v2073 = vpop.permute.xlu0 %2072
        %2074 = vrot.lane.b32.xlu0 %v2069, 126
        %v2075 = vpop.permute.xlu0 %2074
        %v2078 = vadd.f32 %v2064, %v2073
        %v2079 = vadd.f32 %v2065, %v2075
        %s2080 = sld [smem:[#allocation14 + $0x2a]]
        %v2081 = vstv %s2080
        %v2082 = vmul.f32 %v2081, %v1806
        %v2083 = vmul.f32 %v2081, %v1807
        %v2084 = vadd.f32 %v2078, %v2082
        %v2085 = vadd.f32 %v2079, %v2083
        %s2086 = sld [smem:[#allocation14 + $0x2b]]
        %v2087 = vstv %s2086
        %v2088 = vmul.f32 %v2087, %v1806
        %v2089 = vmul.f32 %v2087, %v1807
        %2092 = vrot.lane.b32.xlu0 %v2088, 127
        %v2093 = vpop.permute.xlu0 %2092
        %2094 = vrot.lane.b32.xlu0 %v2089, 127
        %v2095 = vpop.permute.xlu0 %2094
        %v2098 = vadd.f32 %v2084, %v2093
        %v2099 = vadd.f32 %v2085, %v2095
        %s2100 = sld [smem:[#allocation14 + $0x2c]]
        %v2101 = vstv %s2100
        %v2102 = vmul.f32 %v2101, %v1806
        %v2103 = vmul.f32 %v2101, %v1807
        %2106 = vrot.lane.b32.xlu0 %v2102, 126
        %v2107 = vpop.permute.xlu0 %2106
        %2108 = vrot.lane.b32.xlu0 %v2103, 126
        %v2109 = vpop.permute.xlu0 %2108
        %v2112 = vadd.f32 %v2098, %v2107
        %v2113 = vadd.f32 %v2099, %v2109
        %s2114 = sld [smem:[#allocation14 + $0x36]]
        %v2115 = vstv %s2114
        %v2116 = vmul.f32 %v2115, %v1802
        %v2117 = vmul.f32 %v2115, %v1803
        %v2118 = vadd.f32 %v2116, 0.0
        %v2119 = vadd.f32 %v2117, 0.0
        %s2120 = sld [smem:[#allocation14 + $0x37]]
        %v2121 = vstv %s2120
        %v2122 = vmul.f32 %v2121, %v1802
        %v2123 = vmul.f32 %v2121, %v1803
        %2126 = vrot.lane.b32.xlu0 %v2122, 127
        %v2127 = vpop.permute.xlu0 %2126
        %2128 = vrot.lane.b32.xlu0 %v2123, 127
        %v2129 = vpop.permute.xlu0 %2128
        %v2132 = vadd.f32 %v2118, %v2127
        %v2133 = vadd.f32 %v2119, %v2129
        %s2134 = sld [smem:[#allocation14 + $0x38]]
        %v2135 = vstv %s2134
        %v2136 = vmul.f32 %v2135, %v1802
        %v2137 = vmul.f32 %v2135, %v1803
        %2140 = vrot.lane.b32.xlu0 %v2136, 126
        %v2141 = vpop.permute.xlu0 %2140
        %2142 = vrot.lane.b32.xlu0 %v2137, 126
        %v2143 = vpop.permute.xlu0 %2142
        %v2146 = vadd.f32 %v2132, %v2141
        %v2147 = vadd.f32 %v2133, %v2143
        %s2148 = sld [smem:[#allocation14 + $0x39]]
        %v2149 = vstv %s2148
        %v2150 = vmul.f32 %v2149, %v1804
        %v2151 = vmul.f32 %v2149, %v1805
        %v2152 = vadd.f32 %v2146, %v2150
        %v2153 = vadd.f32 %v2147, %v2151
        %s2154 = sld [smem:[#allocation14 + $0x3a]]
        %v2155 = vstv %s2154
        %v2156 = vmul.f32 %v2155, %v1804
        %v2157 = vmul.f32 %v2155, %v1805
        %2160 = vrot.lane.b32.xlu0 %v2156, 127
        %v2161 = vpop.permute.xlu0 %2160
        %2162 = vrot.lane.b32.xlu0 %v2157, 127
        %v2163 = vpop.permute.xlu0 %2162
        %v2166 = vadd.f32 %v2152, %v2161
        %v2167 = vadd.f32 %v2153, %v2163
        %s2168 = sld [smem:[#allocation14 + $0x3b]]
        %v2169 = vstv %s2168
        %v2170 = vmul.f32 %v2169, %v1804
        %v2171 = vmul.f32 %v2169, %v1805
        %2174 = vrot.lane.b32.xlu0 %v2170, 126
        %v2175 = vpop.permute.xlu0 %2174
        %2176 = vrot.lane.b32.xlu0 %v2171, 126
        %v2177 = vpop.permute.xlu0 %2176
        %v2180 = vadd.f32 %v2166, %v2175
        %v2181 = vadd.f32 %v2167, %v2177
        %s2182 = sld [smem:[#allocation14 + $0x3c]]
        %v2183 = vstv %s2182
        %v2184 = vmul.f32 %v2183, %v1806
        %v2185 = vmul.f32 %v2183, %v1807
        %v2186 = vadd.f32 %v2180, %v2184
        %v2187 = vadd.f32 %v2181, %v2185
        %s2188 = sld [smem:[#allocation14 + $0x3d]]
        %v2189 = vstv %s2188
        %v2190 = vmul.f32 %v2189, %v1806
        %v2191 = vmul.f32 %v2189, %v1807
        %2194 = vrot.lane.b32.xlu0 %v2190, 127
        %v2195 = vpop.permute.xlu0 %2194
        %2196 = vrot.lane.b32.xlu0 %v2191, 127
        %v2197 = vpop.permute.xlu0 %2196
        %v2200 = vadd.f32 %v2186, %v2195
        %v2201 = vadd.f32 %v2187, %v2197
        %s2202 = sld [smem:[#allocation14 + $0x3e]]
        %v2203 = vstv %s2202
        %v2204 = vmul.f32 %v2203, %v1806
        %v2205 = vmul.f32 %v2203, %v1807
        %2208 = vrot.lane.b32.xlu0 %v2204, 126
        %v2209 = vpop.permute.xlu0 %2208
        %2210 = vrot.lane.b32.xlu0 %v2205, 126
        %v2211 = vpop.permute.xlu0 %2210
        %v2214 = vadd.f32 %v2200, %v2209
        %v2215 = vadd.f32 %v2201, %v2211
        %v2216 = vld [vmem:[%s1799] sm:$0xff]
        %v2217 = vld [vmem:[%s1799 + $0x8] sm:$0xff]
        %v2218 = vld [vmem:[%s1799 + $0x1] sm:$0xff]
        %v2219 = vld [vmem:[%s1799 + $0x9] sm:$0xff]
        %v2220 = vld [vmem:[%s1799 + $0x2] sm:$0xff]
        %v2221 = vld [vmem:[%s1799 + $0xa] sm:$0xff]
        %s2222 = sld [smem:[#allocation14 + $0x9]]
        %v2223 = vstv %s2222
        %v2224 = vmul.f32 %v2223, %v2216
        %v2225 = vmul.f32 %v2223, %v2217
        %v2226 = vadd.f32 %v1908, %v2224
        %v2227 = vadd.f32 %v1909, %v2225
        %s2228 = sld [smem:[#allocation14 + $0xa]]
        %v2229 = vstv %s2228
        %v2230 = vmul.f32 %v2229, %v2216
        %v2231 = vmul.f32 %v2229, %v2217
        %2234 = vrot.lane.b32.xlu0 %v2230, 127
        %v2235 = vpop.permute.xlu0 %2234
        %2236 = vrot.lane.b32.xlu0 %v2231, 127
        %v2237 = vpop.permute.xlu0 %2236
        %v2240 = vadd.f32 %v2226, %v2235
        %v2241 = vadd.f32 %v2227, %v2237
        %s2242 = sld [smem:[#allocation14 + $0xb]]
        %v2243 = vstv %s2242
        %v2244 = vmul.f32 %v2243, %v2216
        %v2245 = vmul.f32 %v2243, %v2217
        %2248 = vrot.lane.b32.xlu0 %v2244, 126
        %v2249 = vpop.permute.xlu0 %2248
        %2250 = vrot.lane.b32.xlu0 %v2245, 126
        %v2251 = vpop.permute.xlu0 %2250
        %v2254 = vadd.f32 %v2240, %v2249
        %v2255 = vadd.f32 %v2241, %v2251
        %s2256 = sld [smem:[#allocation14 + $0xc]]
        %v2257 = vstv %s2256
        %v2258 = vmul.f32 %v2257, %v2218
        %v2259 = vmul.f32 %v2257, %v2219
        %v2260 = vadd.f32 %v2254, %v2258
        %v2261 = vadd.f32 %v2255, %v2259
        %s2262 = sld [smem:[#allocation14 + $0xd]]
        %v2263 = vstv %s2262
        %v2264 = vmul.f32 %v2263, %v2218
        %v2265 = vmul.f32 %v2263, %v2219
        %2268 = vrot.lane.b32.xlu0 %v2264, 127
        %v2269 = vpop.permute.xlu0 %2268
        %2270 = vrot.lane.b32.xlu0 %v2265, 127
        %v2271 = vpop.permute.xlu0 %2270
        %v2274 = vadd.f32 %v2260, %v2269
        %v2275 = vadd.f32 %v2261, %v2271
        %s2276 = sld [smem:[#allocation14 + $0xe]]
        %v2277 = vstv %s2276
        %v2278 = vmul.f32 %v2277, %v2218
        %v2279 = vmul.f32 %v2277, %v2219
        %2282 = vrot.lane.b32.xlu0 %v2278, 126
        %v2283 = vpop.permute.xlu0 %2282
        %2284 = vrot.lane.b32.xlu0 %v2279, 126
        %v2285 = vpop.permute.xlu0 %2284
        %v2288 = vadd.f32 %v2274, %v2283
        %v2289 = vadd.f32 %v2275, %v2285
        %s2290 = sld [smem:[#allocation14 + $0xf]]
        %v2291 = vstv %s2290
        %v2292 = vmul.f32 %v2291, %v2220
        %v2293 = vmul.f32 %v2291, %v2221
        %v2294 = vadd.f32 %v2288, %v2292
        %v2295 = vadd.f32 %v2289, %v2293
        %s2296 = sld [smem:[#allocation14 + $0x10]]
        %v2297 = vstv %s2296
        %v2298 = vmul.f32 %v2297, %v2220
        %v2299 = vmul.f32 %v2297, %v2221
        %2302 = vrot.lane.b32.xlu0 %v2298, 127
        %v2303 = vpop.permute.xlu0 %2302
        %2304 = vrot.lane.b32.xlu0 %v2299, 127
        %v2305 = vpop.permute.xlu0 %2304
        %v2308 = vadd.f32 %v2294, %v2303
        %v2309 = vadd.f32 %v2295, %v2305
        %s2310 = sld [smem:[#allocation14 + $0x11]]
        %v2311 = vstv %s2310
        %v2312 = vmul.f32 %v2311, %v2220
        %v2313 = vmul.f32 %v2311, %v2221
        %2316 = vrot.lane.b32.xlu0 %v2312, 126
        %v2317 = vpop.permute.xlu0 %2316
        %2318 = vrot.lane.b32.xlu0 %v2313, 126
        %v2319 = vpop.permute.xlu0 %2318
        %v2322 = vadd.f32 %v2308, %v2317
        %v2323 = vadd.f32 %v2309, %v2319
        %s2324 = sld [smem:[#allocation14 + $0x1b]]
        %v2325 = vstv %s2324
        %v2326 = vmul.f32 %v2325, %v2216
        %v2327 = vmul.f32 %v2325, %v2217
        %v2328 = vadd.f32 %v2010, %v2326
        %v2329 = vadd.f32 %v2011, %v2327
        %s2330 = sld [smem:[#allocation14 + $0x1c]]
        %v2331 = vstv %s2330
        %v2332 = vmul.f32 %v2331, %v2216
        %v2333 = vmul.f32 %v2331, %v2217
        %2336 = vrot.lane.b32.xlu0 %v2332, 127
        %v2337 = vpop.permute.xlu0 %2336
        %2338 = vrot.lane.b32.xlu0 %v2333, 127
        %v2339 = vpop.permute.xlu0 %2338
        %v2342 = vadd.f32 %v2328, %v2337
        %v2343 = vadd.f32 %v2329, %v2339
        %s2344 = sld [smem:[#allocation14 + $0x1d]]
        %v2345 = vstv %s2344
        %v2346 = vmul.f32 %v2345, %v2216
        %v2347 = vmul.f32 %v2345, %v2217
        %2350 = vrot.lane.b32.xlu0 %v2346, 126
        %v2351 = vpop.permute.xlu0 %2350
        %2352 = vrot.lane.b32.xlu0 %v2347, 126
        %v2353 = vpop.permute.xlu0 %2352
        %v2356 = vadd.f32 %v2342, %v2351
        %v2357 = vadd.f32 %v2343, %v2353
        %s2358 = sld [smem:[#allocation14 + $0x1e]]
        %v2359 = vstv %s2358
        %v2360 = vmul.f32 %v2359, %v2218
        %v2361 = vmul.f32 %v2359, %v2219
        %v2362 = vadd.f32 %v2356, %v2360
        %v2363 = vadd.f32 %v2357, %v2361
        %s2364 = sld [smem:[#allocation14 + $0x1f]]
        %v2365 = vstv %s2364
        %v2366 = vmul.f32 %v2365, %v2218
        %v2367 = vmul.f32 %v2365, %v2219
        %2370 = vrot.lane.b32.xlu0 %v2366, 127
        %v2371 = vpop.permute.xlu0 %2370
        %2372 = vrot.lane.b32.xlu0 %v2367, 127
        %v2373 = vpop.permute.xlu0 %2372
        %v2376 = vadd.f32 %v2362, %v2371
        %v2377 = vadd.f32 %v2363, %v2373
        %s2378 = sld [smem:[#allocation14 + $0x20]]
        %v2379 = vstv %s2378
        %v2380 = vmul.f32 %v2379, %v2218
        %v2381 = vmul.f32 %v2379, %v2219
        %2384 = vrot.lane.b32.xlu0 %v2380, 126
        %v2385 = vpop.permute.xlu0 %2384
        %2386 = vrot.lane.b32.xlu0 %v2381, 126
        %v2387 = vpop.permute.xlu0 %2386
        %v2390 = vadd.f32 %v2376, %v2385
        %v2391 = vadd.f32 %v2377, %v2387
        %s2392 = sld [smem:[#allocation14 + $0x21]]
        %v2393 = vstv %s2392
        %v2394 = vmul.f32 %v2393, %v2220
        %v2395 = vmul.f32 %v2393, %v2221
        %v2396 = vadd.f32 %v2390, %v2394
        %v2397 = vadd.f32 %v2391, %v2395
        %s2398 = sld [smem:[#allocation14 + $0x22]]
        %v2399 = vstv %s2398
        %v2400 = vmul.f32 %v2399, %v2220
        %v2401 = vmul.f32 %v2399, %v2221
        %2404 = vrot.lane.b32.xlu0 %v2400, 127
        %v2405 = vpop.permute.xlu0 %2404
        %2406 = vrot.lane.b32.xlu0 %v2401, 127
        %v2407 = vpop.permute.xlu0 %2406
        %v2410 = vadd.f32 %v2396, %v2405
        %v2411 = vadd.f32 %v2397, %v2407
        %s2412 = sld [smem:[#allocation14 + $0x23]]
        %v2413 = vstv %s2412
        %v2414 = vmul.f32 %v2413, %v2220
        %v2415 = vmul.f32 %v2413, %v2221
        %2418 = vrot.lane.b32.xlu0 %v2414, 126
        %v2419 = vpop.permute.xlu0 %2418
        %2420 = vrot.lane.b32.xlu0 %v2415, 126
        %v2421 = vpop.permute.xlu0 %2420
        %v2424 = vadd.f32 %v2410, %v2419
        %v2425 = vadd.f32 %v2411, %v2421
        %s2426 = sld [smem:[#allocation14 + $0x2d]]
        %v2427 = vstv %s2426
        %v2428 = vmul.f32 %v2427, %v2216
        %v2429 = vmul.f32 %v2427, %v2217
        %v2430 = vadd.f32 %v2112, %v2428
        %v2431 = vadd.f32 %v2113, %v2429
        %s2432 = sld [smem:[#allocation14 + $0x2e]]
        %v2433 = vstv %s2432
        %v2434 = vmul.f32 %v2433, %v2216
        %v2435 = vmul.f32 %v2433, %v2217
        %2438 = vrot.lane.b32.xlu0 %v2434, 127
        %v2439 = vpop.permute.xlu0 %2438
        %2440 = vrot.lane.b32.xlu0 %v2435, 127
        %v2441 = vpop.permute.xlu0 %2440
        %v2444 = vadd.f32 %v2430, %v2439
        %v2445 = vadd.f32 %v2431, %v2441
        %s2446 = sld [smem:[#allocation14 + $0x2f]]
        %v2447 = vstv %s2446
        %v2448 = vmul.f32 %v2447, %v2216
        %v2449 = vmul.f32 %v2447, %v2217
        %2452 = vrot.lane.b32.xlu0 %v2448, 126
        %v2453 = vpop.permute.xlu0 %2452
        %2454 = vrot.lane.b32.xlu0 %v2449, 126
        %v2455 = vpop.permute.xlu0 %2454
        %v2458 = vadd.f32 %v2444, %v2453
        %v2459 = vadd.f32 %v2445, %v2455
        %s2460 = sld [smem:[#allocation14 + $0x30]]
        %v2461 = vstv %s2460
        %v2462 = vmul.f32 %v2461, %v2218
        %v2463 = vmul.f32 %v2461, %v2219
        %v2464 = vadd.f32 %v2458, %v2462
        %v2465 = vadd.f32 %v2459, %v2463
        %s2466 = sld [smem:[#allocation14 + $0x31]]
        %v2467 = vstv %s2466
        %v2468 = vmul.f32 %v2467, %v2218
        %v2469 = vmul.f32 %v2467, %v2219
        %2472 = vrot.lane.b32.xlu0 %v2468, 127
        %v2473 = vpop.permute.xlu0 %2472
        %2474 = vrot.lane.b32.xlu0 %v2469, 127
        %v2475 = vpop.permute.xlu0 %2474
        %v2478 = vadd.f32 %v2464, %v2473
        %v2479 = vadd.f32 %v2465, %v2475
        %s2480 = sld [smem:[#allocation14 + $0x32]]
        %v2481 = vstv %s2480
        %v2482 = vmul.f32 %v2481, %v2218
        %v2483 = vmul.f32 %v2481, %v2219
        %2486 = vrot.lane.b32.xlu0 %v2482, 126
        %v2487 = vpop.permute.xlu0 %2486
        %2488 = vrot.lane.b32.xlu0 %v2483, 126
        %v2489 = vpop.permute.xlu0 %2488
        %v2492 = vadd.f32 %v2478, %v2487
        %v2493 = vadd.f32 %v2479, %v2489
        %s2494 = sld [smem:[#allocation14 + $0x33]]
        %v2495 = vstv %s2494
        %v2496 = vmul.f32 %v2495, %v2220
        %v2497 = vmul.f32 %v2495, %v2221
        %v2498 = vadd.f32 %v2492, %v2496
        %v2499 = vadd.f32 %v2493, %v2497
        %s2500 = sld [smem:[#allocation14 + $0x34]]
        %v2501 = vstv %s2500
        %v2502 = vmul.f32 %v2501, %v2220
        %v2503 = vmul.f32 %v2501, %v2221
        %2506 = vrot.lane.b32.xlu0 %v2502, 127
        %v2507 = vpop.permute.xlu0 %2506
        %2508 = vrot.lane.b32.xlu0 %v2503, 127
        %v2509 = vpop.permute.xlu0 %2508
        %v2512 = vadd.f32 %v2498, %v2507
        %v2513 = vadd.f32 %v2499, %v2509
        %s2514 = sld [smem:[#allocation14 + $0x35]]
        %v2515 = vstv %s2514
        %v2516 = vmul.f32 %v2515, %v2220
        %v2517 = vmul.f32 %v2515, %v2221
        %2520 = vrot.lane.b32.xlu0 %v2516, 126
        %v2521 = vpop.permute.xlu0 %2520
        %2522 = vrot.lane.b32.xlu0 %v2517, 126
        %v2523 = vpop.permute.xlu0 %2522
        %v2526 = vadd.f32 %v2512, %v2521
        %v2527 = vadd.f32 %v2513, %v2523
        %s2528 = sld [smem:[#allocation14 + $0x3f]]
        %v2529 = vstv %s2528
        %v2530 = vmul.f32 %v2529, %v2216
        %v2531 = vmul.f32 %v2529, %v2217
        %v2532 = vadd.f32 %v2214, %v2530
        %v2533 = vadd.f32 %v2215, %v2531
        %s2534 = sld [smem:[#allocation14 + $0x40]]
        %v2535 = vstv %s2534
        %v2536 = vmul.f32 %v2535, %v2216
        %v2537 = vmul.f32 %v2535, %v2217
        %2540 = vrot.lane.b32.xlu0 %v2536, 127
        %v2541 = vpop.permute.xlu0 %2540
        %2542 = vrot.lane.b32.xlu0 %v2537, 127
        %v2543 = vpop.permute.xlu0 %2542
        %v2546 = vadd.f32 %v2532, %v2541
        %v2547 = vadd.f32 %v2533, %v2543
        %s2548 = sld [smem:[#allocation14 + $0x41]]
        %v2549 = vstv %s2548
        %v2550 = vmul.f32 %v2549, %v2216
        %v2551 = vmul.f32 %v2549, %v2217
        %2554 = vrot.lane.b32.xlu0 %v2550, 126
        %v2555 = vpop.permute.xlu0 %2554
        %2556 = vrot.lane.b32.xlu0 %v2551, 126
        %v2557 = vpop.permute.xlu0 %2556
        %v2560 = vadd.f32 %v2546, %v2555
        %v2561 = vadd.f32 %v2547, %v2557
        %s2562 = sld [smem:[#allocation14 + $0x42]]
        %v2563 = vstv %s2562
        %v2564 = vmul.f32 %v2563, %v2218
        %v2565 = vmul.f32 %v2563, %v2219
        %v2566 = vadd.f32 %v2560, %v2564
        %v2567 = vadd.f32 %v2561, %v2565
        %s2568 = sld [smem:[#allocation14 + $0x43]]
        %v2569 = vstv %s2568
        %v2570 = vmul.f32 %v2569, %v2218
        %v2571 = vmul.f32 %v2569, %v2219
        %2574 = vrot.lane.b32.xlu0 %v2570, 127
        %v2575 = vpop.permute.xlu0 %2574
        %2576 = vrot.lane.b32.xlu0 %v2571, 127
        %v2577 = vpop.permute.xlu0 %2576
        %v2580 = vadd.f32 %v2566, %v2575
        %v2581 = vadd.f32 %v2567, %v2577
        %s2582 = sld [smem:[#allocation14 + $0x44]]
        %v2583 = vstv %s2582
        %v2584 = vmul.f32 %v2583, %v2218
        %v2585 = vmul.f32 %v2583, %v2219
        %2588 = vrot.lane.b32.xlu0 %v2584, 126
        %v2589 = vpop.permute.xlu0 %2588
        %2590 = vrot.lane.b32.xlu0 %v2585, 126
        %v2591 = vpop.permute.xlu0 %2590
        %v2594 = vadd.f32 %v2580, %v2589
        %v2595 = vadd.f32 %v2581, %v2591
        %s2596 = sld [smem:[#allocation14 + $0x45]]
        %v2597 = vstv %s2596
        %v2598 = vmul.f32 %v2597, %v2220
        %v2599 = vmul.f32 %v2597, %v2221
        %v2600 = vadd.f32 %v2594, %v2598
        %v2601 = vadd.f32 %v2595, %v2599
        %s2602 = sld [smem:[#allocation14 + $0x46]]
        %v2603 = vstv %s2602
        %v2604 = vmul.f32 %v2603, %v2220
        %v2605 = vmul.f32 %v2603, %v2221
        %2608 = vrot.lane.b32.xlu0 %v2604, 127
        %v2609 = vpop.permute.xlu0 %2608
        %2610 = vrot.lane.b32.xlu0 %v2605, 127
        %v2611 = vpop.permute.xlu0 %2610
        %v2614 = vadd.f32 %v2600, %v2609
        %v2615 = vadd.f32 %v2601, %v2611
        %s2616 = sld [smem:[#allocation14 + $0x47]]
        %v2617 = vstv %s2616
        %v2618 = vmul.f32 %v2617, %v2220
        %v2619 = vmul.f32 %v2617, %v2221
        %2622 = vrot.lane.b32.xlu0 %v2618, 126
        %v2623 = vpop.permute.xlu0 %2622
        %2624 = vrot.lane.b32.xlu0 %v2619, 126
        %v2625 = vpop.permute.xlu0 %2624
        %v2628 = vadd.f32 %v2614, %v2623
        %v2629 = vadd.f32 %v2615, %v2625
        %s2630 = sld [smem:[#allocation16]]
        %v2631 = vstv %s2630
        %v2632 = vmul.f32 %v2322, %v2631
        %v2633 = vmul.f32 %v2323, %v2631
        %s2634 = sld [smem:[#allocation17]]
        %v2635 = vstv %s2634
        %v2636 = vadd.f32 %v2632, %v2635
        %v2637 = vadd.f32 %v2633, %v2635
        %v2638 = vmax.f32 %v2636, 0.0
        %v2639 = vmax.f32 %v2637, 0.0
        %vm2640 = vcmask 130048
        %2641 = vst.msk [vmem:[%s494] sm:$0xff] %vm2640, %v2638
        %2642 = vst.msk [vmem:[%s494 + $0x8] sm:$0xff] %vm2640, %v2639
        %s2643 = sld [smem:[#allocation16 + $0x1]]
        %v2644 = vstv %s2643
        %v2645 = vmul.f32 %v2424, %v2644
        %v2646 = vmul.f32 %v2425, %v2644
        %s2647 = sld [smem:[#allocation17 + $0x1]]
        %v2648 = vstv %s2647
        %v2649 = vadd.f32 %v2645, %v2648
        %v2650 = vadd.f32 %v2646, %v2648
        %v2651 = vmax.f32 %v2649, 0.0
        %v2652 = vmax.f32 %v2650, 0.0
        %s2653 = scalar_lea.vmem %s494, 16 [#allocation19]
        %2654 = vst.msk [vmem:[%s2653] sm:$0xff] %vm2640, %v2651
        %2655 = vst.msk [vmem:[%s2653 + $0x8] sm:$0xff] %vm2640, %v2652
        %s2656 = sld [smem:[#allocation16 + $0x2]]
        %v2657 = vstv %s2656
        %v2658 = vmul.f32 %v2526, %v2657
        %v2659 = vmul.f32 %v2527, %v2657
        %s2660 = sld [smem:[#allocation17 + $0x2]]
        %v2661 = vstv %s2660
        %v2662 = vadd.f32 %v2658, %v2661
        %v2663 = vadd.f32 %v2659, %v2661
        %v2664 = vmax.f32 %v2662, 0.0
        %v2665 = vmax.f32 %v2663, 0.0
        %s2666 = scalar_lea.vmem %s494, 32 [#allocation19]
        %2667 = vst.msk [vmem:[%s2666] sm:$0xff] %vm2640, %v2664
        %2668 = vst.msk [vmem:[%s2666 + $0x8] sm:$0xff] %vm2640, %v2665
        %s2669 = sld [smem:[#allocation16 + $0x3]]
        %v2670 = vstv %s2669
        %v2671 = vmul.f32 %v2628, %v2670
        %v2672 = vmul.f32 %v2629, %v2670
        %s2673 = sld [smem:[#allocation17 + $0x3]]
        %v2674 = vstv %s2673
        %v2675 = vadd.f32 %v2671, %v2674
        %v2676 = vadd.f32 %v2672, %v2674
        %v2677 = vmax.f32 %v2675, 0.0
        %v2678 = vmax.f32 %v2676, 0.0
        %s2679 = scalar_lea.vmem %s494, 48 [#allocation19]
        %2680 = vst.msk [vmem:[%s2679] sm:$0xff] %vm2640, %v2677
        %2681 = vst.msk [vmem:[%s2679 + $0x8] sm:$0xff] %vm2640, %v2678
        %s2682 = sand.u32 %s262, 1
        %s2683 = scalar_lea.sflag [#allocation6], %s2682
        %s2684 = sand.u32 %s262, 1
        %s2685 = smul.addr %s2684, 64
        %s2686 = scalar_lea.vmem [#allocation19], %s2685
        // Predicated region
        $region93: #{tpu_custom_call.1} parent=59 // pred_check
          %p2687 = pneg %p272
        $region94: #{tpu_custom_call.1} parent=59 // pred_check_branch
          %2689 = sbr.rel (%p2687) target = $region96
        $region95: #{tpu_custom_call.1} parent=59 // pred_region
          %s2691 = ssub.s32 1024, 1024
          %2692 = vsyncadd %s2683, %s2691
          %s2693 = smul.addr %s34, 8
          %s2694 = smul.addr %s2693, 128
          %s2695 = scalar_lea.hbm %s10, %s2694
          %s2696 = sshll.u32 %s2686, 4
          %s2697 = int_to_ptr.vmem [resolvable:$true] %s2696
          %2702 = dma.vmem_to_hbm [thread:$0]  %s2697, 1024, %s2695, %s2683, 128, 128, 8
        $region96: #{tpu_custom_call.1} parent=59 // pred_fallthru
          _
      $region60: #{tpu_custom_call.1} parent=5 // pred_fallthru
        _
      %p2703 = scmp.le.s32.totalorder 2, %s29
      // Predicated region
      $region97: #{tpu_custom_call.1} parent=5 // pred_check
        %p2704 = pneg %p2703
      $region98: #{tpu_custom_call.1} parent=5 // pred_check_branch
        %2706 = sbr.rel (%p2704) target = $region100
      $region99: #{tpu_custom_call.1} parent=5 // pred_region
        %s2707 = ssub.s32 %s29, 2
        // Predicated region
        $region101: #{tpu_custom_call.1} parent=99 // pred_check
          %p2708 = pneg %p278
        $region102: #{tpu_custom_call.1} parent=99 // pred_check_branch
          %2710 = sbr.rel (%p2708) target = $region104
        $region103: #{tpu_custom_call.1} parent=99 // pred_region
          %s2711 = sand.u32 %s263, 1
          %s2712 = scalar_lea.sflag [#allocation6], %s2711
          %s2713 = sand.u32 %s263, 1
          %s2714 = smul.addr %s2713, 64
          %s2715 = scalar_lea.vmem [#allocation19], %s2714
          %2716 = dma.done %s2712, 1024
        $region104: #{tpu_custom_call.1} parent=99 // pred_fallthru
          _
      $region100: #{tpu_custom_call.1} parent=5 // pred_fallthru
        _
    $region6: #{tpu_custom_call.1} parent=1 // loop_footer
      %s33 = sadd.s32 1, %s29
    $region7: #{tpu_custom_call.1} parent=1 // loop_footer_branch
      %28 = sbr.rel target = $region3
    $region8: #{tpu_custom_call.1} parent=1 // loop_exit
      _
    %2717 = vsyncpa [#allocation5], 1
    %s2718 = scalar_lea.sflag [#allocation5], 1
    %2719 = vsyncpa %s2718, 1
    %2720 = vsyncpa [#allocation9], 1
    %s2721 = scalar_lea.sflag [#allocation9], 1
    %2722 = vsyncpa %s2721, 1
    %2723 = vsyncpa [#allocation6], 1
    %s2724 = scalar_lea.sflag [#allocation6], 1
    %2725 = vsyncpa %s2724, 1
    %2726 = vsyncpa [#allocation7], 1
    %s2727 = scalar_lea.sflag [#allocation7], 1
    %2728 = vsyncpa %s2727, 1
    %2729 = vsyncpa [#allocation12], 1
    %2730 = vsyncpa [#allocation15], 1
    %2731 = vsyncpa [#allocation18], 1

</llo_original>
